<compile_context>
chip_gen: v7x
topology: tpu7x:2x2x1
jax: 0.10.0
libtpu: 0.0.40
codegen_flags: <defaults>
</compile_context>

<pallas_src>
from functools import partial

import jax
import jax.numpy as jnp
from jax import lax
from jax.experimental import pallas as pl
from jax.experimental.pallas import tpu as pltpu

# ---------------- config (mirrors `opt`) ----------------
BERT_DIM = 32          # opt.bert_dim
ATT_DIM = 32           # opt.attention_dim
HEADS = 2              # opt.c_c_heads
SPLIT = ATT_DIM // HEADS
MAX_LEN = 8            # opt.max_length == sequence length
TRAC_ATT_K = 2         # opt.trac_att_k
CC_ATT_NUM = 2         # opt.c_c_Attention_num (AttentionModule always loops this count)
CA_ATT_NUM = 2         # opt.c_a_Attention_num (sizes attentionmodule2's weight list)
BATCH = 2
VOCAB = 30
EPS = 1e-6
OUT_PAD = 128          # lane-dense output width (>= 2*ATT_DIM, multiple of 128)


def _softmax_last(x):
    m = jnp.max(x, axis=-1, keepdims=True)
    e = jnp.exp(x - m)
    return e * pl.reciprocal(jnp.sum(e, axis=-1, keepdims=True), approx=True)


# ---------------- fused forward kernel ----------------
def _fused_kernel(x_ref, ln_a_ref, ln_b_ref, rowm_ref, w0_ref, wr_ref, br_ref,
                  ctx_ref, noise_ref,
                  *, heads, split, bert_dim, trac_k, max_len, num_layers, eps, out_pad):
    x = x_ref[...]                                    # (B, L, D) f32
    B, L, D = x.shape
    A = heads * split
    HS = 3 * split                                    # packed [Q|K|V] columns per (module, head)
    G = 2 * heads                                     # (module, head) groups
    GB = G * B                                        # batched attention rows
    hb = heads * B                                    # rows belonging to module 1

    # LayerNorm (torch.Tensor.std -> unbiased (d-1) estimator; eps added to std)
    mean = jnp.mean(x, axis=-1, keepdims=True)
    var = jnp.sum((x - mean) ** 2, axis=-1, keepdims=True) / (D - 1)
    seq = ln_a_ref[...] * (x - mean) / (jnp.sqrt(var) + eps) + ln_b_ref[...]

    # per-(module, head, batch) row mask: ones for module 1, aspect mask rows for module 2
    rowm = rowm_ref[...]                              # (GB, L)
    rowm3 = rowm[:, :, None]

    # hoisted once (shared by every layer / group)
    iota = lax.broadcasted_iota(jnp.int32, (GB, L, L), 2)
    is_mod2 = lax.broadcasted_iota(jnp.int32, (GB, 1, 1), 0) >= hb
    inv_scale = 1.0 / (bert_dim ** 0.5)

    noise1 = jnp.float32(0.0)
    noise2 = jnp.float32(0.0)

    x_in = seq.reshape(B * L, D)                      # layer-0 input shared by both modules
    ctx_cat = None
    for layer in range(num_layers):                   # static unroll
        # TODO(synk): opt.gcn_dropout is identity in eval mode; train-mode dropout not implemented.
        if layer == 0:
            w = w0_ref[...]                           # (D, 2*3A) bf16, [mod1 head-major | mod2]
            proj = jnp.dot(x_in.astype(jnp.bfloat16), w,
                           preferred_element_type=jnp.float32)              # (BL, 2*3A)
        else:
            w = wr_ref[layer - 1]                     # (2A, 2*3A) bf16, block-diag per module
            b = br_ref[layer - 1]                     # (1, 2*3A) f32
            proj = jnp.dot(x_in.astype(jnp.bfloat16), w,
                           preferred_element_type=jnp.float32) + b

        # head/module batching: group g owns columns [g*HS, (g+1)*HS)
        ph = jnp.concatenate(
            [proj[:, g * HS:(g + 1) * HS].reshape(B, L, HS) for g in range(G)],
            axis=0)                                                          # (GB, L, 3*split)
        qh = ph[:, :, 0:split]
        kh = ph[:, :, split:2 * split]
        vh = ph[:, :, 2 * split:3 * split]
        if layer == 0:
            # module 2's K/V come from the aspect-masked sequence; layer 0 is bias-free so
            # row-scaling the projection equals projecting the masked rows (module 1 rows *1).
            kh = kh * rowm3
            vh = vh * rowm3

        s = jnp.einsum('gld,gmd->glm', qh.astype(jnp.bfloat16), kh.astype(jnp.bfloat16),
                       preferred_element_type=jnp.float32)                   # (GB, L, L)
        s = jnp.tanh(s) * inv_scale
        s = _softmax_last(s)

        # greedy top-k (first-index tie-break, matching torch.max + scatter_)
        s_work = s
        topk_sum = jnp.zeros_like(s)
        mask_k_all = jnp.zeros_like(s)
        for _ in range(trac_k):
            mx = jnp.max(s_work, axis=-1, keepdims=True)
            first_idx = jnp.min(jnp.where(s_work == mx, iota, max_len),
                                axis=-1, keepdims=True)
            onehot = (iota == first_idx).astype(jnp.float32)
            sk = s * onehot
            topk_sum = topk_sum + sk
            mask_k_all = mask_k_all + onehot
            s_work = s_work - sk

        # min loop: scores_min never changes in the reference -> trac_k identical masks
        mn = jnp.min(s, axis=-1, keepdims=True)
        first_min = jnp.min(jnp.where(s == mn, iota, max_len), axis=-1, keepdims=True)
        mask_k_all_min = float(trac_k) * (iota == first_min).astype(jnp.float32)

        if trac_k > max_len - trac_k:                 # static python condition
            mask_r = 1.0 - mask_k_all
        else:
            mask_r = mask_k_all_min

        m = rowm3 * mask_r                            # module1 rows: rowm==1 -> m == mask_r
        sm = s * m
        # NOTE: matches reference exactly; divides by zero (NaN) iff a module's mask is all-zero.
        noise1 = noise1 + jnp.sum(sm[:hb]) / jnp.sum(m[:hb])
        noise2 = noise2 + jnp.sum(sm[hb:]) / jnp.sum(m[hb:])

        new_scores = _softmax_last(topk_sum)
        new_scores = new_scores * jnp.where(is_mod2, m, 1.0)   # mask only module-2 groups

        ctxg = jnp.einsum('glm,gmd->gld', new_scores.astype(jnp.bfloat16),
                          vh.astype(jnp.bfloat16),
                          preferred_element_type=jnp.float32)                # (GB, L, split)
        # lanes: [mod1 h0 | mod1 h1 | mod2 h0 | mod2 h1] == cat([ctx_mod1, ctx_mod2], -1)
        ctx_cat = jnp.concatenate([ctxg[g * B:(g + 1) * B] for g in range(G)],
                                  axis=-1)                                   # (B, L, 2A)
        x_in = ctx_cat.reshape(B * L, 2 * A)          # reference appends ctx to both lists

    # lane-dense output slab (last dim multiple of 128); wrapper slices [:, :, :2A]
    if out_pad > 2 * A:
        pad = jnp.zeros((B, L, out_pad - 2 * A), jnp.float32)
        ctx_ref[...] = jnp.concatenate([ctx_cat, pad], axis=-1)
    else:
        ctx_ref[...] = ctx_cat
    noise_ref[0] = noise1 / num_layers
    noise_ref[1] = noise2 / num_layers


# ---------------- weight packing & fused call wrapper ----------------
def _head_major_cols(wq, wk, wv, heads, split):
    cols = []
    for h in range(heads):
        sl = slice(h * split, (h + 1) * split)
        cols += [wq[:, sl], wk[:, sl], wv[:, sl]]
    return jnp.concatenate(cols, axis=1)              # (in_dim, 3*A), head-major [Q|K|V] blocks


def _head_major_bias(bq, bk, bv, heads, split):
    segs = []
    for h in range(heads):
        sl = slice(h * split, (h + 1) * split)
        segs += [bq[sl], bk[sl], bv[sl]]
    return jnp.concatenate(segs, axis=0)              # (3*A,)


def _pack_weights(att1, att2, att_dim, heads, num_layers):
    split = att_dim // heads
    A = att_dim
    # layer 0: both modules consume the same (LayerNorm'd) sequence -> column concat
    w0 = jnp.concatenate(
        [_head_major_cols(att1['wq'], att1['wk'], att1['wv'], heads, split),
         _head_major_cols(att2['wq'], att2['wk'], att2['wv'], heads, split)],
        axis=1)                                                              # (D, 2*3A)

    n_extra = num_layers - 1
    assert len(att1['wq1']) >= n_extra and len(att2['wq1']) >= n_extra
    wr_list, br_list = [], []
    for l in range(n_extra):
        w1 = _head_major_cols(att1['wq1'][l][0], att1['wk1'][l][0], att1['wv1'][l][0], heads, split)
        w2 = _head_major_cols(att2['wq1'][l][0], att2['wk1'][l][0], att2['wv1'][l][0], heads, split)
        z = jnp.zeros_like(w1)
        wr_list.append(jnp.concatenate(                                     # (2A, 2*3A) block-diag
            [jnp.concatenate([w1, z], axis=1),
             jnp.concatenate([z, w2], axis=1)], axis=0))
        b1 = _head_major_bias(att1['wq1'][l][1], att1['wk1'][l][1], att1['wv1'][l][1], heads, split)
        b2 = _head_major_bias(att2['wq1'][l][1], att2['wk1'][l][1], att2['wv1'][l][1], heads, split)
        br_list.append(jnp.concatenate([b1, b2], axis=0).reshape(1, 6 * A)) # (1, 2*3A)
    if n_extra == 0:
        wr = jnp.zeros((1, 2 * A, 6 * A), jnp.float32)                      # dummy, unused
        br = jnp.zeros((1, 1, 6 * A), jnp.float32)
    else:
        wr = jnp.stack(wr_list, axis=0)                                     # (n_extra, 2A, 6A)
        br = jnp.stack(br_list, axis=0)                                     # (n_extra, 1, 6A)
    return w0.astype(jnp.bfloat16), wr.astype(jnp.bfloat16), br.astype(jnp.float32)


def fused_forward(x_emb, ln_a, ln_b, aspect_mask, att1, att2):
    B, L, D = x_emb.shape
    A = ATT_DIM

    w0, wr, br = _pack_weights(att1, att2, A, HEADS, CC_ATT_NUM)
    n_extra = wr.shape[0]

    # row mask per (module, head, batch): ones for module 1, aspect-mask rows for module 2
    rowm = jnp.concatenate(
        [jnp.ones((HEADS * B, L), jnp.float32),
         jnp.tile(aspect_mask.astype(jnp.float32), (HEADS, 1))], axis=0)    # (2*H*B, L)

    kernel = partial(_fused_kernel, heads=HEADS, split=SPLIT, bert_dim=BERT_DIM,
                     trac_k=TRAC_ATT_K, max_len=MAX_LEN, num_layers=CC_ATT_NUM,
                     eps=EPS, out_pad=OUT_PAD)

    ctx_pad, noise = pl.pallas_call(
        kernel,
        out_shape=(jax.ShapeDtypeStruct((B, L, OUT_PAD), jnp.float32),
                   jax.ShapeDtypeStruct((2,), jnp.float32)),
        grid=(1,),                                    # single fused invocation (1 TC is plenty)
        in_specs=[
            pl.BlockSpec((B, L, D), lambda i: (0, 0, 0)),
            pl.BlockSpec((1, 1, D), lambda i: (0, 0, 0)),
            pl.BlockSpec((1, 1, D), lambda i: (0, 0, 0)),
            pl.BlockSpec((2 * HEADS * B, L), lambda i: (0, 0)),
            pl.BlockSpec((D, 6 * A), lambda i: (0, 0)),
            pl.BlockSpec((n_extra, 2 * A, 6 * A), lambda i: (0, 0, 0)),
            pl.BlockSpec((n_extra, 1, 6 * A), lambda i: (0, 0, 0)),
        ],
        out_specs=(
            pl.BlockSpec((B, L, OUT_PAD), lambda i: (0, 0, 0)),
            pl.BlockSpec(memory_space=pltpu.MemorySpace.SMEM),
        ),
        compiler_params=pltpu.CompilerParams(dimension_semantics=("arbitrary",)),
    )(x_emb, ln_a.reshape(1, 1, D), ln_b.reshape(1, 1, D), rowm, w0, wr, br)

    ctx_cat = ctx_pad[:, :, :2 * A]                   # == cat([ctx_module1, ctx_module2], -1)
    return ctx_cat, noise


# ---------------- parameter init ----------------
def init_attention_params(key, layer_num, in_dim, att_dim):
    n_extra = max(layer_num - 1, 0)
    keys = jax.random.split(key, 3 + 6 * max(n_extra, 1))
    scale = 0.02
    p = {
        'wq': scale * jax.random.normal(keys[0], (in_dim, att_dim), jnp.float32),
        'wk': scale * jax.random.normal(keys[1], (in_dim, att_dim), jnp.float32),
        'wv': scale * jax.random.normal(keys[2], (in_dim, att_dim), jnp.float32),
        'wq1': [], 'wk1': [], 'wv1': [],
    }
    idx = 3
    for _ in range(n_extra):
        for name in ('wq1', 'wk1', 'wv1'):
            w = scale * jax.random.normal(keys[idx], (att_dim, att_dim), jnp.float32)
            b = scale * jax.random.normal(keys[idx + 1], (att_dim,), jnp.float32)
            p[name].append((w, b))
            idx += 2
    return p


# ---------------- BertStructure forward ----------------
def bert_structure(params, inputs):
    (adj_f, adj_b, adj_f_aspect, adj_b_aspect, text_bert_indices, bert_segments_ids,
     attention_mask, text_len, post_1, asp_start, asp_end, src_mask,
     aspect_mask, polarity) = inputs

    # TODO(synk): the full BERT encoder has no clean Pallas port here; a deterministic
    # embedding-table lookup stands in for bert(...)[0] (attention_mask / segments ignored).
    sequence_output = params['bert_emb'][text_bert_indices]          # (B, L, BERT_DIM)

    context_output_att_cat, noise = fused_forward(
        sequence_output, params['ln_a'], params['ln_b'], aspect_mask,
        params['att1'], params['att2'])
    noise1 = noise[0]
    noise2 = noise[1]

    aspect_mask4 = jnp.repeat(aspect_mask[:, :, None], ATT_DIM * 2, axis=-1)
    aspect_output_att_cat = context_output_att_cat * aspect_mask4
    aspect_len = (asp_end - asp_start + 1)[:, None]

    context_output_bgcn_cat = 1
    aspect_output_bgcn_cat = 1
    all_output = 1
    all_aspect_output = 1
    return ([context_output_bgcn_cat, aspect_output_bgcn_cat, aspect_len],
            [context_output_att_cat, aspect_output_att_cat, aspect_len],
            [all_output, all_aspect_output, aspect_len],
            polarity,
            [noise1, noise2])


if __name__ == "__main__":
    key = jax.random.PRNGKey(0)
    k_emb, k_a1, k_a2, k_idx = jax.random.split(key, 4)

    params = {
        'bert_emb': 0.1 * jax.random.normal(k_emb, (VOCAB, BERT_DIM), jnp.float32),
        'ln_a': jnp.ones((BERT_DIM,), jnp.float32),
        'ln_b': jnp.zeros((BERT_DIM,), jnp.float32),
        'att1': init_attention_params(k_a1, CC_ATT_NUM, BERT_DIM, ATT_DIM),
        'att2': init_attention_params(k_a2, CA_ATT_NUM, BERT_DIM, ATT_DIM),
    }

    B, L = BATCH, MAX_LEN
    text_bert_indices = jax.random.randint(k_idx, (B, L), 0, VOCAB)
    bert_segments_ids = jnp.zeros((B, L), jnp.int32)
    attention_mask = jnp.ones((B, L), jnp.int32)
    text_len = jnp.full((B,), L, jnp.int32)
    post_1 = jnp.zeros((B, L), jnp.int32)
    asp_start = jnp.array([2, 3], jnp.int32)
    asp_end = jnp.array([3, 5], jnp.int32)
    src_mask = jnp.ones((B, L), jnp.float32)
    aspect_mask = jnp.zeros((B, L), jnp.float32)
    aspect_mask = aspect_mask.at[0, 2:4].set(1.0).at[1, 3:6].set(1.0)
    polarity = jnp.array([0, 1], jnp.int32)
    adj = jnp.zeros((B, L, L), jnp.float32)

    inputs = (adj, adj, adj, adj, text_bert_indices, bert_segments_ids,
              attention_mask, text_len, post_1, asp_start, asp_end, src_mask,
              aspect_mask, polarity)

    out = bert_structure(params, inputs)
    jax.block_until_ready(out[1][0])
    jax.block_until_ready(out[1][1])
    jax.block_until_ready(out[4][0])
    jax.block_until_ready(out[4][1])
    print("KERNEL_OK")
</pallas_src>

<mosaic_0001>
module attributes {stable_mosaic.version = 11 : i64} {
  func.func @_fused_kernel(%arg0: i32, %arg1: memref<2x8x32xf32, #tpu.memory_space<vmem>>, %arg2: memref<1x1x32xf32, #tpu.memory_space<vmem>>, %arg3: memref<1x1x32xf32, #tpu.memory_space<vmem>>, %arg4: memref<8x8xf32, #tpu.memory_space<vmem>>, %arg5: memref<32x192xbf16, #tpu.memory_space<vmem>>, %arg6: memref<1x64x192xbf16, #tpu.memory_space<vmem>>, %arg7: memref<1x1x192xf32, #tpu.memory_space<vmem>>, %arg8: memref<2x8x128xf32, #tpu.memory_space<vmem>>, %arg9: memref<2xf32, #tpu.memory_space<smem>>) attributes {dimension_semantics = [#tpu.dimension_semantics<arbitrary>], iteration_bounds = array<i64: 1>, scalar_prefetch = 0 : i64, scratch_operands = 0 : i64, tpu.core_type = #tpu.core_type<tc>, window_params = [{pipeline_mode = #tpu.pipeline_mode<synchronous>, transform_indices = @transform_0, window_bounds = array<i64: 2, 8, 32>}, {pipeline_mode = #tpu.pipeline_mode<synchronous>, transform_indices = @transform_1, window_bounds = array<i64: 1, 1, 32>}, {pipeline_mode = #tpu.pipeline_mode<synchronous>, transform_indices = @transform_2, window_bounds = array<i64: 1, 1, 32>}, {pipeline_mode = #tpu.pipeline_mode<synchronous>, transform_indices = @transform_3, window_bounds = array<i64: 8, 8>}, {pipeline_mode = #tpu.pipeline_mode<synchronous>, transform_indices = @transform_4, window_bounds = array<i64: 32, 192>}, {pipeline_mode = #tpu.pipeline_mode<synchronous>, transform_indices = @transform_5, window_bounds = array<i64: 1, 64, 192>}, {pipeline_mode = #tpu.pipeline_mode<synchronous>, transform_indices = @transform_6, window_bounds = array<i64: 1, 1, 192>}, {pipeline_mode = #tpu.pipeline_mode<synchronous>, transform_indices = @transform_7, window_bounds = array<i64: 2, 8, 128>}, {transform_indices = @transform_8, window_bounds = array<i64: 2>}]} {
    %c0 = arith.constant 0 : index
    %c0_0 = arith.constant 0 : index
    %c0_1 = arith.constant 0 : index
    %0 = vector.load %arg1[%c0, %c0_0, %c0_1] : memref<2x8x32xf32, #tpu.memory_space<vmem>>, vector<2x8x32xf32>
    %cst = arith.constant dense<0.000000e+00> : vector<2x8xf32>
    %1 = vector.multi_reduction <add>, %0, %cst [2] : vector<2x8x32xf32> to vector<2x8xf32>
    %2 = vector.shape_cast %1 : vector<2x8xf32> to vector<2x8x1xf32>
    %cst_2 = arith.constant 3.200000e+01 : f32
    %3 = vector.broadcast %cst_2 : f32 to vector<2x8x1xf32>
    %4 = arith.divf %2, %3 : vector<2x8x1xf32>
    %5 = vector.broadcast %4 : vector<2x8x1xf32> to vector<2x8x32xf32>
    %6 = arith.subf %0, %5 : vector<2x8x32xf32>
    %7 = arith.mulf %6, %6 : vector<2x8x32xf32>
    %cst_3 = arith.constant dense<0.000000e+00> : vector<2x8xf32>
    %8 = vector.multi_reduction <add>, %7, %cst_3 [2] : vector<2x8x32xf32> to vector<2x8xf32>
    %9 = vector.shape_cast %8 : vector<2x8xf32> to vector<2x8x1xf32>
    %cst_4 = arith.constant 3.100000e+01 : f32
    %10 = vector.broadcast %cst_4 : f32 to vector<2x8x1xf32>
    %11 = arith.divf %9, %10 : vector<2x8x1xf32>
    %c0_5 = arith.constant 0 : index
    %c0_6 = arith.constant 0 : index
    %c0_7 = arith.constant 0 : index
    %12 = vector.load %arg2[%c0_5, %c0_6, %c0_7] : memref<1x1x32xf32, #tpu.memory_space<vmem>>, vector<1x1x32xf32>
    %13 = vector.broadcast %4 : vector<2x8x1xf32> to vector<2x8x32xf32>
    %14 = arith.subf %0, %13 : vector<2x8x32xf32>
    %15 = vector.broadcast %12 : vector<1x1x32xf32> to vector<2x8x32xf32>
    %16 = arith.mulf %15, %14 : vector<2x8x32xf32>
    %17 = math.sqrt %11 : vector<2x8x1xf32>
    %cst_8 = arith.constant 9.99999997E-7 : f32
    %18 = vector.broadcast %cst_8 : f32 to vector<2x8x1xf32>
    %19 = arith.addf %17, %18 : vector<2x8x1xf32>
    %20 = vector.broadcast %19 : vector<2x8x1xf32> to vector<2x8x32xf32>
    %21 = arith.divf %16, %20 : vector<2x8x32xf32>
    %c0_9 = arith.constant 0 : index
    %c0_10 = arith.constant 0 : index
    %c0_11 = arith.constant 0 : index
    %22 = vector.load %arg3[%c0_9, %c0_10, %c0_11] : memref<1x1x32xf32, #tpu.memory_space<vmem>>, vector<1x1x32xf32>
    %23 = vector.broadcast %22 : vector<1x1x32xf32> to vector<2x8x32xf32>
    %24 = arith.addf %21, %23 : vector<2x8x32xf32>
    %c0_12 = arith.constant 0 : index
    %c0_13 = arith.constant 0 : index
    %25 = vector.load %arg4[%c0_12, %c0_13] : memref<8x8xf32, #tpu.memory_space<vmem>>, vector<8x8xf32>
    %26 = vector.shape_cast %25 : vector<8x8xf32> to vector<8x8x1xf32>
    %27 = tpu.iota {dimensions = array<i32: 2>} : vector<8x8x8xi32>
    %28 = tpu.iota {dimensions = array<i32: 0>} : vector<8x1x1xi32>
    %c4_i32 = arith.constant 4 : i32
    %29 = vector.broadcast %c4_i32 : i32 to vector<8x1x1xi32>
    %30 = arith.cmpi sge, %28, %29 : vector<8x1x1xi32>
    %31 = vector.shape_cast %24 : vector<2x8x32xf32> to vector<16x32xf32>
    %c0_14 = arith.constant 0 : index
    %c0_15 = arith.constant 0 : index
    %32 = vector.load %arg5[%c0_14, %c0_15] : memref<32x192xbf16, #tpu.memory_space<vmem>>, vector<32x192xbf16>
    %33 = arith.truncf %31 : vector<16x32xf32> to vector<16x32xbf16>
    %cst_16 = arith.constant dense<0.000000e+00> : vector<16x192xf32>
    %34 = tpu.matmul %33, %32, %cst_16 {dimension_numbers = #tpu.dot_dimension_numbers<[1], [0], [0], [1], [0, 0, 1, 1], [], []>} : vector<16x32xbf16>, vector<32x192xbf16>, vector<16x192xf32> -> vector<16x192xf32>
    %35 = vector.extract_strided_slice %34 {offsets = [0, 0], sizes = [16, 48], strides = [1, 1]} : vector<16x192xf32> to vector<16x48xf32>
    %36 = vector.shape_cast %35 : vector<16x48xf32> to vector<2x8x48xf32>
    %37 = vector.extract_strided_slice %34 {offsets = [0, 48], sizes = [16, 48], strides = [1, 1]} : vector<16x192xf32> to vector<16x48xf32>
    %38 = vector.shape_cast %37 : vector<16x48xf32> to vector<2x8x48xf32>
    %39 = vector.extract_strided_slice %34 {offsets = [0, 96], sizes = [16, 48], strides = [1, 1]} : vector<16x192xf32> to vector<16x48xf32>
    %40 = vector.shape_cast %39 : vector<16x48xf32> to vector<2x8x48xf32>
    %41 = vector.extract_strided_slice %34 {offsets = [0, 144], sizes = [16, 48], strides = [1, 1]} : vector<16x192xf32> to vector<16x48xf32>
    %42 = vector.shape_cast %41 : vector<16x48xf32> to vector<2x8x48xf32>
    %43 = tpu.concatenate %36, %38, %40, %42 in 0 : vector<2x8x48xf32>, vector<2x8x48xf32>, vector<2x8x48xf32>, vector<2x8x48xf32> -> vector<8x8x48xf32>
    %44 = vector.extract_strided_slice %43 {offsets = [0, 0, 0], sizes = [8, 8, 16], strides = [1, 1, 1]} : vector<8x8x48xf32> to vector<8x8x16xf32>
    %45 = vector.extract_strided_slice %43 {offsets = [0, 0, 16], sizes = [8, 8, 16], strides = [1, 1, 1]} : vector<8x8x48xf32> to vector<8x8x16xf32>
    %46 = vector.extract_strided_slice %43 {offsets = [0, 0, 32], sizes = [8, 8, 16], strides = [1, 1, 1]} : vector<8x8x48xf32> to vector<8x8x16xf32>
    %47 = vector.broadcast %26 : vector<8x8x1xf32> to vector<8x8x16xf32>
    %48 = arith.mulf %45, %47 : vector<8x8x16xf32>
    %49 = vector.broadcast %26 : vector<8x8x1xf32> to vector<8x8x16xf32>
    %50 = arith.mulf %46, %49 : vector<8x8x16xf32>
    %51 = arith.truncf %44 : vector<8x8x16xf32> to vector<8x8x16xbf16>
    %52 = arith.truncf %48 : vector<8x8x16xf32> to vector<8x8x16xbf16>
    "tpu.trace_start"() <{level = 10 : i32, message = "gld,gmd->glm"}> : () -> ()
    %cst_17 = arith.constant dense<0.000000e+00> : vector<8x8x8xf32>
    %53 = tpu.matmul %51, %52, %cst_17 {dimension_numbers = #tpu.dot_dimension_numbers<[2], [2], [1], [1], [0, 0, 0, 1, 1, 1], [0], [0]>} : vector<8x8x16xbf16>, vector<8x8x16xbf16>, vector<8x8x8xf32> -> vector<8x8x8xf32>
    "tpu.trace_stop"() : () -> ()
    %54 = math.tanh %53 : vector<8x8x8xf32>
    %cst_18 = arith.constant 0.176776692 : f32
    %55 = vector.broadcast %cst_18 : f32 to vector<8x8x8xf32>
    %56 = arith.mulf %54, %55 : vector<8x8x8xf32>
    %cst_19 = arith.constant dense<0xFF800000> : vector<8x8xf32>
    %57 = vector.multi_reduction <maximumf>, %56, %cst_19 [2] : vector<8x8x8xf32> to vector<8x8xf32>
    %58 = vector.shape_cast %57 : vector<8x8xf32> to vector<8x8x1xf32>
    %59 = vector.broadcast %58 : vector<8x8x1xf32> to vector<8x8x8xf32>
    %60 = arith.subf %56, %59 : vector<8x8x8xf32>
    %61 = math.exp %60 : vector<8x8x8xf32>
    %cst_20 = arith.constant dense<0.000000e+00> : vector<8x8xf32>
    %62 = vector.multi_reduction <add>, %61, %cst_20 [2] : vector<8x8x8xf32> to vector<8x8xf32>
    %63 = vector.shape_cast %62 : vector<8x8xf32> to vector<8x8x1xf32>
    %64 = tpu.reciprocal %63 {approx = true} : vector<8x8x1xf32> -> vector<8x8x1xf32>
    %65 = vector.broadcast %64 : vector<8x8x1xf32> to vector<8x8x8xf32>
    %66 = arith.mulf %61, %65 : vector<8x8x8xf32>
    %cst_21 = arith.constant 0.000000e+00 : f32
    %67 = vector.broadcast %cst_21 : f32 to vector<8x8x8xf32>
    %cst_22 = arith.constant dense<0xFF800000> : vector<8x8xf32>
    %68 = vector.multi_reduction <maximumf>, %66, %cst_22 [2] : vector<8x8x8xf32> to vector<8x8xf32>
    %69 = vector.shape_cast %68 : vector<8x8xf32> to vector<8x8x1xf32>
    %70 = vector.broadcast %69 : vector<8x8x1xf32> to vector<8x8x8xf32>
    %71 = arith.cmpf oeq, %66, %70 : vector<8x8x8xf32>
    %c8_i32 = arith.constant 8 : i32
    %72 = vector.broadcast %c8_i32 : i32 to vector<8x8x8xi32>
    %73 = arith.select %71, %27, %72 : vector<8x8x8xi1>, vector<8x8x8xi32>
    %cst_23 = arith.constant dense<2147483647> : vector<8x8xi32>
    %74 = vector.multi_reduction <minsi>, %73, %cst_23 [2] : vector<8x8x8xi32> to vector<8x8xi32>
    %75 = vector.shape_cast %74 : vector<8x8xi32> to vector<8x8x1xi32>
    %76 = vector.broadcast %75 : vector<8x8x1xi32> to vector<8x8x8xi32>
    %77 = arith.cmpi eq, %27, %76 : vector<8x8x8xi32>
    %78 = arith.extui %77 : vector<8x8x8xi1> to vector<8x8x8xi32>
    %79 = arith.sitofp %78 : vector<8x8x8xi32> to vector<8x8x8xf32>
    %80 = arith.mulf %66, %79 : vector<8x8x8xf32>
    %81 = arith.addf %67, %80 : vector<8x8x8xf32>
    %82 = arith.subf %66, %80 : vector<8x8x8xf32>
    %cst_24 = arith.constant dense<0xFF800000> : vector<8x8xf32>
    %83 = vector.multi_reduction <maximumf>, %82, %cst_24 [2] : vector<8x8x8xf32> to vector<8x8xf32>
    %84 = vector.shape_cast %83 : vector<8x8xf32> to vector<8x8x1xf32>
    %85 = vector.broadcast %84 : vector<8x8x1xf32> to vector<8x8x8xf32>
    %86 = arith.cmpf oeq, %82, %85 : vector<8x8x8xf32>
    %c8_i32_25 = arith.constant 8 : i32
    %87 = vector.broadcast %c8_i32_25 : i32 to vector<8x8x8xi32>
    %88 = arith.select %86, %27, %87 : vector<8x8x8xi1>, vector<8x8x8xi32>
    %cst_26 = arith.constant dense<2147483647> : vector<8x8xi32>
    %89 = vector.multi_reduction <minsi>, %88, %cst_26 [2] : vector<8x8x8xi32> to vector<8x8xi32>
    %90 = vector.shape_cast %89 : vector<8x8xi32> to vector<8x8x1xi32>
    %91 = vector.broadcast %90 : vector<8x8x1xi32> to vector<8x8x8xi32>
    %92 = arith.cmpi eq, %27, %91 : vector<8x8x8xi32>
    %93 = arith.extui %92 : vector<8x8x8xi1> to vector<8x8x8xi32>
    %94 = arith.sitofp %93 : vector<8x8x8xi32> to vector<8x8x8xf32>
    %95 = arith.mulf %66, %94 : vector<8x8x8xf32>
    %96 = arith.addf %81, %95 : vector<8x8x8xf32>
    %cst_27 = arith.constant dense<0x7F800000> : vector<8x8xf32>
    %97 = vector.multi_reduction <minimumf>, %66, %cst_27 [2] : vector<8x8x8xf32> to vector<8x8xf32>
    %98 = vector.shape_cast %97 : vector<8x8xf32> to vector<8x8x1xf32>
    %99 = vector.broadcast %98 : vector<8x8x1xf32> to vector<8x8x8xf32>
    %100 = arith.cmpf oeq, %66, %99 : vector<8x8x8xf32>
    %c8_i32_28 = arith.constant 8 : i32
    %101 = vector.broadcast %c8_i32_28 : i32 to vector<8x8x8xi32>
    %102 = arith.select %100, %27, %101 : vector<8x8x8xi1>, vector<8x8x8xi32>
    %cst_29 = arith.constant dense<2147483647> : vector<8x8xi32>
    %103 = vector.multi_reduction <minsi>, %102, %cst_29 [2] : vector<8x8x8xi32> to vector<8x8xi32>
    %104 = vector.shape_cast %103 : vector<8x8xi32> to vector<8x8x1xi32>
    %105 = vector.broadcast %104 : vector<8x8x1xi32> to vector<8x8x8xi32>
    %106 = arith.cmpi eq, %27, %105 : vector<8x8x8xi32>
    %107 = arith.extui %106 : vector<8x8x8xi1> to vector<8x8x8xi32>
    %108 = arith.sitofp %107 : vector<8x8x8xi32> to vector<8x8x8xf32>
    %cst_30 = arith.constant 2.000000e+00 : f32
    %109 = vector.broadcast %cst_30 : f32 to vector<8x8x8xf32>
    %110 = arith.mulf %109, %108 : vector<8x8x8xf32>
    %111 = vector.broadcast %26 : vector<8x8x1xf32> to vector<8x8x8xf32>
    %112 = arith.mulf %111, %110 : vector<8x8x8xf32>
    %113 = arith.mulf %66, %112 : vector<8x8x8xf32>
    %114 = vector.extract_strided_slice %113 {offsets = [0, 0, 0], sizes = [4, 8, 8], strides = [1, 1, 1]} : vector<8x8x8xf32> to vector<4x8x8xf32>
    %115 = vector.shape_cast %114 : vector<4x8x8xf32> to vector<1x4x8x8xf32>
    %cst_31 = arith.constant dense<0.000000e+00> : vector<1xf32>
    %116 = vector.multi_reduction <add>, %115, %cst_31 [1, 2, 3] : vector<1x4x8x8xf32> to vector<1xf32>
    %117 = vector.shape_cast %116 : vector<1xf32> to vector<1x1x1x1xf32>
    %118 = vector.extract %117[0, 0, 0, 0] : f32 from vector<1x1x1x1xf32>
    %119 = vector.extract_strided_slice %112 {offsets = [0, 0, 0], sizes = [4, 8, 8], strides = [1, 1, 1]} : vector<8x8x8xf32> to vector<4x8x8xf32>
    %120 = vector.shape_cast %119 : vector<4x8x8xf32> to vector<1x4x8x8xf32>
    %cst_32 = arith.constant dense<0.000000e+00> : vector<1xf32>
    %121 = vector.multi_reduction <add>, %120, %cst_32 [1, 2, 3] : vector<1x4x8x8xf32> to vector<1xf32>
    %122 = vector.shape_cast %121 : vector<1xf32> to vector<1x1x1x1xf32>
    %123 = vector.extract %122[0, 0, 0, 0] : f32 from vector<1x1x1x1xf32>
    %124 = arith.divf %118, %123 : f32
    %cst_33 = arith.constant 0.000000e+00 : f32
    %125 = arith.addf %cst_33, %124 : f32
    %126 = vector.extract_strided_slice %113 {offsets = [4, 0, 0], sizes = [4, 8, 8], strides = [1, 1, 1]} : vector<8x8x8xf32> to vector<4x8x8xf32>
    %127 = vector.shape_cast %126 : vector<4x8x8xf32> to vector<1x4x8x8xf32>
    %cst_34 = arith.constant dense<0.000000e+00> : vector<1xf32>
    %128 = vector.multi_reduction <add>, %127, %cst_34 [1, 2, 3] : vector<1x4x8x8xf32> to vector<1xf32>
    %129 = vector.shape_cast %128 : vector<1xf32> to vector<1x1x1x1xf32>
    %130 = vector.extract %129[0, 0, 0, 0] : f32 from vector<1x1x1x1xf32>
    %131 = vector.extract_strided_slice %112 {offsets = [4, 0, 0], sizes = [4, 8, 8], strides = [1, 1, 1]} : vector<8x8x8xf32> to vector<4x8x8xf32>
    %132 = vector.shape_cast %131 : vector<4x8x8xf32> to vector<1x4x8x8xf32>
    %cst_35 = arith.constant dense<0.000000e+00> : vector<1xf32>
    %133 = vector.multi_reduction <add>, %132, %cst_35 [1, 2, 3] : vector<1x4x8x8xf32> to vector<1xf32>
    %134 = vector.shape_cast %133 : vector<1xf32> to vector<1x1x1x1xf32>
    %135 = vector.extract %134[0, 0, 0, 0] : f32 from vector<1x1x1x1xf32>
    %136 = arith.divf %130, %135 : f32
    %cst_36 = arith.constant 0.000000e+00 : f32
    %137 = arith.addf %cst_36, %136 : f32
    %cst_37 = arith.constant dense<0xFF800000> : vector<8x8xf32>
    %138 = vector.multi_reduction <maximumf>, %96, %cst_37 [2] : vector<8x8x8xf32> to vector<8x8xf32>
    %139 = vector.shape_cast %138 : vector<8x8xf32> to vector<8x8x1xf32>
    %140 = vector.broadcast %139 : vector<8x8x1xf32> to vector<8x8x8xf32>
    %141 = arith.subf %96, %140 : vector<8x8x8xf32>
    %142 = math.exp %141 : vector<8x8x8xf32>
    %cst_38 = arith.constant dense<0.000000e+00> : vector<8x8xf32>
    %143 = vector.multi_reduction <add>, %142, %cst_38 [2] : vector<8x8x8xf32> to vector<8x8xf32>
    %144 = vector.shape_cast %143 : vector<8x8xf32> to vector<8x8x1xf32>
    %145 = tpu.reciprocal %144 {approx = true} : vector<8x8x1xf32> -> vector<8x8x1xf32>
    %146 = vector.broadcast %145 : vector<8x8x1xf32> to vector<8x8x8xf32>
    %147 = arith.mulf %142, %146 : vector<8x8x8xf32>
    %cst_39 = arith.constant 1.000000e+00 : f32
    %148 = vector.shape_cast %30 : vector<8x1x1xi1> to vector<8x1x1xi1>
    %149 = vector.broadcast %148 : vector<8x1x1xi1> to vector<8x8x8xi1>
    %150 = vector.broadcast %cst_39 : f32 to vector<8x8x8xf32>
    %151 = arith.select %149, %112, %150 : vector<8x8x8xi1>, vector<8x8x8xf32>
    %152 = arith.mulf %147, %151 : vector<8x8x8xf32>
    %153 = arith.truncf %152 : vector<8x8x8xf32> to vector<8x8x8xbf16>
    %154 = arith.truncf %50 : vector<8x8x16xf32> to vector<8x8x16xbf16>
    "tpu.trace_start"() <{level = 10 : i32, message = "glm,gmd->gld"}> : () -> ()
    %cst_40 = arith.constant dense<0.000000e+00> : vector<8x8x16xf32>
    %155 = tpu.matmul %153, %154, %cst_40 {dimension_numbers = #tpu.dot_dimension_numbers<[2], [1], [1], [2], [0, 0, 0, 1, 1, 2], [0], [0]>} : vector<8x8x8xbf16>, vector<8x8x16xbf16>, vector<8x8x16xf32> -> vector<8x8x16xf32>
    "tpu.trace_stop"() : () -> ()
    %156 = vector.extract_strided_slice %155 {offsets = [0, 0, 0], sizes = [2, 8, 16], strides = [1, 1, 1]} : vector<8x8x16xf32> to vector<2x8x16xf32>
    %157 = vector.extract_strided_slice %155 {offsets = [2, 0, 0], sizes = [2, 8, 16], strides = [1, 1, 1]} : vector<8x8x16xf32> to vector<2x8x16xf32>
    %158 = vector.extract_strided_slice %155 {offsets = [4, 0, 0], sizes = [2, 8, 16], strides = [1, 1, 1]} : vector<8x8x16xf32> to vector<2x8x16xf32>
    %159 = vector.extract_strided_slice %155 {offsets = [6, 0, 0], sizes = [2, 8, 16], strides = [1, 1, 1]} : vector<8x8x16xf32> to vector<2x8x16xf32>
    %160 = tpu.concatenate %156, %157, %158, %159 in 2 : vector<2x8x16xf32>, vector<2x8x16xf32>, vector<2x8x16xf32>, vector<2x8x16xf32> -> vector<2x8x64xf32>
    %161 = vector.shape_cast %160 : vector<2x8x64xf32> to vector<16x64xf32>
    %c0_41 = arith.constant 0 : index
    %c0_42 = arith.constant 0 : index
    %c0_43 = arith.constant 0 : index
    %162 = vector.load %arg6[%c0_41, %c0_42, %c0_43] : memref<1x64x192xbf16, #tpu.memory_space<vmem>>, vector<1x64x192xbf16>
    %163 = vector.shape_cast %162 : vector<1x64x192xbf16> to vector<64x192xbf16>
    %c0_44 = arith.constant 0 : index
    %c0_45 = arith.constant 0 : index
    %c0_46 = arith.constant 0 : index
    %164 = vector.load %arg7[%c0_44, %c0_45, %c0_46] : memref<1x1x192xf32, #tpu.memory_space<vmem>>, vector<1x1x192xf32>
    %165 = vector.shape_cast %164 : vector<1x1x192xf32> to vector<1x192xf32>
    %166 = arith.truncf %161 : vector<16x64xf32> to vector<16x64xbf16>
    %cst_47 = arith.constant dense<0.000000e+00> : vector<16x192xf32>
    %167 = tpu.matmul %166, %163, %cst_47 {dimension_numbers = #tpu.dot_dimension_numbers<[1], [0], [0], [1], [0, 0, 1, 1], [], []>} : vector<16x64xbf16>, vector<64x192xbf16>, vector<16x192xf32> -> vector<16x192xf32>
    %168 = vector.broadcast %165 : vector<1x192xf32> to vector<16x192xf32>
    %169 = arith.addf %167, %168 : vector<16x192xf32>
    %170 = vector.extract_strided_slice %169 {offsets = [0, 0], sizes = [16, 48], strides = [1, 1]} : vector<16x192xf32> to vector<16x48xf32>
    %171 = vector.shape_cast %170 : vector<16x48xf32> to vector<2x8x48xf32>
    %172 = vector.extract_strided_slice %169 {offsets = [0, 48], sizes = [16, 48], strides = [1, 1]} : vector<16x192xf32> to vector<16x48xf32>
    %173 = vector.shape_cast %172 : vector<16x48xf32> to vector<2x8x48xf32>
    %174 = vector.extract_strided_slice %169 {offsets = [0, 96], sizes = [16, 48], strides = [1, 1]} : vector<16x192xf32> to vector<16x48xf32>
    %175 = vector.shape_cast %174 : vector<16x48xf32> to vector<2x8x48xf32>
    %176 = vector.extract_strided_slice %169 {offsets = [0, 144], sizes = [16, 48], strides = [1, 1]} : vector<16x192xf32> to vector<16x48xf32>
    %177 = vector.shape_cast %176 : vector<16x48xf32> to vector<2x8x48xf32>
    %178 = tpu.concatenate %171, %173, %175, %177 in 0 : vector<2x8x48xf32>, vector<2x8x48xf32>, vector<2x8x48xf32>, vector<2x8x48xf32> -> vector<8x8x48xf32>
    %179 = vector.extract_strided_slice %178 {offsets = [0, 0, 0], sizes = [8, 8, 16], strides = [1, 1, 1]} : vector<8x8x48xf32> to vector<8x8x16xf32>
    %180 = vector.extract_strided_slice %178 {offsets = [0, 0, 16], sizes = [8, 8, 16], strides = [1, 1, 1]} : vector<8x8x48xf32> to vector<8x8x16xf32>
    %181 = vector.extract_strided_slice %178 {offsets = [0, 0, 32], sizes = [8, 8, 16], strides = [1, 1, 1]} : vector<8x8x48xf32> to vector<8x8x16xf32>
    %182 = arith.truncf %179 : vector<8x8x16xf32> to vector<8x8x16xbf16>
    %183 = arith.truncf %180 : vector<8x8x16xf32> to vector<8x8x16xbf16>
    "tpu.trace_start"() <{level = 10 : i32, message = "gld,gmd->glm"}> : () -> ()
    %cst_48 = arith.constant dense<0.000000e+00> : vector<8x8x8xf32>
    %184 = tpu.matmul %182, %183, %cst_48 {dimension_numbers = #tpu.dot_dimension_numbers<[2], [2], [1], [1], [0, 0, 0, 1, 1, 1], [0], [0]>} : vector<8x8x16xbf16>, vector<8x8x16xbf16>, vector<8x8x8xf32> -> vector<8x8x8xf32>
    "tpu.trace_stop"() : () -> ()
    %185 = math.tanh %184 : vector<8x8x8xf32>
    %cst_49 = arith.constant 0.176776692 : f32
    %186 = vector.broadcast %cst_49 : f32 to vector<8x8x8xf32>
    %187 = arith.mulf %185, %186 : vector<8x8x8xf32>
    %cst_50 = arith.constant dense<0xFF800000> : vector<8x8xf32>
    %188 = vector.multi_reduction <maximumf>, %187, %cst_50 [2] : vector<8x8x8xf32> to vector<8x8xf32>
    %189 = vector.shape_cast %188 : vector<8x8xf32> to vector<8x8x1xf32>
    %190 = vector.broadcast %189 : vector<8x8x1xf32> to vector<8x8x8xf32>
    %191 = arith.subf %187, %190 : vector<8x8x8xf32>
    %192 = math.exp %191 : vector<8x8x8xf32>
    %cst_51 = arith.constant dense<0.000000e+00> : vector<8x8xf32>
    %193 = vector.multi_reduction <add>, %192, %cst_51 [2] : vector<8x8x8xf32> to vector<8x8xf32>
    %194 = vector.shape_cast %193 : vector<8x8xf32> to vector<8x8x1xf32>
    %195 = tpu.reciprocal %194 {approx = true} : vector<8x8x1xf32> -> vector<8x8x1xf32>
    %196 = vector.broadcast %195 : vector<8x8x1xf32> to vector<8x8x8xf32>
    %197 = arith.mulf %192, %196 : vector<8x8x8xf32>
    %cst_52 = arith.constant 0.000000e+00 : f32
    %198 = vector.broadcast %cst_52 : f32 to vector<8x8x8xf32>
    %cst_53 = arith.constant dense<0xFF800000> : vector<8x8xf32>
    %199 = vector.multi_reduction <maximumf>, %197, %cst_53 [2] : vector<8x8x8xf32> to vector<8x8xf32>
    %200 = vector.shape_cast %199 : vector<8x8xf32> to vector<8x8x1xf32>
    %201 = vector.broadcast %200 : vector<8x8x1xf32> to vector<8x8x8xf32>
    %202 = arith.cmpf oeq, %197, %201 : vector<8x8x8xf32>
    %c8_i32_54 = arith.constant 8 : i32
    %203 = vector.broadcast %c8_i32_54 : i32 to vector<8x8x8xi32>
    %204 = arith.select %202, %27, %203 : vector<8x8x8xi1>, vector<8x8x8xi32>
    %cst_55 = arith.constant dense<2147483647> : vector<8x8xi32>
    %205 = vector.multi_reduction <minsi>, %204, %cst_55 [2] : vector<8x8x8xi32> to vector<8x8xi32>
    %206 = vector.shape_cast %205 : vector<8x8xi32> to vector<8x8x1xi32>
    %207 = vector.broadcast %206 : vector<8x8x1xi32> to vector<8x8x8xi32>
    %208 = arith.cmpi eq, %27, %207 : vector<8x8x8xi32>
    %209 = arith.extui %208 : vector<8x8x8xi1> to vector<8x8x8xi32>
    %210 = arith.sitofp %209 : vector<8x8x8xi32> to vector<8x8x8xf32>
    %211 = arith.mulf %197, %210 : vector<8x8x8xf32>
    %212 = arith.addf %198, %211 : vector<8x8x8xf32>
    %213 = arith.subf %197, %211 : vector<8x8x8xf32>
    %cst_56 = arith.constant dense<0xFF800000> : vector<8x8xf32>
    %214 = vector.multi_reduction <maximumf>, %213, %cst_56 [2] : vector<8x8x8xf32> to vector<8x8xf32>
    %215 = vector.shape_cast %214 : vector<8x8xf32> to vector<8x8x1xf32>
    %216 = vector.broadcast %215 : vector<8x8x1xf32> to vector<8x8x8xf32>
    %217 = arith.cmpf oeq, %213, %216 : vector<8x8x8xf32>
    %c8_i32_57 = arith.constant 8 : i32
    %218 = vector.broadcast %c8_i32_57 : i32 to vector<8x8x8xi32>
    %219 = arith.select %217, %27, %218 : vector<8x8x8xi1>, vector<8x8x8xi32>
    %cst_58 = arith.constant dense<2147483647> : vector<8x8xi32>
    %220 = vector.multi_reduction <minsi>, %219, %cst_58 [2] : vector<8x8x8xi32> to vector<8x8xi32>
    %221 = vector.shape_cast %220 : vector<8x8xi32> to vector<8x8x1xi32>
    %222 = vector.broadcast %221 : vector<8x8x1xi32> to vector<8x8x8xi32>
    %223 = arith.cmpi eq, %27, %222 : vector<8x8x8xi32>
    %224 = arith.extui %223 : vector<8x8x8xi1> to vector<8x8x8xi32>
    %225 = arith.sitofp %224 : vector<8x8x8xi32> to vector<8x8x8xf32>
    %226 = arith.mulf %197, %225 : vector<8x8x8xf32>
    %227 = arith.addf %212, %226 : vector<8x8x8xf32>
    %cst_59 = arith.constant dense<0x7F800000> : vector<8x8xf32>
    %228 = vector.multi_reduction <minimumf>, %197, %cst_59 [2] : vector<8x8x8xf32> to vector<8x8xf32>
    %229 = vector.shape_cast %228 : vector<8x8xf32> to vector<8x8x1xf32>
    %230 = vector.broadcast %229 : vector<8x8x1xf32> to vector<8x8x8xf32>
    %231 = arith.cmpf oeq, %197, %230 : vector<8x8x8xf32>
    %c8_i32_60 = arith.constant 8 : i32
    %232 = vector.broadcast %c8_i32_60 : i32 to vector<8x8x8xi32>
    %233 = arith.select %231, %27, %232 : vector<8x8x8xi1>, vector<8x8x8xi32>
    %cst_61 = arith.constant dense<2147483647> : vector<8x8xi32>
    %234 = vector.multi_reduction <minsi>, %233, %cst_61 [2] : vector<8x8x8xi32> to vector<8x8xi32>
    %235 = vector.shape_cast %234 : vector<8x8xi32> to vector<8x8x1xi32>
    %236 = vector.broadcast %235 : vector<8x8x1xi32> to vector<8x8x8xi32>
    %237 = arith.cmpi eq, %27, %236 : vector<8x8x8xi32>
    %238 = arith.extui %237 : vector<8x8x8xi1> to vector<8x8x8xi32>
    %239 = arith.sitofp %238 : vector<8x8x8xi32> to vector<8x8x8xf32>
    %cst_62 = arith.constant 2.000000e+00 : f32
    %240 = vector.broadcast %cst_62 : f32 to vector<8x8x8xf32>
    %241 = arith.mulf %240, %239 : vector<8x8x8xf32>
    %242 = vector.broadcast %26 : vector<8x8x1xf32> to vector<8x8x8xf32>
    %243 = arith.mulf %242, %241 : vector<8x8x8xf32>
    %244 = arith.mulf %197, %243 : vector<8x8x8xf32>
    %245 = vector.extract_strided_slice %244 {offsets = [0, 0, 0], sizes = [4, 8, 8], strides = [1, 1, 1]} : vector<8x8x8xf32> to vector<4x8x8xf32>
    %246 = vector.shape_cast %245 : vector<4x8x8xf32> to vector<1x4x8x8xf32>
    %cst_63 = arith.constant dense<0.000000e+00> : vector<1xf32>
    %247 = vector.multi_reduction <add>, %246, %cst_63 [1, 2, 3] : vector<1x4x8x8xf32> to vector<1xf32>
    %248 = vector.shape_cast %247 : vector<1xf32> to vector<1x1x1x1xf32>
    %249 = vector.extract %248[0, 0, 0, 0] : f32 from vector<1x1x1x1xf32>
    %250 = vector.extract_strided_slice %243 {offsets = [0, 0, 0], sizes = [4, 8, 8], strides = [1, 1, 1]} : vector<8x8x8xf32> to vector<4x8x8xf32>
    %251 = vector.shape_cast %250 : vector<4x8x8xf32> to vector<1x4x8x8xf32>
    %cst_64 = arith.constant dense<0.000000e+00> : vector<1xf32>
    %252 = vector.multi_reduction <add>, %251, %cst_64 [1, 2, 3] : vector<1x4x8x8xf32> to vector<1xf32>
    %253 = vector.shape_cast %252 : vector<1xf32> to vector<1x1x1x1xf32>
    %254 = vector.extract %253[0, 0, 0, 0] : f32 from vector<1x1x1x1xf32>
    %255 = arith.divf %249, %254 : f32
    %256 = arith.addf %125, %255 : f32
    %257 = vector.extract_strided_slice %244 {offsets = [4, 0, 0], sizes = [4, 8, 8], strides = [1, 1, 1]} : vector<8x8x8xf32> to vector<4x8x8xf32>
    %258 = vector.shape_cast %257 : vector<4x8x8xf32> to vector<1x4x8x8xf32>
    %cst_65 = arith.constant dense<0.000000e+00> : vector<1xf32>
    %259 = vector.multi_reduction <add>, %258, %cst_65 [1, 2, 3] : vector<1x4x8x8xf32> to vector<1xf32>
    %260 = vector.shape_cast %259 : vector<1xf32> to vector<1x1x1x1xf32>
    %261 = vector.extract %260[0, 0, 0, 0] : f32 from vector<1x1x1x1xf32>
    %262 = vector.extract_strided_slice %243 {offsets = [4, 0, 0], sizes = [4, 8, 8], strides = [1, 1, 1]} : vector<8x8x8xf32> to vector<4x8x8xf32>
    %263 = vector.shape_cast %262 : vector<4x8x8xf32> to vector<1x4x8x8xf32>
    %cst_66 = arith.constant dense<0.000000e+00> : vector<1xf32>
    %264 = vector.multi_reduction <add>, %263, %cst_66 [1, 2, 3] : vector<1x4x8x8xf32> to vector<1xf32>
    %265 = vector.shape_cast %264 : vector<1xf32> to vector<1x1x1x1xf32>
    %266 = vector.extract %265[0, 0, 0, 0] : f32 from vector<1x1x1x1xf32>
    %267 = arith.divf %261, %266 : f32
    %268 = arith.addf %137, %267 : f32
    %cst_67 = arith.constant dense<0xFF800000> : vector<8x8xf32>
    %269 = vector.multi_reduction <maximumf>, %227, %cst_67 [2] : vector<8x8x8xf32> to vector<8x8xf32>
    %270 = vector.shape_cast %269 : vector<8x8xf32> to vector<8x8x1xf32>
    %271 = vector.broadcast %270 : vector<8x8x1xf32> to vector<8x8x8xf32>
    %272 = arith.subf %227, %271 : vector<8x8x8xf32>
    %273 = math.exp %272 : vector<8x8x8xf32>
    %cst_68 = arith.constant dense<0.000000e+00> : vector<8x8xf32>
    %274 = vector.multi_reduction <add>, %273, %cst_68 [2] : vector<8x8x8xf32> to vector<8x8xf32>
    %275 = vector.shape_cast %274 : vector<8x8xf32> to vector<8x8x1xf32>
    %276 = tpu.reciprocal %275 {approx = true} : vector<8x8x1xf32> -> vector<8x8x1xf32>
    %277 = vector.broadcast %276 : vector<8x8x1xf32> to vector<8x8x8xf32>
    %278 = arith.mulf %273, %277 : vector<8x8x8xf32>
    %cst_69 = arith.constant 1.000000e+00 : f32
    %279 = vector.shape_cast %30 : vector<8x1x1xi1> to vector<8x1x1xi1>
    %280 = vector.broadcast %279 : vector<8x1x1xi1> to vector<8x8x8xi1>
    %281 = vector.broadcast %cst_69 : f32 to vector<8x8x8xf32>
    %282 = arith.select %280, %243, %281 : vector<8x8x8xi1>, vector<8x8x8xf32>
    %283 = arith.mulf %278, %282 : vector<8x8x8xf32>
    %284 = arith.truncf %283 : vector<8x8x8xf32> to vector<8x8x8xbf16>
    %285 = arith.truncf %181 : vector<8x8x16xf32> to vector<8x8x16xbf16>
    "tpu.trace_start"() <{level = 10 : i32, message = "glm,gmd->gld"}> : () -> ()
    %cst_70 = arith.constant dense<0.000000e+00> : vector<8x8x16xf32>
    %286 = tpu.matmul %284, %285, %cst_70 {dimension_numbers = #tpu.dot_dimension_numbers<[2], [1], [1], [2], [0, 0, 0, 1, 1, 2], [0], [0]>} : vector<8x8x8xbf16>, vector<8x8x16xbf16>, vector<8x8x16xf32> -> vector<8x8x16xf32>
    "tpu.trace_stop"() : () -> ()
    %287 = vector.extract_strided_slice %286 {offsets = [0, 0, 0], sizes = [2, 8, 16], strides = [1, 1, 1]} : vector<8x8x16xf32> to vector<2x8x16xf32>
    %288 = vector.extract_strided_slice %286 {offsets = [2, 0, 0], sizes = [2, 8, 16], strides = [1, 1, 1]} : vector<8x8x16xf32> to vector<2x8x16xf32>
    %289 = vector.extract_strided_slice %286 {offsets = [4, 0, 0], sizes = [2, 8, 16], strides = [1, 1, 1]} : vector<8x8x16xf32> to vector<2x8x16xf32>
    %290 = vector.extract_strided_slice %286 {offsets = [6, 0, 0], sizes = [2, 8, 16], strides = [1, 1, 1]} : vector<8x8x16xf32> to vector<2x8x16xf32>
    %291 = tpu.concatenate %287, %288, %289, %290 in 2 : vector<2x8x16xf32>, vector<2x8x16xf32>, vector<2x8x16xf32>, vector<2x8x16xf32> -> vector<2x8x64xf32>
    %cst_71 = arith.constant 0.000000e+00 : f32
    %292 = vector.broadcast %cst_71 : f32 to vector<2x8x64xf32>
    %293 = tpu.concatenate %291, %292 in 2 : vector<2x8x64xf32>, vector<2x8x64xf32> -> vector<2x8x128xf32>
    %c0_72 = arith.constant 0 : index
    %c0_73 = arith.constant 0 : index
    %c0_74 = arith.constant 0 : index
    %294 = vector.load %arg8[%c0_72, %c0_73, %c0_74] : memref<2x8x128xf32, #tpu.memory_space<vmem>>, vector<2x8x128xf32>
    tpu.vector_store %arg8[%c0_72, %c0_73, %c0_74], %293 {strides = array<i32>} : memref<2x8x128xf32, #tpu.memory_space<vmem>>, vector<2x8x128xf32>,
    %cst_75 = arith.constant 2.000000e+00 : f32
    %295 = arith.divf %256, %cst_75 : f32
    %c0_76 = arith.constant 0 : index
    %296 = memref.load %arg9[%c0_76] : memref<2xf32, #tpu.memory_space<smem>>
    memref.store %295, %arg9[%c0_76] : memref<2xf32, #tpu.memory_space<smem>>
    %cst_77 = arith.constant 2.000000e+00 : f32
    %297 = arith.divf %268, %cst_77 : f32
    %c1 = arith.constant 1 : index
    %298 = memref.load %arg9[%c1] : memref<2xf32, #tpu.memory_space<smem>>
    memref.store %297, %arg9[%c1] : memref<2xf32, #tpu.memory_space<smem>>
    return
  }
  func.func @transform_0(%arg0: i32) -> (i32, i32, i32) {
    %c0_i32 = arith.constant 0 : i32
    %c0_i32_0 = arith.constant 0 : i32
    %c0_i32_1 = arith.constant 0 : i32
    %c0_i32_2 = arith.constant 0 : i32
    return %c0_i32, %c0_i32_0, %c0_i32_1 : i32, i32, i32
  }
  func.func @transform_1(%arg0: i32) -> (i32, i32, i32) {
    %c0_i32 = arith.constant 0 : i32
    %c0_i32_0 = arith.constant 0 : i32
    %c0_i32_1 = arith.constant 0 : i32
    %c0_i32_2 = arith.constant 0 : i32
    return %c0_i32, %c0_i32_0, %c0_i32_1 : i32, i32, i32
  }
  func.func @transform_2(%arg0: i32) -> (i32, i32, i32) {
    %c0_i32 = arith.constant 0 : i32
    %c0_i32_0 = arith.constant 0 : i32
    %c0_i32_1 = arith.constant 0 : i32
    %c0_i32_2 = arith.constant 0 : i32
    return %c0_i32, %c0_i32_0, %c0_i32_1 : i32, i32, i32
  }
  func.func @transform_3(%arg0: i32) -> (i32, i32) {
    %c0_i32 = arith.constant 0 : i32
    %c0_i32_0 = arith.constant 0 : i32
    %c0_i32_1 = arith.constant 0 : i32
    return %c0_i32, %c0_i32_0 : i32, i32
  }
  func.func @transform_4(%arg0: i32) -> (i32, i32) {
    %c0_i32 = arith.constant 0 : i32
    %c0_i32_0 = arith.constant 0 : i32
    %c0_i32_1 = arith.constant 0 : i32
    return %c0_i32, %c0_i32_0 : i32, i32
  }
  func.func @transform_5(%arg0: i32) -> (i32, i32, i32) {
    %c0_i32 = arith.constant 0 : i32
    %c0_i32_0 = arith.constant 0 : i32
    %c0_i32_1 = arith.constant 0 : i32
    %c0_i32_2 = arith.constant 0 : i32
    return %c0_i32, %c0_i32_0, %c0_i32_1 : i32, i32, i32
  }
  func.func @transform_6(%arg0: i32) -> (i32, i32, i32) {
    %c0_i32 = arith.constant 0 : i32
    %c0_i32_0 = arith.constant 0 : i32
    %c0_i32_1 = arith.constant 0 : i32
    %c0_i32_2 = arith.constant 0 : i32
    return %c0_i32, %c0_i32_0, %c0_i32_1 : i32, i32, i32
  }
  func.func @transform_7(%arg0: i32) -> (i32, i32, i32) {
    %c0_i32 = arith.constant 0 : i32
    %c0_i32_0 = arith.constant 0 : i32
    %c0_i32_1 = arith.constant 0 : i32
    %c0_i32_2 = arith.constant 0 : i32
    return %c0_i32, %c0_i32_0, %c0_i32_1 : i32, i32, i32
  }
  func.func @transform_8(%arg0: i32) -> i32 {
    %c0_i32 = arith.constant 0 : i32
    %c0_i32_0 = arith.constant 0 : i32
    return %c0_i32 : i32
  }
}

</mosaic_0001>

<llo_original>
// kernel: tpu_custom_call.1
$region0: #{tpu_custom_call.1}
  #allocation0 [shape = 'u32[]', space=smem, size = 0x4, offset = 0x4, fixed_abs, tag = 'smem constant byte address 0x4 - core index']
  #allocation1 [shape = 'u32[144,128]{1,0:T(1,128)}', space=vmem, size = 0x12000, scoped, tag = 'internal scratch']
  %s0 = inlined_call_operand.hbm [shape: f32[2,8,32], index: 0, kind: input, shape index: {}]
  %s1 = inlined_call_operand.vmem [shape: f32[1,1,32], index: 1, kind: input, shape index: {}]
  %s2 = inlined_call_operand.hbm [shape: f32[1,1,32], index: 2, kind: input, shape index: {}]
  %s3 = inlined_call_operand.vmem [shape: f32[8,8], index: 3, kind: input, shape index: {}]
  %s4 = inlined_call_operand.hbm [shape: bf16[32,192], index: 4, kind: input, shape index: {}]
  %s5 = inlined_call_operand.hbm [shape: bf16[1,64,192], index: 5, kind: input, shape index: {}]
  %s6 = inlined_call_operand.vmem [shape: f32[1,1,192], index: 6, kind: input, shape index: {}]
  %s7 = inlined_call_operand.hbm [shape: f32[2,8,128], index: 7, kind: output, shape index: {0}]
  %s8 = inlined_call_operand.hbm [shape: f32[2], index: 8, kind: output, shape index: {1}]
  %9 = xla_tuple %s7, %s8
  %s10 = sld [smem:[#allocation0]]
  $region62: #{tpu_custom_call.1} parent=0
    _
  %s12 = ssub.s32 1, %s10
  %s13 = scalar_select 0, %s12, %s10
  $region1: #{tpu_custom_call.1} parent=0
    #allocation2 [shape = 'u8[8192]{0}', space=vmem, size = 0x2000, scoped, tag = 'input window, operand 0, single buffered']
    #allocation3 [shape = 's32[1]{0}', space=sflag, size = 0x4, scoped, tag = 'scoped memory for tpu_custom_call.1']
    #allocation4 [shape = 's32[1]{0}', space=sflag, size = 0x4, scoped, tag = 'scoped memory for tpu_custom_call.1']
    #allocation5 [shape = 's32[1]{0}', space=sflag, size = 0x4, scoped, tag = 'scoped memory for tpu_custom_call.1']
    #allocation6 [shape = 'u8[512]{0}', space=vmem, size = 0x400, scoped, tag = 'input window, operand 2, single buffered']
    #allocation7 [shape = 's32[1]{0}', space=sflag, size = 0x4, scoped, tag = 'scoped memory for tpu_custom_call.1']
    #allocation8 [shape = 'u8[16384]{0}', space=vmem, size = 0x4000, scoped, tag = 'input window, operand 4, single buffered']
    #allocation9 [shape = 'u8[32768]{0}', space=vmem, size = 0x8000, scoped, tag = 'input window, operand 5, single buffered']
    #allocation10 [shape = 's32[1]{0}', space=sflag, size = 0x4, scoped, tag = 'scoped memory for tpu_custom_call.1']
    #allocation11 [shape = 'u8[8192]{0}', space=vmem, size = 0x2000, scoped, tag = 'output window, operand 0, single buffered']
    #allocation12 [shape = 'u8[512]{0}', space=smem, size = 0x200, scoped, tag = 'output window, operand 1, single buffered']
    %14 = vsyncpa [#allocation3], 0
    %15 = vsyncpa [#allocation7], 0
    %16 = vsyncpa [#allocation10], 0
    %17 = vsyncpa [#allocation4], 0
    %18 = vsyncpa [#allocation5], 0
    // Predicated region
    $region2: #{tpu_custom_call.1} parent=1 // pred_check
      _
    $region3: #{tpu_custom_call.1} parent=1 // pred_check_branch
      %20 = sbr.rel (0) target = $region5
    $region4: #{tpu_custom_call.1} parent=1 // pred_region
      %s22 = ssub.s32 256, 256
      %23 = vsyncadd [#allocation3], %s22
      %s24 = sshll.u32 [#allocation2], 4
      %s25 = int_to_ptr.vmem [resolvable:$true] %s24
      %30 = dma.hbm_to_vmem [thread:$0]  %s0, 256, %s25, [#allocation3], 128, 128, 8
    $region5: #{tpu_custom_call.1} parent=1 // pred_fallthru
      _
    // Predicated region
    $region6: #{tpu_custom_call.1} parent=1 // pred_check
      _
    $region7: #{tpu_custom_call.1} parent=1 // pred_check_branch
      %32 = sbr.rel (0) target = $region9
    $region8: #{tpu_custom_call.1} parent=1 // pred_region
      _
    $region9: #{tpu_custom_call.1} parent=1 // pred_fallthru
      _
    // Predicated region
    $region10: #{tpu_custom_call.1} parent=1 // pred_check
      _
    $region11: #{tpu_custom_call.1} parent=1 // pred_check_branch
      %34 = sbr.rel (0) target = $region13
    $region12: #{tpu_custom_call.1} parent=1 // pred_region
      %s36 = ssub.s32 16, 16
      %37 = vsyncadd [#allocation7], %s36
      %s39 = sshll.u32 [#allocation6], 4
      %s40 = int_to_ptr.vmem [resolvable:$true] %s39
      %42 = dma.hbm_to_vmem [thread:$0]  %s2, 16, %s40, [#allocation7]
    $region13: #{tpu_custom_call.1} parent=1 // pred_fallthru
      _
    // Predicated region
    $region14: #{tpu_custom_call.1} parent=1 // pred_check
      _
    $region15: #{tpu_custom_call.1} parent=1 // pred_check_branch
      %44 = sbr.rel (0) target = $region17
    $region16: #{tpu_custom_call.1} parent=1 // pred_region
      _
    $region17: #{tpu_custom_call.1} parent=1 // pred_fallthru
      _
    // Predicated region
    $region18: #{tpu_custom_call.1} parent=1 // pred_check
      _
    $region19: #{tpu_custom_call.1} parent=1 // pred_check_branch
      %46 = sbr.rel (0) target = $region21
    $region20: #{tpu_custom_call.1} parent=1 // pred_region
      %s48 = ssub.s32 512, 512
      %49 = vsyncadd [#allocation7], %s48
      %s50 = sshll.u32 [#allocation8], 4
      %s51 = int_to_ptr.vmem [resolvable:$true] %s50
      %56 = dma.hbm_to_vmem [thread:$0]  %s4, 512, %s51, [#allocation7], 128, 128, 8
    $region21: #{tpu_custom_call.1} parent=1 // pred_fallthru
      _
    // Predicated region
    $region22: #{tpu_custom_call.1} parent=1 // pred_check
      _
    $region23: #{tpu_custom_call.1} parent=1 // pred_check_branch
      %58 = sbr.rel (0) target = $region25
    $region24: #{tpu_custom_call.1} parent=1 // pred_region
      %s60 = ssub.s32 1024, 1024
      %61 = vsyncadd [#allocation10], %s60
      %s62 = sshll.u32 [#allocation9], 4
      %s63 = int_to_ptr.vmem [resolvable:$true] %s62
      %68 = dma.hbm_to_vmem [thread:$0]  %s5, 1024, %s63, [#allocation10], 128, 128, 8
    $region25: #{tpu_custom_call.1} parent=1 // pred_fallthru
      _
    // Predicated region
    $region26: #{tpu_custom_call.1} parent=1 // pred_check
      _
    $region27: #{tpu_custom_call.1} parent=1 // pred_check_branch
      %70 = sbr.rel (0) target = $region29
    $region28: #{tpu_custom_call.1} parent=1 // pred_region
      _
    $region29: #{tpu_custom_call.1} parent=1 // pred_fallthru
      _
    // Predicated region
    $region30: #{tpu_custom_call.1} parent=1 // pred_check
      _
    $region31: #{tpu_custom_call.1} parent=1 // pred_check_branch
      %72 = sbr.rel (0) target = $region33
    $region32: #{tpu_custom_call.1} parent=1 // pred_region
      %73 = dma.done [#allocation3], 256
    $region33: #{tpu_custom_call.1} parent=1 // pred_fallthru
      _
    // Predicated region
    $region34: #{tpu_custom_call.1} parent=1 // pred_check
      _
    $region35: #{tpu_custom_call.1} parent=1 // pred_check_branch
      %75 = sbr.rel (0) target = $region37
    $region36: #{tpu_custom_call.1} parent=1 // pred_region
      %76 = dma.done [#allocation7], 16
    $region37: #{tpu_custom_call.1} parent=1 // pred_fallthru
      _
    // Predicated region
    $region38: #{tpu_custom_call.1} parent=1 // pred_check
      _
    $region39: #{tpu_custom_call.1} parent=1 // pred_check_branch
      %78 = sbr.rel (0) target = $region41
    $region40: #{tpu_custom_call.1} parent=1 // pred_region
      %79 = dma.done [#allocation7], 512
    $region41: #{tpu_custom_call.1} parent=1 // pred_fallthru
      _
    // Predicated region
    $region42: #{tpu_custom_call.1} parent=1 // pred_check
      _
    $region43: #{tpu_custom_call.1} parent=1 // pred_check_branch
      %81 = sbr.rel (0) target = $region45
    $region44: #{tpu_custom_call.1} parent=1 // pred_region
      %82 = dma.done [#allocation10], 1024
    $region45: #{tpu_custom_call.1} parent=1 // pred_fallthru
      _
    %v84 = vld [vmem:[#allocation2] sm:$0xff]
    %v85 = vld [vmem:[#allocation2 + $0x8] sm:$0xff]
    %vm86 = vcmask 261120
    %v87 = vsel %vm86, %v84, 0.0
    %88 = vadd.xlane.f32.xlu0 %v87
    %v89 = vpop.xlane.xlu0 %88
    %v90 = vsel %vm86, %v85, 0.0
    %91 = vadd.xlane.f32.xlu0 %v90
    %v92 = vpop.xlane.xlu0 %91
    %v93 = vrcp.pop 32.0
    %v94 = vmul.f32 %v89, %v93
    %v95 = vmul.f32 %v92, %v93
    %v96 = vsub.f32 %v84, %v94
    %v97 = vsub.f32 %v85, %v95
    %v98 = vmul.f32 %v96, %v96
    %v99 = vmul.f32 %v97, %v97
    %v100 = vsel %vm86, %v98, 0.0
    %101 = vadd.xlane.f32.xlu0 %v100
    %v102 = vpop.xlane.xlu0 %101
    %v103 = vsel %vm86, %v99, 0.0
    %104 = vadd.xlane.f32.xlu0 %v103
    %v105 = vpop.xlane.xlu0 %104
    %v106 = vrcp.pop 31.0
    %v107 = vmul.f32 %v102, %v106
    %v108 = vmul.f32 %v105, %v106
    %v109 = vld [vmem:[%s1] sm:$0x1]
    %v111 = vlaneseq
    %v112 = vshrl.u32 %v111, 7
    %v113 = vsub.s32 0, %v112
    %v114 = vrot.slane %v109, %v113
    %v116 = vmul.f32 %v114, %v96
    %v117 = vmul.f32 %v114, %v97
    %v118 = vrsqrt.pop %v107
    %v119 = vmul.f32 %v107, %v118
    %vm120 = vcmp.eq.f32.partialorder %v107, inf
    %v121 = vsel %vm120, %v107, %v119
    %vm122 = vcmp.eq.f32.partialorder %v107, 0.0
    %v123 = vand.u32 %v107, 2147483648
    %v124 = vsel %vm122, %v123, %v121
    %v125 = vrsqrt.pop %v108
    %v126 = vmul.f32 %v108, %v125
    %vm127 = vcmp.eq.f32.partialorder %v108, inf
    %v128 = vsel %vm127, %v108, %v126
    %vm129 = vcmp.eq.f32.partialorder %v108, 0.0
    %v130 = vand.u32 %v108, 2147483648
    %v131 = vsel %vm129, %v130, %v128
    %v132 = vadd.f32 %v124, 1e-06
    %v133 = vadd.f32 %v131, 1e-06
    %v134 = vrcp.pop %v132
    %v135 = vmul.f32 %v116, %v134
    %v136 = vrcp.pop %v133
    %v137 = vmul.f32 %v117, %v136
    %v138 = vld [vmem:[#allocation6] sm:$0x1]
    %v140 = vlaneseq
    %v141 = vshrl.u32 %v140, 7
    %v142 = vsub.s32 0, %v141
    %v143 = vrot.slane %v138, %v142
    %v145 = vadd.f32 %v135, %v143
    %v146 = vadd.f32 %v137, %v143
    %v147 = vld [vmem:[%s3] sm:$0xff]
    %v148 = vlaneseq
    %v149 = vshrl.u32 %v148, 7
    %v150 = vsub.s32 0, %v149
    %v151 = vrot.slane %v147, %v150
    %153 = vbcast.lane.b32.xlu0 %v151, 256
    %v154 = vpop.permute.xlu0 %153
    %v155 = vlaneseq
    %v156 = vshrl.u32 %v155, 7
    %v157 = vsub.s32 1, %v156
    %v158 = vrot.slane %v147, %v157
    %160 = vbcast.lane.b32.xlu0 %v158, 256
    %v161 = vpop.permute.xlu0 %160
    %v162 = vlaneseq
    %v163 = vshrl.u32 %v162, 7
    %v164 = vsub.s32 2, %v163
    %v165 = vrot.slane %v147, %v164
    %167 = vbcast.lane.b32.xlu0 %v165, 256
    %v168 = vpop.permute.xlu0 %167
    %v169 = vlaneseq
    %v170 = vshrl.u32 %v169, 7
    %v171 = vsub.s32 3, %v170
    %v172 = vrot.slane %v147, %v171
    %174 = vbcast.lane.b32.xlu0 %v172, 256
    %v175 = vpop.permute.xlu0 %174
    %v176 = vlaneseq
    %v177 = vshrl.u32 %v176, 7
    %v178 = vsub.s32 4, %v177
    %v179 = vrot.slane %v147, %v178
    %181 = vbcast.lane.b32.xlu0 %v179, 256
    %v182 = vpop.permute.xlu0 %181
    %v183 = vlaneseq
    %v184 = vshrl.u32 %v183, 7
    %v185 = vsub.s32 5, %v184
    %v186 = vrot.slane %v147, %v185
    %188 = vbcast.lane.b32.xlu0 %v186, 256
    %v189 = vpop.permute.xlu0 %188
    %v190 = vlaneseq
    %v191 = vshrl.u32 %v190, 7
    %v192 = vsub.s32 6, %v191
    %v193 = vrot.slane %v147, %v192
    %195 = vbcast.lane.b32.xlu0 %v193, 256
    %v196 = vpop.permute.xlu0 %195
    %v197 = vlaneseq
    %v198 = vshrl.u32 %v197, 7
    %v199 = vsub.s32 7, %v198
    %v200 = vrot.slane %v147, %v199
    %202 = vbcast.lane.b32.xlu0 %v200, 256
    %v203 = vpop.permute.xlu0 %202
    %v204 = vlaneseq
    %v205 = vand.u32 %v204, 127
    %v206 = vld [vmem:[#allocation8] sm:$0xff]
    %v207 = vld [vmem:[#allocation8 + $0x8] sm:$0xff]
    %v208 = vld [vmem:[#allocation8 + $0x10] sm:$0xff]
    %v209 = vld [vmem:[#allocation8 + $0x18] sm:$0xff]
    %v210 = vpack.c.bf16 %v146, %v145
    %v215 = vunpack.c.l.b16 %v206
    %v216 = vunpack.c.h.b16 %v206
    %v217 = vunpack.c.l.b16 %v207
    %v218 = vunpack.c.h.b16 %v207
    %v219 = vunpack.c.l.b16 %v208
    %v220 = vunpack.c.h.b16 %v208
    %v221 = vunpack.c.l.b16 %v209
    %v222 = vunpack.c.h.b16 %v209
    %v223 = vpack.c.b16 %v217, %v215
    %v224 = vpack.c.b16 %v218, %v216
    %v225 = vpack.c.b16 %v221, %v219
    %v226 = vpack.c.b16 %v222, %v220
    %v232 = vsel %vm86, %v210, 0
    %234 = vmatprep.subr.bf16.mxu0 %v224
    %235 = vmatpush1.bf16.msra.mxu0 %v223
    %236 = vmatprep.subr.bf16.mxu0 %v226
    %237 = vmatpush1.bf16.msra.mxu0 %v225
    %238 = vmatprep.subr.bf16.mxu0 0
    %239 = vmatpush1.bf16.msra.mxu0 0
    %240 = vmatprep.subr.bf16.mxu0 0
    %241 = vmatpush1.bf16.msra.mxu0 0
    %242 = vmatprep.subr.bf16.mxu0 0
    %243 = vmatpush1.bf16.msra.mxu0 0
    %244 = vmatprep.subr.bf16.mxu0 0
    %245 = vmatpush1.bf16.msra.mxu0 0
    %246 = vmatprep.subr.bf16.mxu0 0
    %247 = vmatpush1.bf16.msra.mxu0 0
    %248 = vmatprep.subr.bf16.mxu0 0
    %249 = vmatpush1.bf16.msra.mxu0 0
    %250 = vmatprep.subr.bf16.mxu0 0
    %251 = vmatpush1.bf16.msra.mxu0 0
    %252 = vmatprep.subr.bf16.mxu0 0
    %253 = vmatpush1.bf16.msra.mxu0 0
    %254 = vmatprep.subr.bf16.mxu0 0
    %255 = vmatpush1.bf16.msra.mxu0 0
    %256 = vmatprep.subr.bf16.mxu0 0
    %257 = vmatpush1.bf16.msra.mxu0 0
    %258 = vmatprep.subr.bf16.mxu0 0
    %259 = vmatpush1.bf16.msra.mxu0 0
    %260 = vmatprep.subr.bf16.mxu0 0
    %261 = vmatpush1.bf16.msra.mxu0 0
    %262 = vmatprep.subr.bf16.mxu0 0
    %263 = vmatpush1.bf16.msra.mxu0 0
    %264 = vmatprep.subr.bf16.mxu0 0
    %265 = vmatpush1.bf16.msra.mxu0 0
    %266 = vmatprep.mubr.bf16.mxu0 0
    %267 = vmatmul.mubr.bf16.gmra.mrb[0].mxu0 %v232
    %v268 = vpop.f32.mrb[0].mxu0
    %v269 = vadd.f32 0.0, %v268
    %v270 = vpop.f32.mrb[0].mxu0
    %v271 = vadd.f32 0.0, %v270
    %v272 = vpop.f32.mrb[0].mxu0
    %v273 = vadd.f32 0.0, %v272
    %v274 = vpop.f32.mrb[0].mxu0
    %v275 = vadd.f32 0.0, %v274
    %276 = vdwg.mxu0
    %279 = vrot.lane.b32.xlu0 %v269, 80
    %v280 = vpop.permute.xlu0 %279
    %281 = vrot.lane.b32.xlu0 %v273, 80
    %v282 = vpop.permute.xlu0 %281
    %287 = vrot.lane.b32.xlu0 %v269, 32
    %v288 = vpop.permute.xlu0 %287
    %289 = vrot.lane.b32.xlu0 %v271, 32
    %v290 = vpop.permute.xlu0 %289
    %291 = vrot.lane.b32.xlu0 %v273, 32
    %v292 = vpop.permute.xlu0 %291
    %293 = vrot.lane.b32.xlu0 %v275, 32
    %v294 = vpop.permute.xlu0 %293
    %v295 = vsel %vm86, %v288, %v290
    %v296 = vsel %vm86, %v292, %v294
    %299 = vrot.lane.b32.xlu0 %v271, 112
    %v300 = vpop.permute.xlu0 %299
    %301 = vrot.lane.b32.xlu0 %v275, 112
    %v302 = vpop.permute.xlu0 %301
    %v305 = vmul.f32 %v269, %v154
    %v306 = vmul.f32 %v273, %v161
    %v307 = vmul.f32 %v280, %v168
    %v308 = vmul.f32 %v282, %v175
    %v309 = vmul.f32 %v295, %v182
    %v310 = vmul.f32 %v296, %v189
    %v311 = vmul.f32 %v300, %v196
    %v312 = vmul.f32 %v302, %v203
    %v313 = vpack.c.bf16 %v269, %v269
    %v314 = vpack.c.bf16 %v273, %v273
    %v315 = vpack.c.bf16 %v280, %v280
    %v316 = vpack.c.bf16 %v282, %v282
    %v317 = vpack.c.bf16 %v295, %v295
    %v318 = vpack.c.bf16 %v296, %v296
    %v319 = vpack.c.bf16 %v300, %v300
    %v320 = vpack.c.bf16 %v302, %v302
    %v321 = vpack.c.bf16 %v305, %v305
    %v322 = vpack.c.bf16 %v306, %v306
    %v323 = vpack.c.bf16 %v307, %v307
    %v324 = vpack.c.bf16 %v308, %v308
    %v325 = vpack.c.bf16 %v309, %v309
    %v326 = vpack.c.bf16 %v310, %v310
    %v327 = vpack.c.bf16 %v311, %v311
    %v328 = vpack.c.bf16 %v312, %v312
    %330 = vrot.lane.b32.xlu0 %v321, 112
    %v331 = vpop.permute.xlu0 %330
    %vm332 = vcmask 130048
    %v334 = vsel %vm332, %v313, 0
    %v337 = vsel %vm332, %v331, 0
    %339 = vmatprep.subr.bf16.mxu0 0
    %340 = vmatpush1.bf16.xpose.msra.mxu0 %v337
    %341 = vmatprep.subr.bf16.mxu0 0
    %342 = vmatpush1.bf16.xpose.msra.mxu0 0
    %343 = vmatprep.subr.bf16.mxu0 0
    %344 = vmatpush1.bf16.xpose.msra.mxu0 0
    %345 = vmatprep.subr.bf16.mxu0 0
    %346 = vmatpush1.bf16.xpose.msra.mxu0 0
    %347 = vmatprep.subr.bf16.mxu0 0
    %348 = vmatpush1.bf16.xpose.msra.mxu0 0
    %349 = vmatprep.subr.bf16.mxu0 0
    %350 = vmatpush1.bf16.xpose.msra.mxu0 0
    %351 = vmatprep.subr.bf16.mxu0 0
    %352 = vmatpush1.bf16.xpose.msra.mxu0 0
    %353 = vmatprep.subr.bf16.mxu0 0
    %354 = vmatpush1.bf16.xpose.msra.mxu0 0
    %355 = vmatprep.subr.bf16.mxu0 0
    %356 = vmatpush1.bf16.xpose.msra.mxu0 0
    %357 = vmatprep.subr.bf16.mxu0 0
    %358 = vmatpush1.bf16.xpose.msra.mxu0 0
    %359 = vmatprep.subr.bf16.mxu0 0
    %360 = vmatpush1.bf16.xpose.msra.mxu0 0
    %361 = vmatprep.subr.bf16.mxu0 0
    %362 = vmatpush1.bf16.xpose.msra.mxu0 0
    %363 = vmatprep.subr.bf16.mxu0 0
    %364 = vmatpush1.bf16.xpose.msra.mxu0 0
    %365 = vmatprep.subr.bf16.mxu0 0
    %366 = vmatpush1.bf16.xpose.msra.mxu0 0
    %367 = vmatprep.subr.bf16.mxu0 0
    %368 = vmatpush1.bf16.xpose.msra.mxu0 0
    %369 = vmatprep.subr.bf16.mxu0 0
    %370 = vmatpush1.bf16.xpose.msra.mxu0 0
    %371 = vmatprep.mubr.bf16.mxu0 0
    %372 = vmatmul.mubr.bf16.gmra.mrb[0].mxu0 %v334
    %v373 = vpop.f32.mrb[0].mxu0
    %v374 = vadd.f32 0.0, %v373
    %v375 = vpop.f32.mrb[0].mxu0
    %v376 = vpop.f32.mrb[0].mxu0
    %v377 = vpop.f32.mrb[0].mxu0
    %378 = vdwg.mxu0
    %380 = vrot.lane.b32.xlu0 %v322, 112
    %v381 = vpop.permute.xlu0 %380
    %v383 = vsel %vm332, %v314, 0
    %v386 = vsel %vm332, %v381, 0
    %388 = vmatprep.subr.bf16.mxu0 0
    %389 = vmatpush1.bf16.xpose.msra.mxu0 %v386
    %390 = vmatprep.subr.bf16.mxu0 0
    %391 = vmatpush1.bf16.xpose.msra.mxu0 0
    %392 = vmatprep.subr.bf16.mxu0 0
    %393 = vmatpush1.bf16.xpose.msra.mxu0 0
    %394 = vmatprep.subr.bf16.mxu0 0
    %395 = vmatpush1.bf16.xpose.msra.mxu0 0
    %396 = vmatprep.subr.bf16.mxu0 0
    %397 = vmatpush1.bf16.xpose.msra.mxu0 0
    %398 = vmatprep.subr.bf16.mxu0 0
    %399 = vmatpush1.bf16.xpose.msra.mxu0 0
    %400 = vmatprep.subr.bf16.mxu0 0
    %401 = vmatpush1.bf16.xpose.msra.mxu0 0
    %402 = vmatprep.subr.bf16.mxu0 0
    %403 = vmatpush1.bf16.xpose.msra.mxu0 0
    %404 = vmatprep.subr.bf16.mxu0 0
    %405 = vmatpush1.bf16.xpose.msra.mxu0 0
    %406 = vmatprep.subr.bf16.mxu0 0
    %407 = vmatpush1.bf16.xpose.msra.mxu0 0
    %408 = vmatprep.subr.bf16.mxu0 0
    %409 = vmatpush1.bf16.xpose.msra.mxu0 0
    %410 = vmatprep.subr.bf16.mxu0 0
    %411 = vmatpush1.bf16.xpose.msra.mxu0 0
    %412 = vmatprep.subr.bf16.mxu0 0
    %413 = vmatpush1.bf16.xpose.msra.mxu0 0
    %414 = vmatprep.subr.bf16.mxu0 0
    %415 = vmatpush1.bf16.xpose.msra.mxu0 0
    %416 = vmatprep.subr.bf16.mxu0 0
    %417 = vmatpush1.bf16.xpose.msra.mxu0 0
    %418 = vmatprep.subr.bf16.mxu0 0
    %419 = vmatpush1.bf16.xpose.msra.mxu0 0
    %420 = vmatprep.mubr.bf16.mxu0 0
    %421 = vmatmul.mubr.bf16.gmra.mrb[0].mxu0 %v383
    %v422 = vpop.f32.mrb[0].mxu0
    %v423 = vadd.f32 0.0, %v422
    %v424 = vpop.f32.mrb[0].mxu0
    %v425 = vpop.f32.mrb[0].mxu0
    %v426 = vpop.f32.mrb[0].mxu0
    %427 = vdwg.mxu0
    %429 = vrot.lane.b32.xlu0 %v323, 112
    %v430 = vpop.permute.xlu0 %429
    %v432 = vsel %vm332, %v315, 0
    %v435 = vsel %vm332, %v430, 0
    %437 = vmatprep.subr.bf16.mxu0 0
    %438 = vmatpush1.bf16.xpose.msra.mxu0 %v435
    %439 = vmatprep.subr.bf16.mxu0 0
    %440 = vmatpush1.bf16.xpose.msra.mxu0 0
    %441 = vmatprep.subr.bf16.mxu0 0
    %442 = vmatpush1.bf16.xpose.msra.mxu0 0
    %443 = vmatprep.subr.bf16.mxu0 0
    %444 = vmatpush1.bf16.xpose.msra.mxu0 0
    %445 = vmatprep.subr.bf16.mxu0 0
    %446 = vmatpush1.bf16.xpose.msra.mxu0 0
    %447 = vmatprep.subr.bf16.mxu0 0
    %448 = vmatpush1.bf16.xpose.msra.mxu0 0
    %449 = vmatprep.subr.bf16.mxu0 0
    %450 = vmatpush1.bf16.xpose.msra.mxu0 0
    %451 = vmatprep.subr.bf16.mxu0 0
    %452 = vmatpush1.bf16.xpose.msra.mxu0 0
    %453 = vmatprep.subr.bf16.mxu0 0
    %454 = vmatpush1.bf16.xpose.msra.mxu0 0
    %455 = vmatprep.subr.bf16.mxu0 0
    %456 = vmatpush1.bf16.xpose.msra.mxu0 0
    %457 = vmatprep.subr.bf16.mxu0 0
    %458 = vmatpush1.bf16.xpose.msra.mxu0 0
    %459 = vmatprep.subr.bf16.mxu0 0
    %460 = vmatpush1.bf16.xpose.msra.mxu0 0
    %461 = vmatprep.subr.bf16.mxu0 0
    %462 = vmatpush1.bf16.xpose.msra.mxu0 0
    %463 = vmatprep.subr.bf16.mxu0 0
    %464 = vmatpush1.bf16.xpose.msra.mxu0 0
    %465 = vmatprep.subr.bf16.mxu0 0
    %466 = vmatpush1.bf16.xpose.msra.mxu0 0
    %467 = vmatprep.subr.bf16.mxu0 0
    %468 = vmatpush1.bf16.xpose.msra.mxu0 0
    %469 = vmatprep.mubr.bf16.mxu0 0
    %470 = vmatmul.mubr.bf16.gmra.mrb[0].mxu0 %v432
    %v471 = vpop.f32.mrb[0].mxu0
    %v472 = vadd.f32 0.0, %v471
    %v473 = vpop.f32.mrb[0].mxu0
    %v474 = vpop.f32.mrb[0].mxu0
    %v475 = vpop.f32.mrb[0].mxu0
    %476 = vdwg.mxu0
    %478 = vrot.lane.b32.xlu0 %v324, 112
    %v479 = vpop.permute.xlu0 %478
    %v481 = vsel %vm332, %v316, 0
    %v484 = vsel %vm332, %v479, 0
    %486 = vmatprep.subr.bf16.mxu0 0
    %487 = vmatpush1.bf16.xpose.msra.mxu0 %v484
    %488 = vmatprep.subr.bf16.mxu0 0
    %489 = vmatpush1.bf16.xpose.msra.mxu0 0
    %490 = vmatprep.subr.bf16.mxu0 0
    %491 = vmatpush1.bf16.xpose.msra.mxu0 0
    %492 = vmatprep.subr.bf16.mxu0 0
    %493 = vmatpush1.bf16.xpose.msra.mxu0 0
    %494 = vmatprep.subr.bf16.mxu0 0
    %495 = vmatpush1.bf16.xpose.msra.mxu0 0
    %496 = vmatprep.subr.bf16.mxu0 0
    %497 = vmatpush1.bf16.xpose.msra.mxu0 0
    %498 = vmatprep.subr.bf16.mxu0 0
    %499 = vmatpush1.bf16.xpose.msra.mxu0 0
    %500 = vmatprep.subr.bf16.mxu0 0
    %501 = vmatpush1.bf16.xpose.msra.mxu0 0
    %502 = vmatprep.subr.bf16.mxu0 0
    %503 = vmatpush1.bf16.xpose.msra.mxu0 0
    %504 = vmatprep.subr.bf16.mxu0 0
    %505 = vmatpush1.bf16.xpose.msra.mxu0 0
    %506 = vmatprep.subr.bf16.mxu0 0
    %507 = vmatpush1.bf16.xpose.msra.mxu0 0
    %508 = vmatprep.subr.bf16.mxu0 0
    %509 = vmatpush1.bf16.xpose.msra.mxu0 0
    %510 = vmatprep.subr.bf16.mxu0 0
    %511 = vmatpush1.bf16.xpose.msra.mxu0 0
    %512 = vmatprep.subr.bf16.mxu0 0
    %513 = vmatpush1.bf16.xpose.msra.mxu0 0
    %514 = vmatprep.subr.bf16.mxu0 0
    %515 = vmatpush1.bf16.xpose.msra.mxu0 0
    %516 = vmatprep.subr.bf16.mxu0 0
    %517 = vmatpush1.bf16.xpose.msra.mxu0 0
    %518 = vmatprep.mubr.bf16.mxu0 0
    %519 = vmatmul.mubr.bf16.gmra.mrb[0].mxu0 %v481
    %v520 = vpop.f32.mrb[0].mxu0
    %v521 = vadd.f32 0.0, %v520
    %v522 = vpop.f32.mrb[0].mxu0
    %v523 = vpop.f32.mrb[0].mxu0
    %v524 = vpop.f32.mrb[0].mxu0
    %525 = vdwg.mxu0
    %527 = vrot.lane.b32.xlu0 %v325, 112
    %v528 = vpop.permute.xlu0 %527
    %v530 = vsel %vm332, %v317, 0
    %v533 = vsel %vm332, %v528, 0
    %535 = vmatprep.subr.bf16.mxu0 0
    %536 = vmatpush1.bf16.xpose.msra.mxu0 %v533
    %537 = vmatprep.subr.bf16.mxu0 0
    %538 = vmatpush1.bf16.xpose.msra.mxu0 0
    %539 = vmatprep.subr.bf16.mxu0 0
    %540 = vmatpush1.bf16.xpose.msra.mxu0 0
    %541 = vmatprep.subr.bf16.mxu0 0
    %542 = vmatpush1.bf16.xpose.msra.mxu0 0
    %543 = vmatprep.subr.bf16.mxu0 0
    %544 = vmatpush1.bf16.xpose.msra.mxu0 0
    %545 = vmatprep.subr.bf16.mxu0 0
    %546 = vmatpush1.bf16.xpose.msra.mxu0 0
    %547 = vmatprep.subr.bf16.mxu0 0
    %548 = vmatpush1.bf16.xpose.msra.mxu0 0
    %549 = vmatprep.subr.bf16.mxu0 0
    %550 = vmatpush1.bf16.xpose.msra.mxu0 0
    %551 = vmatprep.subr.bf16.mxu0 0
    %552 = vmatpush1.bf16.xpose.msra.mxu0 0
    %553 = vmatprep.subr.bf16.mxu0 0
    %554 = vmatpush1.bf16.xpose.msra.mxu0 0
    %555 = vmatprep.subr.bf16.mxu0 0
    %556 = vmatpush1.bf16.xpose.msra.mxu0 0
    %557 = vmatprep.subr.bf16.mxu0 0
    %558 = vmatpush1.bf16.xpose.msra.mxu0 0
    %559 = vmatprep.subr.bf16.mxu0 0
    %560 = vmatpush1.bf16.xpose.msra.mxu0 0
    %561 = vmatprep.subr.bf16.mxu0 0
    %562 = vmatpush1.bf16.xpose.msra.mxu0 0
    %563 = vmatprep.subr.bf16.mxu0 0
    %564 = vmatpush1.bf16.xpose.msra.mxu0 0
    %565 = vmatprep.subr.bf16.mxu0 0
    %566 = vmatpush1.bf16.xpose.msra.mxu0 0
    %567 = vmatprep.mubr.bf16.mxu0 0
    %568 = vmatmul.mubr.bf16.gmra.mrb[0].mxu0 %v530
    %v569 = vpop.f32.mrb[0].mxu0
    %v570 = vadd.f32 0.0, %v569
    %v571 = vpop.f32.mrb[0].mxu0
    %v572 = vpop.f32.mrb[0].mxu0
    %v573 = vpop.f32.mrb[0].mxu0
    %574 = vdwg.mxu0
    %576 = vrot.lane.b32.xlu0 %v326, 112
    %v577 = vpop.permute.xlu0 %576
    %v579 = vsel %vm332, %v318, 0
    %v582 = vsel %vm332, %v577, 0
    %584 = vmatprep.subr.bf16.mxu0 0
    %585 = vmatpush1.bf16.xpose.msra.mxu0 %v582
    %586 = vmatprep.subr.bf16.mxu0 0
    %587 = vmatpush1.bf16.xpose.msra.mxu0 0
    %588 = vmatprep.subr.bf16.mxu0 0
    %589 = vmatpush1.bf16.xpose.msra.mxu0 0
    %590 = vmatprep.subr.bf16.mxu0 0
    %591 = vmatpush1.bf16.xpose.msra.mxu0 0
    %592 = vmatprep.subr.bf16.mxu0 0
    %593 = vmatpush1.bf16.xpose.msra.mxu0 0
    %594 = vmatprep.subr.bf16.mxu0 0
    %595 = vmatpush1.bf16.xpose.msra.mxu0 0
    %596 = vmatprep.subr.bf16.mxu0 0
    %597 = vmatpush1.bf16.xpose.msra.mxu0 0
    %598 = vmatprep.subr.bf16.mxu0 0
    %599 = vmatpush1.bf16.xpose.msra.mxu0 0
    %600 = vmatprep.subr.bf16.mxu0 0
    %601 = vmatpush1.bf16.xpose.msra.mxu0 0
    %602 = vmatprep.subr.bf16.mxu0 0
    %603 = vmatpush1.bf16.xpose.msra.mxu0 0
    %604 = vmatprep.subr.bf16.mxu0 0
    %605 = vmatpush1.bf16.xpose.msra.mxu0 0
    %606 = vmatprep.subr.bf16.mxu0 0
    %607 = vmatpush1.bf16.xpose.msra.mxu0 0
    %608 = vmatprep.subr.bf16.mxu0 0
    %609 = vmatpush1.bf16.xpose.msra.mxu0 0
    %610 = vmatprep.subr.bf16.mxu0 0
    %611 = vmatpush1.bf16.xpose.msra.mxu0 0
    %612 = vmatprep.subr.bf16.mxu0 0
    %613 = vmatpush1.bf16.xpose.msra.mxu0 0
    %614 = vmatprep.subr.bf16.mxu0 0
    %615 = vmatpush1.bf16.xpose.msra.mxu0 0
    %616 = vmatprep.mubr.bf16.mxu0 0
    %617 = vmatmul.mubr.bf16.gmra.mrb[0].mxu0 %v579
    %v618 = vpop.f32.mrb[0].mxu0
    %v619 = vadd.f32 0.0, %v618
    %v620 = vpop.f32.mrb[0].mxu0
    %v621 = vpop.f32.mrb[0].mxu0
    %v622 = vpop.f32.mrb[0].mxu0
    %623 = vdwg.mxu0
    %625 = vrot.lane.b32.xlu0 %v327, 112
    %v626 = vpop.permute.xlu0 %625
    %v628 = vsel %vm332, %v319, 0
    %v631 = vsel %vm332, %v626, 0
    %633 = vmatprep.subr.bf16.mxu0 0
    %634 = vmatpush1.bf16.xpose.msra.mxu0 %v631
    %635 = vmatprep.subr.bf16.mxu0 0
    %636 = vmatpush1.bf16.xpose.msra.mxu0 0
    %637 = vmatprep.subr.bf16.mxu0 0
    %638 = vmatpush1.bf16.xpose.msra.mxu0 0
    %639 = vmatprep.subr.bf16.mxu0 0
    %640 = vmatpush1.bf16.xpose.msra.mxu0 0
    %641 = vmatprep.subr.bf16.mxu0 0
    %642 = vmatpush1.bf16.xpose.msra.mxu0 0
    %643 = vmatprep.subr.bf16.mxu0 0
    %644 = vmatpush1.bf16.xpose.msra.mxu0 0
    %645 = vmatprep.subr.bf16.mxu0 0
    %646 = vmatpush1.bf16.xpose.msra.mxu0 0
    %647 = vmatprep.subr.bf16.mxu0 0
    %648 = vmatpush1.bf16.xpose.msra.mxu0 0
    %649 = vmatprep.subr.bf16.mxu0 0
    %650 = vmatpush1.bf16.xpose.msra.mxu0 0
    %651 = vmatprep.subr.bf16.mxu0 0
    %652 = vmatpush1.bf16.xpose.msra.mxu0 0
    %653 = vmatprep.subr.bf16.mxu0 0
    %654 = vmatpush1.bf16.xpose.msra.mxu0 0
    %655 = vmatprep.subr.bf16.mxu0 0
    %656 = vmatpush1.bf16.xpose.msra.mxu0 0
    %657 = vmatprep.subr.bf16.mxu0 0
    %658 = vmatpush1.bf16.xpose.msra.mxu0 0
    %659 = vmatprep.subr.bf16.mxu0 0
    %660 = vmatpush1.bf16.xpose.msra.mxu0 0
    %661 = vmatprep.subr.bf16.mxu0 0
    %662 = vmatpush1.bf16.xpose.msra.mxu0 0
    %663 = vmatprep.subr.bf16.mxu0 0
    %664 = vmatpush1.bf16.xpose.msra.mxu0 0
    %665 = vmatprep.mubr.bf16.mxu0 0
    %666 = vmatmul.mubr.bf16.gmra.mrb[0].mxu0 %v628
    %v667 = vpop.f32.mrb[0].mxu0
    %v668 = vadd.f32 0.0, %v667
    %v669 = vpop.f32.mrb[0].mxu0
    %v670 = vpop.f32.mrb[0].mxu0
    %v671 = vpop.f32.mrb[0].mxu0
    %672 = vdwg.mxu0
    %674 = vrot.lane.b32.xlu0 %v328, 112
    %v675 = vpop.permute.xlu0 %674
    %v677 = vsel %vm332, %v320, 0
    %v680 = vsel %vm332, %v675, 0
    %682 = vmatprep.subr.bf16.mxu0 0
    %683 = vmatpush1.bf16.xpose.msra.mxu0 %v680
    %684 = vmatprep.subr.bf16.mxu0 0
    %685 = vmatpush1.bf16.xpose.msra.mxu0 0
    %686 = vmatprep.subr.bf16.mxu0 0
    %687 = vmatpush1.bf16.xpose.msra.mxu0 0
    %688 = vmatprep.subr.bf16.mxu0 0
    %689 = vmatpush1.bf16.xpose.msra.mxu0 0
    %690 = vmatprep.subr.bf16.mxu0 0
    %691 = vmatpush1.bf16.xpose.msra.mxu0 0
    %692 = vmatprep.subr.bf16.mxu0 0
    %693 = vmatpush1.bf16.xpose.msra.mxu0 0
    %694 = vmatprep.subr.bf16.mxu0 0
    %695 = vmatpush1.bf16.xpose.msra.mxu0 0
    %696 = vmatprep.subr.bf16.mxu0 0
    %697 = vmatpush1.bf16.xpose.msra.mxu0 0
    %698 = vmatprep.subr.bf16.mxu0 0
    %699 = vmatpush1.bf16.xpose.msra.mxu0 0
    %700 = vmatprep.subr.bf16.mxu0 0
    %701 = vmatpush1.bf16.xpose.msra.mxu0 0
    %702 = vmatprep.subr.bf16.mxu0 0
    %703 = vmatpush1.bf16.xpose.msra.mxu0 0
    %704 = vmatprep.subr.bf16.mxu0 0
    %705 = vmatpush1.bf16.xpose.msra.mxu0 0
    %706 = vmatprep.subr.bf16.mxu0 0
    %707 = vmatpush1.bf16.xpose.msra.mxu0 0
    %708 = vmatprep.subr.bf16.mxu0 0
    %709 = vmatpush1.bf16.xpose.msra.mxu0 0
    %710 = vmatprep.subr.bf16.mxu0 0
    %711 = vmatpush1.bf16.xpose.msra.mxu0 0
    %712 = vmatprep.subr.bf16.mxu0 0
    %713 = vmatpush1.bf16.xpose.msra.mxu0 0
    %714 = vmatprep.mubr.bf16.mxu0 0
    %715 = vmatmul.mubr.bf16.gmra.mrb[0].mxu0 %v677
    %v716 = vpop.f32.mrb[0].mxu0
    %v717 = vadd.f32 0.0, %v716
    %v718 = vpop.f32.mrb[0].mxu0
    %v719 = vpop.f32.mrb[0].mxu0
    %v720 = vpop.f32.mrb[0].mxu0
    %721 = vdwg.mxu0
    %v722 = vtanh.pop %v374
    %v723 = vtanh.pop %v423
    %v724 = vtanh.pop %v472
    %v725 = vtanh.pop %v521
    %v726 = vtanh.pop %v570
    %v727 = vtanh.pop %v619
    %v728 = vtanh.pop %v668
    %v729 = vtanh.pop %v717
    %v730 = vmul.f32 %v722, 0.17677669
    %v731 = vmul.f32 %v723, 0.17677669
    %v732 = vmul.f32 %v724, 0.17677669
    %v733 = vmul.f32 %v725, 0.17677669
    %v734 = vmul.f32 %v726, 0.17677669
    %v735 = vmul.f32 %v727, 0.17677669
    %v736 = vmul.f32 %v728, 0.17677669
    %v737 = vmul.f32 %v729, 0.17677669
    %vm738 = vcmask 64512
    %v739 = vsel %vm738, %v730, -inf
    %740 = vmax.xlane.f32.xlu0 %v739
    %v741 = vpop.xlane.xlu0 %740
    %v742 = vsel %vm738, %v731, -inf
    %743 = vmax.xlane.f32.xlu0 %v742
    %v744 = vpop.xlane.xlu0 %743
    %v745 = vsel %vm738, %v732, -inf
    %746 = vmax.xlane.f32.xlu0 %v745
    %v747 = vpop.xlane.xlu0 %746
    %v748 = vsel %vm738, %v733, -inf
    %749 = vmax.xlane.f32.xlu0 %v748
    %v750 = vpop.xlane.xlu0 %749
    %v751 = vsel %vm738, %v734, -inf
    %752 = vmax.xlane.f32.xlu0 %v751
    %v753 = vpop.xlane.xlu0 %752
    %v754 = vsel %vm738, %v735, -inf
    %755 = vmax.xlane.f32.xlu0 %v754
    %v756 = vpop.xlane.xlu0 %755
    %v757 = vsel %vm738, %v736, -inf
    %758 = vmax.xlane.f32.xlu0 %v757
    %v759 = vpop.xlane.xlu0 %758
    %v760 = vsel %vm738, %v737, -inf
    %761 = vmax.xlane.f32.xlu0 %v760
    %v762 = vpop.xlane.xlu0 %761
    %v763 = vsub.f32 %v730, %v741
    %v764 = vsub.f32 %v731, %v744
    %v765 = vsub.f32 %v732, %v747
    %v766 = vsub.f32 %v733, %v750
    %v767 = vsub.f32 %v734, %v753
    %v768 = vsub.f32 %v735, %v756
    %v769 = vsub.f32 %v736, %v759
    %v770 = vsub.f32 %v737, %v762
    %v771 = vmul.f32 %v763, 1.442695
    %v772 = vpow.pop %v771
    %v773 = vmul.f32 %v764, 1.442695
    %v774 = vpow.pop %v773
    %v775 = vmul.f32 %v765, 1.442695
    %v776 = vpow.pop %v775
    %v777 = vmul.f32 %v766, 1.442695
    %v778 = vpow.pop %v777
    %v779 = vmul.f32 %v767, 1.442695
    %v780 = vpow.pop %v779
    %v781 = vmul.f32 %v768, 1.442695
    %v782 = vpow.pop %v781
    %v783 = vmul.f32 %v769, 1.442695
    %v784 = vpow.pop %v783
    %v785 = vmul.f32 %v770, 1.442695
    %v786 = vpow.pop %v785
    %v787 = vsel %vm738, %v772, 0.0
    %788 = vadd.xlane.f32.xlu0 %v787
    %v789 = vpop.xlane.xlu0 %788
    %v790 = vsel %vm738, %v774, 0.0
    %791 = vadd.xlane.f32.xlu0 %v790
    %v792 = vpop.xlane.xlu0 %791
    %v793 = vsel %vm738, %v776, 0.0
    %794 = vadd.xlane.f32.xlu0 %v793
    %v795 = vpop.xlane.xlu0 %794
    %v796 = vsel %vm738, %v778, 0.0
    %797 = vadd.xlane.f32.xlu0 %v796
    %v798 = vpop.xlane.xlu0 %797
    %v799 = vsel %vm738, %v780, 0.0
    %800 = vadd.xlane.f32.xlu0 %v799
    %v801 = vpop.xlane.xlu0 %800
    %v802 = vsel %vm738, %v782, 0.0
    %803 = vadd.xlane.f32.xlu0 %v802
    %v804 = vpop.xlane.xlu0 %803
    %v805 = vsel %vm738, %v784, 0.0
    %806 = vadd.xlane.f32.xlu0 %v805
    %v807 = vpop.xlane.xlu0 %806
    %v808 = vsel %vm738, %v786, 0.0
    %809 = vadd.xlane.f32.xlu0 %v808
    %v810 = vpop.xlane.xlu0 %809
    %v811 = vrcp.pop %v789
    %v812 = vrcp.pop %v792
    %v813 = vrcp.pop %v795
    %v814 = vrcp.pop %v798
    %v815 = vrcp.pop %v801
    %v816 = vrcp.pop %v804
    %v817 = vrcp.pop %v807
    %v818 = vrcp.pop %v810
    %v819 = vmul.f32 %v772, %v811
    %v820 = vmul.f32 %v774, %v812
    %v821 = vmul.f32 %v776, %v813
    %v822 = vmul.f32 %v778, %v814
    %v823 = vmul.f32 %v780, %v815
    %v824 = vmul.f32 %v782, %v816
    %v825 = vmul.f32 %v784, %v817
    %v826 = vmul.f32 %v786, %v818
    %v827 = vsel %vm738, %v819, -inf
    %828 = vmax.xlane.f32.xlu0 %v827
    %v829 = vpop.xlane.xlu0 %828
    %v830 = vsel %vm738, %v820, -inf
    %831 = vmax.xlane.f32.xlu0 %v830
    %v832 = vpop.xlane.xlu0 %831
    %v833 = vsel %vm738, %v821, -inf
    %834 = vmax.xlane.f32.xlu0 %v833
    %v835 = vpop.xlane.xlu0 %834
    %v836 = vsel %vm738, %v822, -inf
    %837 = vmax.xlane.f32.xlu0 %v836
    %v838 = vpop.xlane.xlu0 %837
    %v839 = vsel %vm738, %v823, -inf
    %840 = vmax.xlane.f32.xlu0 %v839
    %v841 = vpop.xlane.xlu0 %840
    %v842 = vsel %vm738, %v824, -inf
    %843 = vmax.xlane.f32.xlu0 %v842
    %v844 = vpop.xlane.xlu0 %843
    %v845 = vsel %vm738, %v825, -inf
    %846 = vmax.xlane.f32.xlu0 %v845
    %v847 = vpop.xlane.xlu0 %846
    %v848 = vsel %vm738, %v826, -inf
    %849 = vmax.xlane.f32.xlu0 %v848
    %v850 = vpop.xlane.xlu0 %849
    %vm851 = vcmp.eq.f32.partialorder %v819, %v829
    %vm852 = vcmp.eq.f32.partialorder %v820, %v832
    %vm853 = vcmp.eq.f32.partialorder %v821, %v835
    %vm854 = vcmp.eq.f32.partialorder %v822, %v838
    %vm855 = vcmp.eq.f32.partialorder %v823, %v841
    %vm856 = vcmp.eq.f32.partialorder %v824, %v844
    %vm857 = vcmp.eq.f32.partialorder %v825, %v847
    %vm858 = vcmp.eq.f32.partialorder %v826, %v850
    %v859 = vsel %vm851, %v205, 8
    %v860 = vsel %vm852, %v205, 8
    %v861 = vsel %vm853, %v205, 8
    %v862 = vsel %vm854, %v205, 8
    %v863 = vsel %vm855, %v205, 8
    %v864 = vsel %vm856, %v205, 8
    %v865 = vsel %vm857, %v205, 8
    %v866 = vsel %vm858, %v205, 8
    %v867 = vsel %vm738, %v859, 2147483647
    %v868 = vand.u32 %v867, 65535
    %v869 = vshra.s32 %v867, 16
    %v870 = vcvt.s32.f32 %v868
    %v871 = vcvt.s32.f32 %v869
    %872 = vmin.xlane.f32.xlu0 %v871
    %v873 = vpop.xlane.xlu0 %872
    %vm874 = vcmp.eq.f32.partialorder %v871, %v873
    %v875 = vsel %vm874, %v870, inf
    %876 = vmin.xlane.f32.xlu0 %v875
    %v877 = vpop.xlane.xlu0 %876
    %v878 = vcvt.f32.s32 %v877
    %v879 = vcvt.f32.s32 %v873
    %v880 = vshll.u32 %v879, 16
    %v881 = vadd.s32 %v880, %v878
    %v882 = vsel %vm738, %v860, 2147483647
    %v883 = vand.u32 %v882, 65535
    %v884 = vshra.s32 %v882, 16
    %v885 = vcvt.s32.f32 %v883
    %v886 = vcvt.s32.f32 %v884
    %887 = vmin.xlane.f32.xlu0 %v886
    %v888 = vpop.xlane.xlu0 %887
    %vm889 = vcmp.eq.f32.partialorder %v886, %v888
    %v890 = vsel %vm889, %v885, inf
    %891 = vmin.xlane.f32.xlu0 %v890
    %v892 = vpop.xlane.xlu0 %891
    %v893 = vcvt.f32.s32 %v892
    %v894 = vcvt.f32.s32 %v888
    %v895 = vshll.u32 %v894, 16
    %v896 = vadd.s32 %v895, %v893
    %v897 = vsel %vm738, %v861, 2147483647
    %v898 = vand.u32 %v897, 65535
    %v899 = vshra.s32 %v897, 16
    %v900 = vcvt.s32.f32 %v898
    %v901 = vcvt.s32.f32 %v899
    %902 = vmin.xlane.f32.xlu0 %v901
    %v903 = vpop.xlane.xlu0 %902
    %vm904 = vcmp.eq.f32.partialorder %v901, %v903
    %v905 = vsel %vm904, %v900, inf
    %906 = vmin.xlane.f32.xlu0 %v905
    %v907 = vpop.xlane.xlu0 %906
    %v908 = vcvt.f32.s32 %v907
    %v909 = vcvt.f32.s32 %v903
    %v910 = vshll.u32 %v909, 16
    %v911 = vadd.s32 %v910, %v908
    %v912 = vsel %vm738, %v862, 2147483647
    %v913 = vand.u32 %v912, 65535
    %v914 = vshra.s32 %v912, 16
    %v915 = vcvt.s32.f32 %v913
    %v916 = vcvt.s32.f32 %v914
    %917 = vmin.xlane.f32.xlu0 %v916
    %v918 = vpop.xlane.xlu0 %917
    %vm919 = vcmp.eq.f32.partialorder %v916, %v918
    %v920 = vsel %vm919, %v915, inf
    %921 = vmin.xlane.f32.xlu0 %v920
    %v922 = vpop.xlane.xlu0 %921
    %v923 = vcvt.f32.s32 %v922
    %v924 = vcvt.f32.s32 %v918
    %v925 = vshll.u32 %v924, 16
    %v926 = vadd.s32 %v925, %v923
    %v927 = vsel %vm738, %v863, 2147483647
    %v928 = vand.u32 %v927, 65535
    %v929 = vshra.s32 %v927, 16
    %v930 = vcvt.s32.f32 %v928
    %v931 = vcvt.s32.f32 %v929
    %932 = vmin.xlane.f32.xlu0 %v931
    %v933 = vpop.xlane.xlu0 %932
    %vm934 = vcmp.eq.f32.partialorder %v931, %v933
    %v935 = vsel %vm934, %v930, inf
    %936 = vmin.xlane.f32.xlu0 %v935
    %v937 = vpop.xlane.xlu0 %936
    %v938 = vcvt.f32.s32 %v937
    %v939 = vcvt.f32.s32 %v933
    %v940 = vshll.u32 %v939, 16
    %v941 = vadd.s32 %v940, %v938
    %v942 = vsel %vm738, %v864, 2147483647
    %v943 = vand.u32 %v942, 65535
    %v944 = vshra.s32 %v942, 16
    %v945 = vcvt.s32.f32 %v943
    %v946 = vcvt.s32.f32 %v944
    %947 = vmin.xlane.f32.xlu0 %v946
    %v948 = vpop.xlane.xlu0 %947
    %vm949 = vcmp.eq.f32.partialorder %v946, %v948
    %v950 = vsel %vm949, %v945, inf
    %951 = vmin.xlane.f32.xlu0 %v950
    %v952 = vpop.xlane.xlu0 %951
    %v953 = vcvt.f32.s32 %v952
    %v954 = vcvt.f32.s32 %v948
    %v955 = vshll.u32 %v954, 16
    %v956 = vadd.s32 %v955, %v953
    %v957 = vsel %vm738, %v865, 2147483647
    %v958 = vand.u32 %v957, 65535
    %v959 = vshra.s32 %v957, 16
    %v960 = vcvt.s32.f32 %v958
    %v961 = vcvt.s32.f32 %v959
    %962 = vmin.xlane.f32.xlu0 %v961
    %v963 = vpop.xlane.xlu0 %962
    %vm964 = vcmp.eq.f32.partialorder %v961, %v963
    %v965 = vsel %vm964, %v960, inf
    %966 = vmin.xlane.f32.xlu0 %v965
    %v967 = vpop.xlane.xlu0 %966
    %v968 = vcvt.f32.s32 %v967
    %v969 = vcvt.f32.s32 %v963
    %v970 = vshll.u32 %v969, 16
    %v971 = vadd.s32 %v970, %v968
    %v972 = vsel %vm738, %v866, 2147483647
    %v973 = vand.u32 %v972, 65535
    %v974 = vshra.s32 %v972, 16
    %v975 = vcvt.s32.f32 %v973
    %v976 = vcvt.s32.f32 %v974
    %977 = vmin.xlane.f32.xlu0 %v976
    %v978 = vpop.xlane.xlu0 %977
    %vm979 = vcmp.eq.f32.partialorder %v976, %v978
    %v980 = vsel %vm979, %v975, inf
    %981 = vmin.xlane.f32.xlu0 %v980
    %v982 = vpop.xlane.xlu0 %981
    %v983 = vcvt.f32.s32 %v982
    %v984 = vcvt.f32.s32 %v978
    %v985 = vshll.u32 %v984, 16
    %v986 = vadd.s32 %v985, %v983
    %vm987 = vcmp.eq.s32.totalorder %v205, %v881
    %vm988 = vcmp.eq.s32.totalorder %v205, %v896
    %vm989 = vcmp.eq.s32.totalorder %v205, %v911
    %vm990 = vcmp.eq.s32.totalorder %v205, %v926
    %vm991 = vcmp.eq.s32.totalorder %v205, %v941
    %vm992 = vcmp.eq.s32.totalorder %v205, %v956
    %vm993 = vcmp.eq.s32.totalorder %v205, %v971
    %vm994 = vcmp.eq.s32.totalorder %v205, %v986
    %v995 = vsel %vm987, 1, 0
    %v996 = vsel %vm988, 1, 0
    %v997 = vsel %vm989, 1, 0
    %v998 = vsel %vm990, 1, 0
    %v999 = vsel %vm991, 1, 0
    %v1000 = vsel %vm992, 1, 0
    %v1001 = vsel %vm993, 1, 0
    %v1002 = vsel %vm994, 1, 0
    %v1003 = vcvt.s32.f32 %v995
    %v1004 = vcvt.s32.f32 %v996
    %v1005 = vcvt.s32.f32 %v997
    %v1006 = vcvt.s32.f32 %v998
    %v1007 = vcvt.s32.f32 %v999
    %v1008 = vcvt.s32.f32 %v1000
    %v1009 = vcvt.s32.f32 %v1001
    %v1010 = vcvt.s32.f32 %v1002
    %v1011 = vmul.f32 %v819, %v1003
    %v1012 = vmul.f32 %v820, %v1004
    %v1013 = vmul.f32 %v821, %v1005
    %v1014 = vmul.f32 %v822, %v1006
    %v1015 = vmul.f32 %v823, %v1007
    %v1016 = vmul.f32 %v824, %v1008
    %v1017 = vmul.f32 %v825, %v1009
    %v1018 = vmul.f32 %v826, %v1010
    %v1019 = vadd.f32 %v1011, 0.0
    %v1020 = vadd.f32 %v1012, 0.0
    %v1021 = vadd.f32 %v1013, 0.0
    %v1022 = vadd.f32 %v1014, 0.0
    %v1023 = vadd.f32 %v1015, 0.0
    %v1024 = vadd.f32 %v1016, 0.0
    %v1025 = vadd.f32 %v1017, 0.0
    %v1026 = vadd.f32 %v1018, 0.0
    %v1027 = vsub.f32 %v819, %v1011
    %v1028 = vsub.f32 %v820, %v1012
    %v1029 = vsub.f32 %v821, %v1013
    %v1030 = vsub.f32 %v822, %v1014
    %v1031 = vsub.f32 %v823, %v1015
    %v1032 = vsub.f32 %v824, %v1016
    %v1033 = vsub.f32 %v825, %v1017
    %v1034 = vsub.f32 %v826, %v1018
    %v1035 = vsel %vm738, %v1027, -inf
    %1036 = vmax.xlane.f32.xlu0 %v1035
    %v1037 = vpop.xlane.xlu0 %1036
    %v1038 = vsel %vm738, %v1028, -inf
    %1039 = vmax.xlane.f32.xlu0 %v1038
    %v1040 = vpop.xlane.xlu0 %1039
    %v1041 = vsel %vm738, %v1029, -inf
    %1042 = vmax.xlane.f32.xlu0 %v1041
    %v1043 = vpop.xlane.xlu0 %1042
    %v1044 = vsel %vm738, %v1030, -inf
    %1045 = vmax.xlane.f32.xlu0 %v1044
    %v1046 = vpop.xlane.xlu0 %1045
    %v1047 = vsel %vm738, %v1031, -inf
    %1048 = vmax.xlane.f32.xlu0 %v1047
    %v1049 = vpop.xlane.xlu0 %1048
    %v1050 = vsel %vm738, %v1032, -inf
    %1051 = vmax.xlane.f32.xlu0 %v1050
    %v1052 = vpop.xlane.xlu0 %1051
    %v1053 = vsel %vm738, %v1033, -inf
    %1054 = vmax.xlane.f32.xlu0 %v1053
    %v1055 = vpop.xlane.xlu0 %1054
    %v1056 = vsel %vm738, %v1034, -inf
    %1057 = vmax.xlane.f32.xlu0 %v1056
    %v1058 = vpop.xlane.xlu0 %1057
    %vm1059 = vcmp.eq.f32.partialorder %v1027, %v1037
    %vm1060 = vcmp.eq.f32.partialorder %v1028, %v1040
    %vm1061 = vcmp.eq.f32.partialorder %v1029, %v1043
    %vm1062 = vcmp.eq.f32.partialorder %v1030, %v1046
    %vm1063 = vcmp.eq.f32.partialorder %v1031, %v1049
    %vm1064 = vcmp.eq.f32.partialorder %v1032, %v1052
    %vm1065 = vcmp.eq.f32.partialorder %v1033, %v1055
    %vm1066 = vcmp.eq.f32.partialorder %v1034, %v1058
    %v1067 = vsel %vm1059, %v205, 8
    %v1068 = vsel %vm1060, %v205, 8
    %v1069 = vsel %vm1061, %v205, 8
    %v1070 = vsel %vm1062, %v205, 8
    %v1071 = vsel %vm1063, %v205, 8
    %v1072 = vsel %vm1064, %v205, 8
    %v1073 = vsel %vm1065, %v205, 8
    %v1074 = vsel %vm1066, %v205, 8
    %v1075 = vsel %vm738, %v1067, 2147483647
    %v1076 = vand.u32 %v1075, 65535
    %v1077 = vshra.s32 %v1075, 16
    %v1078 = vcvt.s32.f32 %v1076
    %v1079 = vcvt.s32.f32 %v1077
    %1080 = vmin.xlane.f32.xlu0 %v1079
    %v1081 = vpop.xlane.xlu0 %1080
    %vm1082 = vcmp.eq.f32.partialorder %v1079, %v1081
    %v1083 = vsel %vm1082, %v1078, inf
    %1084 = vmin.xlane.f32.xlu0 %v1083
    %v1085 = vpop.xlane.xlu0 %1084
    %v1086 = vcvt.f32.s32 %v1085
    %v1087 = vcvt.f32.s32 %v1081
    %v1088 = vshll.u32 %v1087, 16
    %v1089 = vadd.s32 %v1088, %v1086
    %v1090 = vsel %vm738, %v1068, 2147483647
    %v1091 = vand.u32 %v1090, 65535
    %v1092 = vshra.s32 %v1090, 16
    %v1093 = vcvt.s32.f32 %v1091
    %v1094 = vcvt.s32.f32 %v1092
    %1095 = vmin.xlane.f32.xlu0 %v1094
    %v1096 = vpop.xlane.xlu0 %1095
    %vm1097 = vcmp.eq.f32.partialorder %v1094, %v1096
    %v1098 = vsel %vm1097, %v1093, inf
    %1099 = vmin.xlane.f32.xlu0 %v1098
    %v1100 = vpop.xlane.xlu0 %1099
    %v1101 = vcvt.f32.s32 %v1100
    %v1102 = vcvt.f32.s32 %v1096
    %v1103 = vshll.u32 %v1102, 16
    %v1104 = vadd.s32 %v1103, %v1101
    %v1105 = vsel %vm738, %v1069, 2147483647
    %v1106 = vand.u32 %v1105, 65535
    %v1107 = vshra.s32 %v1105, 16
    %v1108 = vcvt.s32.f32 %v1106
    %v1109 = vcvt.s32.f32 %v1107
    %1110 = vmin.xlane.f32.xlu0 %v1109
    %v1111 = vpop.xlane.xlu0 %1110
    %vm1112 = vcmp.eq.f32.partialorder %v1109, %v1111
    %v1113 = vsel %vm1112, %v1108, inf
    %1114 = vmin.xlane.f32.xlu0 %v1113
    %v1115 = vpop.xlane.xlu0 %1114
    %v1116 = vcvt.f32.s32 %v1115
    %v1117 = vcvt.f32.s32 %v1111
    %v1118 = vshll.u32 %v1117, 16
    %v1119 = vadd.s32 %v1118, %v1116
    %v1120 = vsel %vm738, %v1070, 2147483647
    %v1121 = vand.u32 %v1120, 65535
    %v1122 = vshra.s32 %v1120, 16
    %v1123 = vcvt.s32.f32 %v1121
    %v1124 = vcvt.s32.f32 %v1122
    %1125 = vmin.xlane.f32.xlu0 %v1124
    %v1126 = vpop.xlane.xlu0 %1125
    %vm1127 = vcmp.eq.f32.partialorder %v1124, %v1126
    %v1128 = vsel %vm1127, %v1123, inf
    %1129 = vmin.xlane.f32.xlu0 %v1128
    %v1130 = vpop.xlane.xlu0 %1129
    %v1131 = vcvt.f32.s32 %v1130
    %v1132 = vcvt.f32.s32 %v1126
    %v1133 = vshll.u32 %v1132, 16
    %v1134 = vadd.s32 %v1133, %v1131
    %v1135 = vsel %vm738, %v1071, 2147483647
    %v1136 = vand.u32 %v1135, 65535
    %v1137 = vshra.s32 %v1135, 16
    %v1138 = vcvt.s32.f32 %v1136
    %v1139 = vcvt.s32.f32 %v1137
    %1140 = vmin.xlane.f32.xlu0 %v1139
    %v1141 = vpop.xlane.xlu0 %1140
    %vm1142 = vcmp.eq.f32.partialorder %v1139, %v1141
    %v1143 = vsel %vm1142, %v1138, inf
    %1144 = vmin.xlane.f32.xlu0 %v1143
    %v1145 = vpop.xlane.xlu0 %1144
    %v1146 = vcvt.f32.s32 %v1145
    %v1147 = vcvt.f32.s32 %v1141
    %v1148 = vshll.u32 %v1147, 16
    %v1149 = vadd.s32 %v1148, %v1146
    %v1150 = vsel %vm738, %v1072, 2147483647
    %v1151 = vand.u32 %v1150, 65535
    %v1152 = vshra.s32 %v1150, 16
    %v1153 = vcvt.s32.f32 %v1151
    %v1154 = vcvt.s32.f32 %v1152
    %1155 = vmin.xlane.f32.xlu0 %v1154
    %v1156 = vpop.xlane.xlu0 %1155
    %vm1157 = vcmp.eq.f32.partialorder %v1154, %v1156
    %v1158 = vsel %vm1157, %v1153, inf
    %1159 = vmin.xlane.f32.xlu0 %v1158
    %v1160 = vpop.xlane.xlu0 %1159
    %v1161 = vcvt.f32.s32 %v1160
    %v1162 = vcvt.f32.s32 %v1156
    %v1163 = vshll.u32 %v1162, 16
    %v1164 = vadd.s32 %v1163, %v1161
    %v1165 = vsel %vm738, %v1073, 2147483647
    %v1166 = vand.u32 %v1165, 65535
    %v1167 = vshra.s32 %v1165, 16
    %v1168 = vcvt.s32.f32 %v1166
    %v1169 = vcvt.s32.f32 %v1167
    %1170 = vmin.xlane.f32.xlu0 %v1169
    %v1171 = vpop.xlane.xlu0 %1170
    %vm1172 = vcmp.eq.f32.partialorder %v1169, %v1171
    %v1173 = vsel %vm1172, %v1168, inf
    %1174 = vmin.xlane.f32.xlu0 %v1173
    %v1175 = vpop.xlane.xlu0 %1174
    %v1176 = vcvt.f32.s32 %v1175
    %v1177 = vcvt.f32.s32 %v1171
    %v1178 = vshll.u32 %v1177, 16
    %v1179 = vadd.s32 %v1178, %v1176
    %v1180 = vsel %vm738, %v1074, 2147483647
    %v1181 = vand.u32 %v1180, 65535
    %v1182 = vshra.s32 %v1180, 16
    %v1183 = vcvt.s32.f32 %v1181
    %v1184 = vcvt.s32.f32 %v1182
    %1185 = vmin.xlane.f32.xlu0 %v1184
    %v1186 = vpop.xlane.xlu0 %1185
    %vm1187 = vcmp.eq.f32.partialorder %v1184, %v1186
    %v1188 = vsel %vm1187, %v1183, inf
    %1189 = vmin.xlane.f32.xlu0 %v1188
    %v1190 = vpop.xlane.xlu0 %1189
    %v1191 = vcvt.f32.s32 %v1190
    %v1192 = vcvt.f32.s32 %v1186
    %v1193 = vshll.u32 %v1192, 16
    %v1194 = vadd.s32 %v1193, %v1191
    %vm1195 = vcmp.eq.s32.totalorder %v205, %v1089
    %vm1196 = vcmp.eq.s32.totalorder %v205, %v1104
    %vm1197 = vcmp.eq.s32.totalorder %v205, %v1119
    %vm1198 = vcmp.eq.s32.totalorder %v205, %v1134
    %vm1199 = vcmp.eq.s32.totalorder %v205, %v1149
    %vm1200 = vcmp.eq.s32.totalorder %v205, %v1164
    %vm1201 = vcmp.eq.s32.totalorder %v205, %v1179
    %vm1202 = vcmp.eq.s32.totalorder %v205, %v1194
    %v1203 = vsel %vm1195, 1, 0
    %v1204 = vsel %vm1196, 1, 0
    %v1205 = vsel %vm1197, 1, 0
    %v1206 = vsel %vm1198, 1, 0
    %v1207 = vsel %vm1199, 1, 0
    %v1208 = vsel %vm1200, 1, 0
    %v1209 = vsel %vm1201, 1, 0
    %v1210 = vsel %vm1202, 1, 0
    %v1211 = vcvt.s32.f32 %v1203
    %v1212 = vcvt.s32.f32 %v1204
    %v1213 = vcvt.s32.f32 %v1205
    %v1214 = vcvt.s32.f32 %v1206
    %v1215 = vcvt.s32.f32 %v1207
    %v1216 = vcvt.s32.f32 %v1208
    %v1217 = vcvt.s32.f32 %v1209
    %v1218 = vcvt.s32.f32 %v1210
    %v1219 = vmul.f32 %v819, %v1211
    %v1220 = vmul.f32 %v820, %v1212
    %v1221 = vmul.f32 %v821, %v1213
    %v1222 = vmul.f32 %v822, %v1214
    %v1223 = vmul.f32 %v823, %v1215
    %v1224 = vmul.f32 %v824, %v1216
    %v1225 = vmul.f32 %v825, %v1217
    %v1226 = vmul.f32 %v826, %v1218
    %v1227 = vadd.f32 %v1019, %v1219
    %v1228 = vadd.f32 %v1020, %v1220
    %v1229 = vadd.f32 %v1021, %v1221
    %v1230 = vadd.f32 %v1022, %v1222
    %v1231 = vadd.f32 %v1023, %v1223
    %v1232 = vadd.f32 %v1024, %v1224
    %v1233 = vadd.f32 %v1025, %v1225
    %v1234 = vadd.f32 %v1026, %v1226
    %v1235 = vsel %vm738, %v819, inf
    %1236 = vmin.xlane.f32.xlu0 %v1235
    %v1237 = vpop.xlane.xlu0 %1236
    %v1238 = vsel %vm738, %v820, inf
    %1239 = vmin.xlane.f32.xlu0 %v1238
    %v1240 = vpop.xlane.xlu0 %1239
    %v1241 = vsel %vm738, %v821, inf
    %1242 = vmin.xlane.f32.xlu0 %v1241
    %v1243 = vpop.xlane.xlu0 %1242
    %v1244 = vsel %vm738, %v822, inf
    %1245 = vmin.xlane.f32.xlu0 %v1244
    %v1246 = vpop.xlane.xlu0 %1245
    %v1247 = vsel %vm738, %v823, inf
    %1248 = vmin.xlane.f32.xlu0 %v1247
    %v1249 = vpop.xlane.xlu0 %1248
    %v1250 = vsel %vm738, %v824, inf
    %1251 = vmin.xlane.f32.xlu0 %v1250
    %v1252 = vpop.xlane.xlu0 %1251
    %v1253 = vsel %vm738, %v825, inf
    %1254 = vmin.xlane.f32.xlu0 %v1253
    %v1255 = vpop.xlane.xlu0 %1254
    %v1256 = vsel %vm738, %v826, inf
    %1257 = vmin.xlane.f32.xlu0 %v1256
    %v1258 = vpop.xlane.xlu0 %1257
    %vm1259 = vcmp.eq.f32.partialorder %v819, %v1237
    %vm1260 = vcmp.eq.f32.partialorder %v820, %v1240
    %vm1261 = vcmp.eq.f32.partialorder %v821, %v1243
    %vm1262 = vcmp.eq.f32.partialorder %v822, %v1246
    %vm1263 = vcmp.eq.f32.partialorder %v823, %v1249
    %vm1264 = vcmp.eq.f32.partialorder %v824, %v1252
    %vm1265 = vcmp.eq.f32.partialorder %v825, %v1255
    %vm1266 = vcmp.eq.f32.partialorder %v826, %v1258
    %v1267 = vsel %vm1259, %v205, 8
    %v1268 = vsel %vm1260, %v205, 8
    %v1269 = vsel %vm1261, %v205, 8
    %v1270 = vsel %vm1262, %v205, 8
    %v1271 = vsel %vm1263, %v205, 8
    %v1272 = vsel %vm1264, %v205, 8
    %v1273 = vsel %vm1265, %v205, 8
    %v1274 = vsel %vm1266, %v205, 8
    %v1275 = vsel %vm738, %v1267, 2147483647
    %v1276 = vand.u32 %v1275, 65535
    %v1277 = vshra.s32 %v1275, 16
    %v1278 = vcvt.s32.f32 %v1276
    %v1279 = vcvt.s32.f32 %v1277
    %1280 = vmin.xlane.f32.xlu0 %v1279
    %v1281 = vpop.xlane.xlu0 %1280
    %vm1282 = vcmp.eq.f32.partialorder %v1279, %v1281
    %v1283 = vsel %vm1282, %v1278, inf
    %1284 = vmin.xlane.f32.xlu0 %v1283
    %v1285 = vpop.xlane.xlu0 %1284
    %v1286 = vcvt.f32.s32 %v1285
    %v1287 = vcvt.f32.s32 %v1281
    %v1288 = vshll.u32 %v1287, 16
    %v1289 = vadd.s32 %v1288, %v1286
    %v1290 = vsel %vm738, %v1268, 2147483647
    %v1291 = vand.u32 %v1290, 65535
    %v1292 = vshra.s32 %v1290, 16
    %v1293 = vcvt.s32.f32 %v1291
    %v1294 = vcvt.s32.f32 %v1292
    %1295 = vmin.xlane.f32.xlu0 %v1294
    %v1296 = vpop.xlane.xlu0 %1295
    %vm1297 = vcmp.eq.f32.partialorder %v1294, %v1296
    %v1298 = vsel %vm1297, %v1293, inf
    %1299 = vmin.xlane.f32.xlu0 %v1298
    %v1300 = vpop.xlane.xlu0 %1299
    %v1301 = vcvt.f32.s32 %v1300
    %v1302 = vcvt.f32.s32 %v1296
    %v1303 = vshll.u32 %v1302, 16
    %v1304 = vadd.s32 %v1303, %v1301
    %v1305 = vsel %vm738, %v1269, 2147483647
    %v1306 = vand.u32 %v1305, 65535
    %v1307 = vshra.s32 %v1305, 16
    %v1308 = vcvt.s32.f32 %v1306
    %v1309 = vcvt.s32.f32 %v1307
    %1310 = vmin.xlane.f32.xlu0 %v1309
    %v1311 = vpop.xlane.xlu0 %1310
    %vm1312 = vcmp.eq.f32.partialorder %v1309, %v1311
    %v1313 = vsel %vm1312, %v1308, inf
    %1314 = vmin.xlane.f32.xlu0 %v1313
    %v1315 = vpop.xlane.xlu0 %1314
    %v1316 = vcvt.f32.s32 %v1315
    %v1317 = vcvt.f32.s32 %v1311
    %v1318 = vshll.u32 %v1317, 16
    %v1319 = vadd.s32 %v1318, %v1316
    %v1320 = vsel %vm738, %v1270, 2147483647
    %v1321 = vand.u32 %v1320, 65535
    %v1322 = vshra.s32 %v1320, 16
    %v1323 = vcvt.s32.f32 %v1321
    %v1324 = vcvt.s32.f32 %v1322
    %1325 = vmin.xlane.f32.xlu0 %v1324
    %v1326 = vpop.xlane.xlu0 %1325
    %vm1327 = vcmp.eq.f32.partialorder %v1324, %v1326
    %v1328 = vsel %vm1327, %v1323, inf
    %1329 = vmin.xlane.f32.xlu0 %v1328
    %v1330 = vpop.xlane.xlu0 %1329
    %v1331 = vcvt.f32.s32 %v1330
    %v1332 = vcvt.f32.s32 %v1326
    %v1333 = vshll.u32 %v1332, 16
    %v1334 = vadd.s32 %v1333, %v1331
    %v1335 = vsel %vm738, %v1271, 2147483647
    %v1336 = vand.u32 %v1335, 65535
    %v1337 = vshra.s32 %v1335, 16
    %v1338 = vcvt.s32.f32 %v1336
    %v1339 = vcvt.s32.f32 %v1337
    %1340 = vmin.xlane.f32.xlu0 %v1339
    %v1341 = vpop.xlane.xlu0 %1340
    %vm1342 = vcmp.eq.f32.partialorder %v1339, %v1341
    %v1343 = vsel %vm1342, %v1338, inf
    %1344 = vmin.xlane.f32.xlu0 %v1343
    %v1345 = vpop.xlane.xlu0 %1344
    %v1346 = vcvt.f32.s32 %v1345
    %v1347 = vcvt.f32.s32 %v1341
    %v1348 = vshll.u32 %v1347, 16
    %v1349 = vadd.s32 %v1348, %v1346
    %v1350 = vsel %vm738, %v1272, 2147483647
    %v1351 = vand.u32 %v1350, 65535
    %v1352 = vshra.s32 %v1350, 16
    %v1353 = vcvt.s32.f32 %v1351
    %v1354 = vcvt.s32.f32 %v1352
    %1355 = vmin.xlane.f32.xlu0 %v1354
    %v1356 = vpop.xlane.xlu0 %1355
    %vm1357 = vcmp.eq.f32.partialorder %v1354, %v1356
    %v1358 = vsel %vm1357, %v1353, inf
    %1359 = vmin.xlane.f32.xlu0 %v1358
    %v1360 = vpop.xlane.xlu0 %1359
    %v1361 = vcvt.f32.s32 %v1360
    %v1362 = vcvt.f32.s32 %v1356
    %v1363 = vshll.u32 %v1362, 16
    %v1364 = vadd.s32 %v1363, %v1361
    %v1365 = vsel %vm738, %v1273, 2147483647
    %v1366 = vand.u32 %v1365, 65535
    %v1367 = vshra.s32 %v1365, 16
    %v1368 = vcvt.s32.f32 %v1366
    %v1369 = vcvt.s32.f32 %v1367
    %1370 = vmin.xlane.f32.xlu0 %v1369
    %v1371 = vpop.xlane.xlu0 %1370
    %vm1372 = vcmp.eq.f32.partialorder %v1369, %v1371
    %v1373 = vsel %vm1372, %v1368, inf
    %1374 = vmin.xlane.f32.xlu0 %v1373
    %v1375 = vpop.xlane.xlu0 %1374
    %v1376 = vcvt.f32.s32 %v1375
    %v1377 = vcvt.f32.s32 %v1371
    %v1378 = vshll.u32 %v1377, 16
    %v1379 = vadd.s32 %v1378, %v1376
    %v1380 = vsel %vm738, %v1274, 2147483647
    %v1381 = vand.u32 %v1380, 65535
    %v1382 = vshra.s32 %v1380, 16
    %v1383 = vcvt.s32.f32 %v1381
    %v1384 = vcvt.s32.f32 %v1382
    %1385 = vmin.xlane.f32.xlu0 %v1384
    %v1386 = vpop.xlane.xlu0 %1385
    %vm1387 = vcmp.eq.f32.partialorder %v1384, %v1386
    %v1388 = vsel %vm1387, %v1383, inf
    %1389 = vmin.xlane.f32.xlu0 %v1388
    %v1390 = vpop.xlane.xlu0 %1389
    %v1391 = vcvt.f32.s32 %v1390
    %v1392 = vcvt.f32.s32 %v1386
    %v1393 = vshll.u32 %v1392, 16
    %v1394 = vadd.s32 %v1393, %v1391
    %vm1395 = vcmp.eq.s32.totalorder %v205, %v1289
    %vm1396 = vcmp.eq.s32.totalorder %v205, %v1304
    %vm1397 = vcmp.eq.s32.totalorder %v205, %v1319
    %vm1398 = vcmp.eq.s32.totalorder %v205, %v1334
    %vm1399 = vcmp.eq.s32.totalorder %v205, %v1349
    %vm1400 = vcmp.eq.s32.totalorder %v205, %v1364
    %vm1401 = vcmp.eq.s32.totalorder %v205, %v1379
    %vm1402 = vcmp.eq.s32.totalorder %v205, %v1394
    %v1403 = vsel %vm1395, 1, 0
    %v1404 = vsel %vm1396, 1, 0
    %v1405 = vsel %vm1397, 1, 0
    %v1406 = vsel %vm1398, 1, 0
    %v1407 = vsel %vm1399, 1, 0
    %v1408 = vsel %vm1400, 1, 0
    %v1409 = vsel %vm1401, 1, 0
    %v1410 = vsel %vm1402, 1, 0
    %v1411 = vcvt.s32.f32 %v1403
    %v1412 = vcvt.s32.f32 %v1404
    %v1413 = vcvt.s32.f32 %v1405
    %v1414 = vcvt.s32.f32 %v1406
    %v1415 = vcvt.s32.f32 %v1407
    %v1416 = vcvt.s32.f32 %v1408
    %v1417 = vcvt.s32.f32 %v1409
    %v1418 = vcvt.s32.f32 %v1410
    %v1419 = vmul.f32 %v1411, 2.0
    %v1420 = vmul.f32 %v1412, 2.0
    %v1421 = vmul.f32 %v1413, 2.0
    %v1422 = vmul.f32 %v1414, 2.0
    %v1423 = vmul.f32 %v1415, 2.0
    %v1424 = vmul.f32 %v1416, 2.0
    %v1425 = vmul.f32 %v1417, 2.0
    %v1426 = vmul.f32 %v1418, 2.0
    %v1427 = vmul.f32 %v154, %v1419
    %v1428 = vmul.f32 %v161, %v1420
    %v1429 = vmul.f32 %v168, %v1421
    %v1430 = vmul.f32 %v175, %v1422
    %v1431 = vmul.f32 %v182, %v1423
    %v1432 = vmul.f32 %v189, %v1424
    %v1433 = vmul.f32 %v196, %v1425
    %v1434 = vmul.f32 %v203, %v1426
    %v1435 = vmul.f32 %v819, %v1427
    %v1436 = vmul.f32 %v820, %v1428
    %v1437 = vmul.f32 %v821, %v1429
    %v1438 = vmul.f32 %v822, %v1430
    %v1439 = vmul.f32 %v823, %v1431
    %v1440 = vmul.f32 %v824, %v1432
    %v1441 = vmul.f32 %v825, %v1433
    %v1442 = vmul.f32 %v826, %v1434
    %v1443 = vsel %vm738, %v1435, 0.0
    %v1444 = vsel %vm738, %v1436, 0.0
    %v1445 = vadd.f32 %v1443, %v1444
    %v1446 = vsel %vm738, %v1437, 0.0
    %v1447 = vadd.f32 %v1445, %v1446
    %v1448 = vsel %vm738, %v1438, 0.0
    %v1449 = vadd.f32 %v1447, %v1448
    %1450 = vadd.xlane.f32.xlu0 %v1449
    %v1451 = vpop.xlane.xlu0 %1450
    %v1452 = vrot.slane %v1451, 4
    %v1453 = vadd.f32 %v1451, %v1452
    %v1454 = vrot.slane %v1453, 2
    %v1455 = vadd.f32 %v1453, %v1454
    %v1456 = vrot.slane %v1455, 1
    %v1457 = vadd.f32 %v1455, %v1456
    %s1458 = vtos %v1457
    %v1459 = vsel %vm738, %v1427, 0.0
    %v1460 = vsel %vm738, %v1428, 0.0
    %v1461 = vadd.f32 %v1459, %v1460
    %v1462 = vsel %vm738, %v1429, 0.0
    %v1463 = vadd.f32 %v1461, %v1462
    %v1464 = vsel %vm738, %v1430, 0.0
    %v1465 = vadd.f32 %v1463, %v1464
    %1466 = vadd.xlane.f32.xlu0 %v1465
    %v1467 = vpop.xlane.xlu0 %1466
    %v1468 = vrot.slane %v1467, 4
    %v1469 = vadd.f32 %v1467, %v1468
    %v1470 = vrot.slane %v1469, 2
    %v1471 = vadd.f32 %v1469, %v1470
    %v1472 = vrot.slane %v1471, 1
    %v1473 = vadd.f32 %v1471, %v1472
    %s1474 = vtos %v1473
    %v1475 = vstv %s1474
    %v1476 = vrcp.pop %v1475
    %s1477 = vtos %v1476
    %s1478 = smul.f32 %s1458, %s1477
    %s1479 = sadd.f32 %s1478, 0.0
    %v1480 = vsel %vm738, %v1439, 0.0
    %v1481 = vsel %vm738, %v1440, 0.0
    %v1482 = vadd.f32 %v1480, %v1481
    %v1483 = vsel %vm738, %v1441, 0.0
    %v1484 = vadd.f32 %v1482, %v1483
    %v1485 = vsel %vm738, %v1442, 0.0
    %v1486 = vadd.f32 %v1484, %v1485
    %1487 = vadd.xlane.f32.xlu0 %v1486
    %v1488 = vpop.xlane.xlu0 %1487
    %v1489 = vrot.slane %v1488, 4
    %v1490 = vadd.f32 %v1488, %v1489
    %v1491 = vrot.slane %v1490, 2
    %v1492 = vadd.f32 %v1490, %v1491
    %v1493 = vrot.slane %v1492, 1
    %v1494 = vadd.f32 %v1492, %v1493
    %s1495 = vtos %v1494
    %v1496 = vsel %vm738, %v1431, 0.0
    %v1497 = vsel %vm738, %v1432, 0.0
    %v1498 = vadd.f32 %v1496, %v1497
    %v1499 = vsel %vm738, %v1433, 0.0
    %v1500 = vadd.f32 %v1498, %v1499
    %v1501 = vsel %vm738, %v1434, 0.0
    %v1502 = vadd.f32 %v1500, %v1501
    %1503 = vadd.xlane.f32.xlu0 %v1502
    %v1504 = vpop.xlane.xlu0 %1503
    %v1505 = vrot.slane %v1504, 4
    %v1506 = vadd.f32 %v1504, %v1505
    %v1507 = vrot.slane %v1506, 2
    %v1508 = vadd.f32 %v1506, %v1507
    %v1509 = vrot.slane %v1508, 1
    %v1510 = vadd.f32 %v1508, %v1509
    %s1511 = vtos %v1510
    %v1512 = vstv %s1511
    %v1513 = vrcp.pop %v1512
    %s1514 = vtos %v1513
    %s1515 = smul.f32 %s1495, %s1514
    %s1516 = sadd.f32 %s1515, 0.0
    %v1517 = vsel %vm738, %v1227, -inf
    %1518 = vmax.xlane.f32.xlu0 %v1517
    %v1519 = vpop.xlane.xlu0 %1518
    %v1520 = vsel %vm738, %v1228, -inf
    %1521 = vmax.xlane.f32.xlu0 %v1520
    %v1522 = vpop.xlane.xlu0 %1521
    %v1523 = vsel %vm738, %v1229, -inf
    %1524 = vmax.xlane.f32.xlu0 %v1523
    %v1525 = vpop.xlane.xlu0 %1524
    %v1526 = vsel %vm738, %v1230, -inf
    %1527 = vmax.xlane.f32.xlu0 %v1526
    %v1528 = vpop.xlane.xlu0 %1527
    %v1529 = vsel %vm738, %v1231, -inf
    %1530 = vmax.xlane.f32.xlu0 %v1529
    %v1531 = vpop.xlane.xlu0 %1530
    %v1532 = vsel %vm738, %v1232, -inf
    %1533 = vmax.xlane.f32.xlu0 %v1532
    %v1534 = vpop.xlane.xlu0 %1533
    %v1535 = vsel %vm738, %v1233, -inf
    %1536 = vmax.xlane.f32.xlu0 %v1535
    %v1537 = vpop.xlane.xlu0 %1536
    %v1538 = vsel %vm738, %v1234, -inf
    %1539 = vmax.xlane.f32.xlu0 %v1538
    %v1540 = vpop.xlane.xlu0 %1539
    %v1541 = vsub.f32 %v1227, %v1519
    %v1542 = vsub.f32 %v1228, %v1522
    %v1543 = vsub.f32 %v1229, %v1525
    %v1544 = vsub.f32 %v1230, %v1528
    %v1545 = vsub.f32 %v1231, %v1531
    %v1546 = vsub.f32 %v1232, %v1534
    %v1547 = vsub.f32 %v1233, %v1537
    %v1548 = vsub.f32 %v1234, %v1540
    %v1549 = vmul.f32 %v1541, 1.442695
    %v1550 = vpow.pop %v1549
    %v1551 = vmul.f32 %v1542, 1.442695
    %v1552 = vpow.pop %v1551
    %v1553 = vmul.f32 %v1543, 1.442695
    %v1554 = vpow.pop %v1553
    %v1555 = vmul.f32 %v1544, 1.442695
    %v1556 = vpow.pop %v1555
    %v1557 = vmul.f32 %v1545, 1.442695
    %v1558 = vpow.pop %v1557
    %v1559 = vmul.f32 %v1546, 1.442695
    %v1560 = vpow.pop %v1559
    %v1561 = vmul.f32 %v1547, 1.442695
    %v1562 = vpow.pop %v1561
    %v1563 = vmul.f32 %v1548, 1.442695
    %v1564 = vpow.pop %v1563
    %v1565 = vsel %vm738, %v1550, 0.0
    %1566 = vadd.xlane.f32.xlu0 %v1565
    %v1567 = vpop.xlane.xlu0 %1566
    %v1568 = vsel %vm738, %v1552, 0.0
    %1569 = vadd.xlane.f32.xlu0 %v1568
    %v1570 = vpop.xlane.xlu0 %1569
    %v1571 = vsel %vm738, %v1554, 0.0
    %1572 = vadd.xlane.f32.xlu0 %v1571
    %v1573 = vpop.xlane.xlu0 %1572
    %v1574 = vsel %vm738, %v1556, 0.0
    %1575 = vadd.xlane.f32.xlu0 %v1574
    %v1576 = vpop.xlane.xlu0 %1575
    %v1577 = vsel %vm738, %v1558, 0.0
    %1578 = vadd.xlane.f32.xlu0 %v1577
    %v1579 = vpop.xlane.xlu0 %1578
    %v1580 = vsel %vm738, %v1560, 0.0
    %1581 = vadd.xlane.f32.xlu0 %v1580
    %v1582 = vpop.xlane.xlu0 %1581
    %v1583 = vsel %vm738, %v1562, 0.0
    %1584 = vadd.xlane.f32.xlu0 %v1583
    %v1585 = vpop.xlane.xlu0 %1584
    %v1586 = vsel %vm738, %v1564, 0.0
    %1587 = vadd.xlane.f32.xlu0 %v1586
    %v1588 = vpop.xlane.xlu0 %1587
    %v1589 = vrcp.pop %v1567
    %v1590 = vrcp.pop %v1570
    %v1591 = vrcp.pop %v1573
    %v1592 = vrcp.pop %v1576
    %v1593 = vrcp.pop %v1579
    %v1594 = vrcp.pop %v1582
    %v1595 = vrcp.pop %v1585
    %v1596 = vrcp.pop %v1588
    %v1597 = vmul.f32 %v1550, %v1589
    %v1598 = vmul.f32 %v1552, %v1590
    %v1599 = vmul.f32 %v1554, %v1591
    %v1600 = vmul.f32 %v1556, %v1592
    %v1601 = vmul.f32 %v1558, %v1593
    %v1602 = vmul.f32 %v1560, %v1594
    %v1603 = vmul.f32 %v1562, %v1595
    %v1604 = vmul.f32 %v1564, %v1596
    %v1605 = vsel 0, %v1427, 1.0
    %v1606 = vsel 0, %v1428, 1.0
    %v1607 = vsel 0, %v1429, 1.0
    %v1608 = vsel 0, %v1430, 1.0
    %v1609 = vsel 1, %v1431, 1.0
    %v1610 = vsel 1, %v1432, 1.0
    %v1611 = vsel 1, %v1433, 1.0
    %v1612 = vsel 1, %v1434, 1.0
    %v1613 = vmul.f32 %v1597, %v1605
    %v1614 = vmul.f32 %v1598, %v1606
    %v1615 = vmul.f32 %v1599, %v1607
    %v1616 = vmul.f32 %v1600, %v1608
    %v1617 = vmul.f32 %v1601, %v1609
    %v1618 = vmul.f32 %v1602, %v1610
    %v1619 = vmul.f32 %v1603, %v1611
    %v1620 = vmul.f32 %v1604, %v1612
    %v1621 = vpack.c.bf16 %v1613, %v1613
    %v1622 = vpack.c.bf16 %v1614, %v1614
    %v1623 = vpack.c.bf16 %v1615, %v1615
    %v1624 = vpack.c.bf16 %v1616, %v1616
    %v1625 = vpack.c.bf16 %v1617, %v1617
    %v1626 = vpack.c.bf16 %v1618, %v1618
    %v1627 = vpack.c.bf16 %v1619, %v1619
    %v1628 = vpack.c.bf16 %v1620, %v1620
    %1629 = vrot.lane.b32.xlu0 %v321, 96
    %v1630 = vpop.permute.xlu0 %1629
    %v1632 = vsel %vm738, %v1621, 0
    %vm1634 = vcmask 1043456
    %v1636 = vsel %vm1634, %v1630, 0
    %1638 = vmatprep.subr.bf16.mxu0 0
    %1639 = vmatpush1.bf16.msra.mxu0 %v1636
    %1640 = vmatprep.subr.bf16.mxu0 0
    %1641 = vmatpush1.bf16.msra.mxu0 0
    %1642 = vmatprep.subr.bf16.mxu0 0
    %1643 = vmatpush1.bf16.msra.mxu0 0
    %1644 = vmatprep.subr.bf16.mxu0 0
    %1645 = vmatpush1.bf16.msra.mxu0 0
    %1646 = vmatprep.subr.bf16.mxu0 0
    %1647 = vmatpush1.bf16.msra.mxu0 0
    %1648 = vmatprep.subr.bf16.mxu0 0
    %1649 = vmatpush1.bf16.msra.mxu0 0
    %1650 = vmatprep.subr.bf16.mxu0 0
    %1651 = vmatpush1.bf16.msra.mxu0 0
    %1652 = vmatprep.subr.bf16.mxu0 0
    %1653 = vmatpush1.bf16.msra.mxu0 0
    %1654 = vmatprep.subr.bf16.mxu0 0
    %1655 = vmatpush1.bf16.msra.mxu0 0
    %1656 = vmatprep.subr.bf16.mxu0 0
    %1657 = vmatpush1.bf16.msra.mxu0 0
    %1658 = vmatprep.subr.bf16.mxu0 0
    %1659 = vmatpush1.bf16.msra.mxu0 0
    %1660 = vmatprep.subr.bf16.mxu0 0
    %1661 = vmatpush1.bf16.msra.mxu0 0
    %1662 = vmatprep.subr.bf16.mxu0 0
    %1663 = vmatpush1.bf16.msra.mxu0 0
    %1664 = vmatprep.subr.bf16.mxu0 0
    %1665 = vmatpush1.bf16.msra.mxu0 0
    %1666 = vmatprep.subr.bf16.mxu0 0
    %1667 = vmatpush1.bf16.msra.mxu0 0
    %1668 = vmatprep.subr.bf16.mxu0 0
    %1669 = vmatpush1.bf16.msra.mxu0 0
    %1670 = vmatprep.mubr.bf16.mxu0 0
    %1671 = vmatmul.mubr.bf16.gmra.mrb[0].mxu0 %v1632
    %v1672 = vpop.f32.mrb[0].mxu0
    %v1673 = vadd.f32 0.0, %v1672
    %v1674 = vpop.f32.mrb[0].mxu0
    %v1675 = vpop.f32.mrb[0].mxu0
    %v1676 = vpop.f32.mrb[0].mxu0
    %1677 = vdwg.mxu0
    %1678 = vrot.lane.b32.xlu0 %v322, 96
    %v1679 = vpop.permute.xlu0 %1678
    %v1681 = vsel %vm738, %v1622, 0
    %v1684 = vsel %vm1634, %v1679, 0
    %1686 = vmatprep.subr.bf16.mxu0 0
    %1687 = vmatpush1.bf16.msra.mxu0 %v1684
    %1688 = vmatprep.subr.bf16.mxu0 0
    %1689 = vmatpush1.bf16.msra.mxu0 0
    %1690 = vmatprep.subr.bf16.mxu0 0
    %1691 = vmatpush1.bf16.msra.mxu0 0
    %1692 = vmatprep.subr.bf16.mxu0 0
    %1693 = vmatpush1.bf16.msra.mxu0 0
    %1694 = vmatprep.subr.bf16.mxu0 0
    %1695 = vmatpush1.bf16.msra.mxu0 0
    %1696 = vmatprep.subr.bf16.mxu0 0
    %1697 = vmatpush1.bf16.msra.mxu0 0
    %1698 = vmatprep.subr.bf16.mxu0 0
    %1699 = vmatpush1.bf16.msra.mxu0 0
    %1700 = vmatprep.subr.bf16.mxu0 0
    %1701 = vmatpush1.bf16.msra.mxu0 0
    %1702 = vmatprep.subr.bf16.mxu0 0
    %1703 = vmatpush1.bf16.msra.mxu0 0
    %1704 = vmatprep.subr.bf16.mxu0 0
    %1705 = vmatpush1.bf16.msra.mxu0 0
    %1706 = vmatprep.subr.bf16.mxu0 0
    %1707 = vmatpush1.bf16.msra.mxu0 0
    %1708 = vmatprep.subr.bf16.mxu0 0
    %1709 = vmatpush1.bf16.msra.mxu0 0
    %1710 = vmatprep.subr.bf16.mxu0 0
    %1711 = vmatpush1.bf16.msra.mxu0 0
    %1712 = vmatprep.subr.bf16.mxu0 0
    %1713 = vmatpush1.bf16.msra.mxu0 0
    %1714 = vmatprep.subr.bf16.mxu0 0
    %1715 = vmatpush1.bf16.msra.mxu0 0
    %1716 = vmatprep.subr.bf16.mxu0 0
    %1717 = vmatpush1.bf16.msra.mxu0 0
    %1718 = vmatprep.mubr.bf16.mxu0 0
    %1719 = vmatmul.mubr.bf16.gmra.mrb[0].mxu0 %v1681
    %v1720 = vpop.f32.mrb[0].mxu0
    %v1721 = vadd.f32 0.0, %v1720
    %v1722 = vpop.f32.mrb[0].mxu0
    %v1723 = vpop.f32.mrb[0].mxu0
    %v1724 = vpop.f32.mrb[0].mxu0
    %1725 = vdwg.mxu0
    %1726 = vrot.lane.b32.xlu0 %v323, 96
    %v1727 = vpop.permute.xlu0 %1726
    %v1729 = vsel %vm738, %v1623, 0
    %v1732 = vsel %vm1634, %v1727, 0
    %1734 = vmatprep.subr.bf16.mxu0 0
    %1735 = vmatpush1.bf16.msra.mxu0 %v1732
    %1736 = vmatprep.subr.bf16.mxu0 0
    %1737 = vmatpush1.bf16.msra.mxu0 0
    %1738 = vmatprep.subr.bf16.mxu0 0
    %1739 = vmatpush1.bf16.msra.mxu0 0
    %1740 = vmatprep.subr.bf16.mxu0 0
    %1741 = vmatpush1.bf16.msra.mxu0 0
    %1742 = vmatprep.subr.bf16.mxu0 0
    %1743 = vmatpush1.bf16.msra.mxu0 0
    %1744 = vmatprep.subr.bf16.mxu0 0
    %1745 = vmatpush1.bf16.msra.mxu0 0
    %1746 = vmatprep.subr.bf16.mxu0 0
    %1747 = vmatpush1.bf16.msra.mxu0 0
    %1748 = vmatprep.subr.bf16.mxu0 0
    %1749 = vmatpush1.bf16.msra.mxu0 0
    %1750 = vmatprep.subr.bf16.mxu0 0
    %1751 = vmatpush1.bf16.msra.mxu0 0
    %1752 = vmatprep.subr.bf16.mxu0 0
    %1753 = vmatpush1.bf16.msra.mxu0 0
    %1754 = vmatprep.subr.bf16.mxu0 0
    %1755 = vmatpush1.bf16.msra.mxu0 0
    %1756 = vmatprep.subr.bf16.mxu0 0
    %1757 = vmatpush1.bf16.msra.mxu0 0
    %1758 = vmatprep.subr.bf16.mxu0 0
    %1759 = vmatpush1.bf16.msra.mxu0 0
    %1760 = vmatprep.subr.bf16.mxu0 0
    %1761 = vmatpush1.bf16.msra.mxu0 0
    %1762 = vmatprep.subr.bf16.mxu0 0
    %1763 = vmatpush1.bf16.msra.mxu0 0
    %1764 = vmatprep.subr.bf16.mxu0 0
    %1765 = vmatpush1.bf16.msra.mxu0 0
    %1766 = vmatprep.mubr.bf16.mxu0 0
    %1767 = vmatmul.mubr.bf16.gmra.mrb[0].mxu0 %v1729
    %v1768 = vpop.f32.mrb[0].mxu0
    %v1769 = vadd.f32 0.0, %v1768
    %v1770 = vpop.f32.mrb[0].mxu0
    %v1771 = vpop.f32.mrb[0].mxu0
    %v1772 = vpop.f32.mrb[0].mxu0
    %1773 = vdwg.mxu0
    %1774 = vrot.lane.b32.xlu0 %v324, 96
    %v1775 = vpop.permute.xlu0 %1774
    %v1777 = vsel %vm738, %v1624, 0
    %v1780 = vsel %vm1634, %v1775, 0
    %1782 = vmatprep.subr.bf16.mxu0 0
    %1783 = vmatpush1.bf16.msra.mxu0 %v1780
    %1784 = vmatprep.subr.bf16.mxu0 0
    %1785 = vmatpush1.bf16.msra.mxu0 0
    %1786 = vmatprep.subr.bf16.mxu0 0
    %1787 = vmatpush1.bf16.msra.mxu0 0
    %1788 = vmatprep.subr.bf16.mxu0 0
    %1789 = vmatpush1.bf16.msra.mxu0 0
    %1790 = vmatprep.subr.bf16.mxu0 0
    %1791 = vmatpush1.bf16.msra.mxu0 0
    %1792 = vmatprep.subr.bf16.mxu0 0
    %1793 = vmatpush1.bf16.msra.mxu0 0
    %1794 = vmatprep.subr.bf16.mxu0 0
    %1795 = vmatpush1.bf16.msra.mxu0 0
    %1796 = vmatprep.subr.bf16.mxu0 0
    %1797 = vmatpush1.bf16.msra.mxu0 0
    %1798 = vmatprep.subr.bf16.mxu0 0
    %1799 = vmatpush1.bf16.msra.mxu0 0
    %1800 = vmatprep.subr.bf16.mxu0 0
    %1801 = vmatpush1.bf16.msra.mxu0 0
    %1802 = vmatprep.subr.bf16.mxu0 0
    %1803 = vmatpush1.bf16.msra.mxu0 0
    %1804 = vmatprep.subr.bf16.mxu0 0
    %1805 = vmatpush1.bf16.msra.mxu0 0
    %1806 = vmatprep.subr.bf16.mxu0 0
    %1807 = vmatpush1.bf16.msra.mxu0 0
    %1808 = vmatprep.subr.bf16.mxu0 0
    %1809 = vmatpush1.bf16.msra.mxu0 0
    %1810 = vmatprep.subr.bf16.mxu0 0
    %1811 = vmatpush1.bf16.msra.mxu0 0
    %1812 = vmatprep.subr.bf16.mxu0 0
    %1813 = vmatpush1.bf16.msra.mxu0 0
    %1814 = vmatprep.mubr.bf16.mxu0 0
    %1815 = vmatmul.mubr.bf16.gmra.mrb[0].mxu0 %v1777
    %v1816 = vpop.f32.mrb[0].mxu0
    %v1817 = vadd.f32 0.0, %v1816
    %v1818 = vpop.f32.mrb[0].mxu0
    %v1819 = vpop.f32.mrb[0].mxu0
    %v1820 = vpop.f32.mrb[0].mxu0
    %1821 = vdwg.mxu0
    %1822 = vrot.lane.b32.xlu0 %v325, 96
    %v1823 = vpop.permute.xlu0 %1822
    %v1825 = vsel %vm738, %v1625, 0
    %v1828 = vsel %vm1634, %v1823, 0
    %1830 = vmatprep.subr.bf16.mxu0 0
    %1831 = vmatpush1.bf16.msra.mxu0 %v1828
    %1832 = vmatprep.subr.bf16.mxu0 0
    %1833 = vmatpush1.bf16.msra.mxu0 0
    %1834 = vmatprep.subr.bf16.mxu0 0
    %1835 = vmatpush1.bf16.msra.mxu0 0
    %1836 = vmatprep.subr.bf16.mxu0 0
    %1837 = vmatpush1.bf16.msra.mxu0 0
    %1838 = vmatprep.subr.bf16.mxu0 0
    %1839 = vmatpush1.bf16.msra.mxu0 0
    %1840 = vmatprep.subr.bf16.mxu0 0
    %1841 = vmatpush1.bf16.msra.mxu0 0
    %1842 = vmatprep.subr.bf16.mxu0 0
    %1843 = vmatpush1.bf16.msra.mxu0 0
    %1844 = vmatprep.subr.bf16.mxu0 0
    %1845 = vmatpush1.bf16.msra.mxu0 0
    %1846 = vmatprep.subr.bf16.mxu0 0
    %1847 = vmatpush1.bf16.msra.mxu0 0
    %1848 = vmatprep.subr.bf16.mxu0 0
    %1849 = vmatpush1.bf16.msra.mxu0 0
    %1850 = vmatprep.subr.bf16.mxu0 0
    %1851 = vmatpush1.bf16.msra.mxu0 0
    %1852 = vmatprep.subr.bf16.mxu0 0
    %1853 = vmatpush1.bf16.msra.mxu0 0
    %1854 = vmatprep.subr.bf16.mxu0 0
    %1855 = vmatpush1.bf16.msra.mxu0 0
    %1856 = vmatprep.subr.bf16.mxu0 0
    %1857 = vmatpush1.bf16.msra.mxu0 0
    %1858 = vmatprep.subr.bf16.mxu0 0
    %1859 = vmatpush1.bf16.msra.mxu0 0
    %1860 = vmatprep.subr.bf16.mxu0 0
    %1861 = vmatpush1.bf16.msra.mxu0 0
    %1862 = vmatprep.mubr.bf16.mxu0 0
    %1863 = vmatmul.mubr.bf16.gmra.mrb[0].mxu0 %v1825
    %v1864 = vpop.f32.mrb[0].mxu0
    %v1865 = vadd.f32 0.0, %v1864
    %v1866 = vpop.f32.mrb[0].mxu0
    %v1867 = vpop.f32.mrb[0].mxu0
    %v1868 = vpop.f32.mrb[0].mxu0
    %1869 = vdwg.mxu0
    %1870 = vrot.lane.b32.xlu0 %v326, 96
    %v1871 = vpop.permute.xlu0 %1870
    %v1873 = vsel %vm738, %v1626, 0
    %v1876 = vsel %vm1634, %v1871, 0
    %1878 = vmatprep.subr.bf16.mxu0 0
    %1879 = vmatpush1.bf16.msra.mxu0 %v1876
    %1880 = vmatprep.subr.bf16.mxu0 0
    %1881 = vmatpush1.bf16.msra.mxu0 0
    %1882 = vmatprep.subr.bf16.mxu0 0
    %1883 = vmatpush1.bf16.msra.mxu0 0
    %1884 = vmatprep.subr.bf16.mxu0 0
    %1885 = vmatpush1.bf16.msra.mxu0 0
    %1886 = vmatprep.subr.bf16.mxu0 0
    %1887 = vmatpush1.bf16.msra.mxu0 0
    %1888 = vmatprep.subr.bf16.mxu0 0
    %1889 = vmatpush1.bf16.msra.mxu0 0
    %1890 = vmatprep.subr.bf16.mxu0 0
    %1891 = vmatpush1.bf16.msra.mxu0 0
    %1892 = vmatprep.subr.bf16.mxu0 0
    %1893 = vmatpush1.bf16.msra.mxu0 0
    %1894 = vmatprep.subr.bf16.mxu0 0
    %1895 = vmatpush1.bf16.msra.mxu0 0
    %1896 = vmatprep.subr.bf16.mxu0 0
    %1897 = vmatpush1.bf16.msra.mxu0 0
    %1898 = vmatprep.subr.bf16.mxu0 0
    %1899 = vmatpush1.bf16.msra.mxu0 0
    %1900 = vmatprep.subr.bf16.mxu0 0
    %1901 = vmatpush1.bf16.msra.mxu0 0
    %1902 = vmatprep.subr.bf16.mxu0 0
    %1903 = vmatpush1.bf16.msra.mxu0 0
    %1904 = vmatprep.subr.bf16.mxu0 0
    %1905 = vmatpush1.bf16.msra.mxu0 0
    %1906 = vmatprep.subr.bf16.mxu0 0
    %1907 = vmatpush1.bf16.msra.mxu0 0
    %1908 = vmatprep.subr.bf16.mxu0 0
    %1909 = vmatpush1.bf16.msra.mxu0 0
    %1910 = vmatprep.mubr.bf16.mxu0 0
    %1911 = vmatmul.mubr.bf16.gmra.mrb[0].mxu0 %v1873
    %v1912 = vpop.f32.mrb[0].mxu0
    %v1913 = vadd.f32 0.0, %v1912
    %v1914 = vpop.f32.mrb[0].mxu0
    %v1915 = vpop.f32.mrb[0].mxu0
    %v1916 = vpop.f32.mrb[0].mxu0
    %1917 = vdwg.mxu0
    %1918 = vrot.lane.b32.xlu0 %v327, 96
    %v1919 = vpop.permute.xlu0 %1918
    %v1921 = vsel %vm738, %v1627, 0
    %v1924 = vsel %vm1634, %v1919, 0
    %1926 = vmatprep.subr.bf16.mxu0 0
    %1927 = vmatpush1.bf16.msra.mxu0 %v1924
    %1928 = vmatprep.subr.bf16.mxu0 0
    %1929 = vmatpush1.bf16.msra.mxu0 0
    %1930 = vmatprep.subr.bf16.mxu0 0
    %1931 = vmatpush1.bf16.msra.mxu0 0
    %1932 = vmatprep.subr.bf16.mxu0 0
    %1933 = vmatpush1.bf16.msra.mxu0 0
    %1934 = vmatprep.subr.bf16.mxu0 0
    %1935 = vmatpush1.bf16.msra.mxu0 0
    %1936 = vmatprep.subr.bf16.mxu0 0
    %1937 = vmatpush1.bf16.msra.mxu0 0
    %1938 = vmatprep.subr.bf16.mxu0 0
    %1939 = vmatpush1.bf16.msra.mxu0 0
    %1940 = vmatprep.subr.bf16.mxu0 0
    %1941 = vmatpush1.bf16.msra.mxu0 0
    %1942 = vmatprep.subr.bf16.mxu0 0
    %1943 = vmatpush1.bf16.msra.mxu0 0
    %1944 = vmatprep.subr.bf16.mxu0 0
    %1945 = vmatpush1.bf16.msra.mxu0 0
    %1946 = vmatprep.subr.bf16.mxu0 0
    %1947 = vmatpush1.bf16.msra.mxu0 0
    %1948 = vmatprep.subr.bf16.mxu0 0
    %1949 = vmatpush1.bf16.msra.mxu0 0
    %1950 = vmatprep.subr.bf16.mxu0 0
    %1951 = vmatpush1.bf16.msra.mxu0 0
    %1952 = vmatprep.subr.bf16.mxu0 0
    %1953 = vmatpush1.bf16.msra.mxu0 0
    %1954 = vmatprep.subr.bf16.mxu0 0
    %1955 = vmatpush1.bf16.msra.mxu0 0
    %1956 = vmatprep.subr.bf16.mxu0 0
    %1957 = vmatpush1.bf16.msra.mxu0 0
    %1958 = vmatprep.mubr.bf16.mxu0 0
    %1959 = vmatmul.mubr.bf16.gmra.mrb[0].mxu0 %v1921
    %v1960 = vpop.f32.mrb[0].mxu0
    %v1961 = vadd.f32 0.0, %v1960
    %v1962 = vpop.f32.mrb[0].mxu0
    %v1963 = vpop.f32.mrb[0].mxu0
    %v1964 = vpop.f32.mrb[0].mxu0
    %1965 = vdwg.mxu0
    %1966 = vrot.lane.b32.xlu0 %v328, 96
    %v1967 = vpop.permute.xlu0 %1966
    %v1969 = vsel %vm738, %v1628, 0
    %v1972 = vsel %vm1634, %v1967, 0
    %1974 = vmatprep.subr.bf16.mxu0 0
    %1975 = vmatpush1.bf16.msra.mxu0 %v1972
    %1976 = vmatprep.subr.bf16.mxu0 0
    %1977 = vmatpush1.bf16.msra.mxu0 0
    %1978 = vmatprep.subr.bf16.mxu0 0
    %1979 = vmatpush1.bf16.msra.mxu0 0
    %1980 = vmatprep.subr.bf16.mxu0 0
    %1981 = vmatpush1.bf16.msra.mxu0 0
    %1982 = vmatprep.subr.bf16.mxu0 0
    %1983 = vmatpush1.bf16.msra.mxu0 0
    %1984 = vmatprep.subr.bf16.mxu0 0
    %1985 = vmatpush1.bf16.msra.mxu0 0
    %1986 = vmatprep.subr.bf16.mxu0 0
    %1987 = vmatpush1.bf16.msra.mxu0 0
    %1988 = vmatprep.subr.bf16.mxu0 0
    %1989 = vmatpush1.bf16.msra.mxu0 0
    %1990 = vmatprep.subr.bf16.mxu0 0
    %1991 = vmatpush1.bf16.msra.mxu0 0
    %1992 = vmatprep.subr.bf16.mxu0 0
    %1993 = vmatpush1.bf16.msra.mxu0 0
    %1994 = vmatprep.subr.bf16.mxu0 0
    %1995 = vmatpush1.bf16.msra.mxu0 0
    %1996 = vmatprep.subr.bf16.mxu0 0
    %1997 = vmatpush1.bf16.msra.mxu0 0
    %1998 = vmatprep.subr.bf16.mxu0 0
    %1999 = vmatpush1.bf16.msra.mxu0 0
    %2000 = vmatprep.subr.bf16.mxu0 0
    %2001 = vmatpush1.bf16.msra.mxu0 0
    %2002 = vmatprep.subr.bf16.mxu0 0
    %2003 = vmatpush1.bf16.msra.mxu0 0
    %2004 = vmatprep.subr.bf16.mxu0 0
    %2005 = vmatpush1.bf16.msra.mxu0 0
    %2006 = vmatprep.mubr.bf16.mxu0 0
    %2007 = vmatmul.mubr.bf16.gmra.mrb[0].mxu0 %v1969
    %v2008 = vpop.f32.mrb[0].mxu0
    %v2009 = vadd.f32 0.0, %v2008
    %v2010 = vpop.f32.mrb[0].mxu0
    %v2011 = vpop.f32.mrb[0].mxu0
    %v2012 = vpop.f32.mrb[0].mxu0
    %2013 = vdwg.mxu0
    %2016 = vrot.lane.b32.xlu0 %v1769, 16
    %v2017 = vpop.permute.xlu0 %2016
    %2018 = vrot.lane.b32.xlu0 %v1817, 16
    %v2019 = vpop.permute.xlu0 %2018
    %2024 = vrot.lane.b32.xlu0 %v1865, 32
    %v2025 = vpop.permute.xlu0 %2024
    %2026 = vrot.lane.b32.xlu0 %v1913, 32
    %v2027 = vpop.permute.xlu0 %2026
    %2032 = vrot.lane.b32.xlu0 %v1961, 48
    %v2033 = vpop.permute.xlu0 %2032
    %2034 = vrot.lane.b32.xlu0 %v2009, 48
    %v2035 = vpop.permute.xlu0 %2034
    %v2038 = vsel %vm332, %v1673, %v2017
    %v2039 = vsel %vm332, %v1721, %v2019
    %v2040 = vsel %vm86, %v2038, %v2025
    %v2041 = vsel %vm86, %v2039, %v2027
    %vm2042 = vcmask 392192
    %v2043 = vsel %vm2042, %v2040, %v2033
    %v2044 = vsel %vm2042, %v2041, %v2035
    %v2045 = vld [vmem:[#allocation9] sm:$0xff]
    %v2046 = vld [vmem:[#allocation9 + $0x8] sm:$0xff]
    %v2047 = vld [vmem:[#allocation9 + $0x10] sm:$0xff]
    %v2048 = vld [vmem:[#allocation9 + $0x18] sm:$0xff]
    %v2049 = vld [vmem:[#allocation9 + $0x20] sm:$0xff]
    %v2050 = vld [vmem:[#allocation9 + $0x28] sm:$0xff]
    %v2051 = vld [vmem:[#allocation9 + $0x30] sm:$0xff]
    %v2052 = vld [vmem:[#allocation9 + $0x38] sm:$0xff]
    %v2053 = vld [vmem:[%s6] sm:$0x3]
    %v2054 = vpack.c.bf16 %v2044, %v2043
    %v2056 = vlaneseq
    %v2057 = vshrl.u32 %v2056, 7
    %v2058 = vsub.s32 0, %v2057
    %v2059 = vrot.slane %v2053, %v2058
    %v2060 = vlaneseq
    %v2061 = vshrl.u32 %v2060, 7
    %v2062 = vsub.s32 1, %v2061
    %v2063 = vrot.slane %v2053, %v2062
    %v2074 = vunpack.c.l.b16 %v2045
    %v2075 = vunpack.c.h.b16 %v2045
    %v2076 = vunpack.c.l.b16 %v2046
    %v2077 = vunpack.c.h.b16 %v2046
    %v2078 = vunpack.c.l.b16 %v2047
    %v2079 = vunpack.c.h.b16 %v2047
    %v2080 = vunpack.c.l.b16 %v2048
    %v2081 = vunpack.c.h.b16 %v2048
    %v2082 = vunpack.c.l.b16 %v2049
    %v2083 = vunpack.c.h.b16 %v2049
    %v2084 = vunpack.c.l.b16 %v2050
    %v2085 = vunpack.c.h.b16 %v2050
    %v2086 = vunpack.c.l.b16 %v2051
    %v2087 = vunpack.c.h.b16 %v2051
    %v2088 = vunpack.c.l.b16 %v2052
    %v2089 = vunpack.c.h.b16 %v2052
    %v2090 = vpack.c.b16 %v2076, %v2074
    %v2091 = vpack.c.b16 %v2077, %v2075
    %v2092 = vpack.c.b16 %v2080, %v2078
    %v2093 = vpack.c.b16 %v2081, %v2079
    %v2094 = vpack.c.b16 %v2084, %v2082
    %v2095 = vpack.c.b16 %v2085, %v2083
    %v2096 = vpack.c.b16 %v2088, %v2086
    %v2097 = vpack.c.b16 %v2089, %v2087
    %vm2106 = vcmask 523264
    %v2108 = vsel %vm2106, %v2054, 0
    %2110 = vmatprep.subr.bf16.mxu0 %v2091
    %2111 = vmatpush1.bf16.msra.mxu0 %v2090
    %2112 = vmatprep.subr.bf16.mxu0 %v2093
    %2113 = vmatpush1.bf16.msra.mxu0 %v2092
    %2114 = vmatprep.subr.bf16.mxu0 %v2095
    %2115 = vmatpush1.bf16.msra.mxu0 %v2094
    %2116 = vmatprep.subr.bf16.mxu0 %v2097
    %2117 = vmatpush1.bf16.msra.mxu0 %v2096
    %2118 = vmatprep.subr.bf16.mxu0 0
    %2119 = vmatpush1.bf16.msra.mxu0 0
    %2120 = vmatprep.subr.bf16.mxu0 0
    %2121 = vmatpush1.bf16.msra.mxu0 0
    %2122 = vmatprep.subr.bf16.mxu0 0
    %2123 = vmatpush1.bf16.msra.mxu0 0
    %2124 = vmatprep.subr.bf16.mxu0 0
    %2125 = vmatpush1.bf16.msra.mxu0 0
    %2126 = vmatprep.subr.bf16.mxu0 0
    %2127 = vmatpush1.bf16.msra.mxu0 0
    %2128 = vmatprep.subr.bf16.mxu0 0
    %2129 = vmatpush1.bf16.msra.mxu0 0
    %2130 = vmatprep.subr.bf16.mxu0 0
    %2131 = vmatpush1.bf16.msra.mxu0 0
    %2132 = vmatprep.subr.bf16.mxu0 0
    %2133 = vmatpush1.bf16.msra.mxu0 0
    %2134 = vmatprep.subr.bf16.mxu0 0
    %2135 = vmatpush1.bf16.msra.mxu0 0
    %2136 = vmatprep.subr.bf16.mxu0 0
    %2137 = vmatpush1.bf16.msra.mxu0 0
    %2138 = vmatprep.subr.bf16.mxu0 0
    %2139 = vmatpush1.bf16.msra.mxu0 0
    %2140 = vmatprep.subr.bf16.mxu0 0
    %2141 = vmatpush1.bf16.msra.mxu0 0
    %2142 = vmatprep.mubr.bf16.mxu0 0
    %2143 = vmatmul.mubr.bf16.gmra.mrb[0].mxu0 %v2108
    %v2144 = vpop.f32.mrb[0].mxu0
    %v2145 = vadd.f32 %v2059, %v2144
    %v2146 = vpop.f32.mrb[0].mxu0
    %v2147 = vadd.f32 %v2063, %v2146
    %v2148 = vpop.f32.mrb[0].mxu0
    %v2149 = vadd.f32 %v2059, %v2148
    %v2150 = vpop.f32.mrb[0].mxu0
    %v2151 = vadd.f32 %v2063, %v2150
    %2152 = vdwg.mxu0
    %2155 = vrot.lane.b32.xlu0 %v2145, 80
    %v2156 = vpop.permute.xlu0 %2155
    %2157 = vrot.lane.b32.xlu0 %v2149, 80
    %v2158 = vpop.permute.xlu0 %2157
    %2163 = vrot.lane.b32.xlu0 %v2145, 32
    %v2164 = vpop.permute.xlu0 %2163
    %2165 = vrot.lane.b32.xlu0 %v2147, 32
    %v2166 = vpop.permute.xlu0 %2165
    %2167 = vrot.lane.b32.xlu0 %v2149, 32
    %v2168 = vpop.permute.xlu0 %2167
    %2169 = vrot.lane.b32.xlu0 %v2151, 32
    %v2170 = vpop.permute.xlu0 %2169
    %v2171 = vsel %vm86, %v2164, %v2166
    %v2172 = vsel %vm86, %v2168, %v2170
    %2175 = vrot.lane.b32.xlu0 %v2147, 112
    %v2176 = vpop.permute.xlu0 %2175
    %2177 = vrot.lane.b32.xlu0 %v2151, 112
    %v2178 = vpop.permute.xlu0 %2177
    %v2181 = vpack.c.bf16 %v2145, %v2145
    %v2182 = vpack.c.bf16 %v2149, %v2149
    %v2183 = vpack.c.bf16 %v2156, %v2156
    %v2184 = vpack.c.bf16 %v2158, %v2158
    %v2185 = vpack.c.bf16 %v2171, %v2171
    %v2186 = vpack.c.bf16 %v2172, %v2172
    %v2187 = vpack.c.bf16 %v2176, %v2176
    %v2188 = vpack.c.bf16 %v2178, %v2178
    %2190 = vrot.lane.b32.xlu0 %v2181, 112
    %v2191 = vpop.permute.xlu0 %2190
    %v2193 = vsel %vm332, %v2181, 0
    %v2196 = vsel %vm332, %v2191, 0
    %2198 = vmatprep.subr.bf16.mxu0 0
    %2199 = vmatpush1.bf16.xpose.msra.mxu0 %v2196
    %2200 = vmatprep.subr.bf16.mxu0 0
    %2201 = vmatpush1.bf16.xpose.msra.mxu0 0
    %2202 = vmatprep.subr.bf16.mxu0 0
    %2203 = vmatpush1.bf16.xpose.msra.mxu0 0
    %2204 = vmatprep.subr.bf16.mxu0 0
    %2205 = vmatpush1.bf16.xpose.msra.mxu0 0
    %2206 = vmatprep.subr.bf16.mxu0 0
    %2207 = vmatpush1.bf16.xpose.msra.mxu0 0
    %2208 = vmatprep.subr.bf16.mxu0 0
    %2209 = vmatpush1.bf16.xpose.msra.mxu0 0
    %2210 = vmatprep.subr.bf16.mxu0 0
    %2211 = vmatpush1.bf16.xpose.msra.mxu0 0
    %2212 = vmatprep.subr.bf16.mxu0 0
    %2213 = vmatpush1.bf16.xpose.msra.mxu0 0
    %2214 = vmatprep.subr.bf16.mxu0 0
    %2215 = vmatpush1.bf16.xpose.msra.mxu0 0
    %2216 = vmatprep.subr.bf16.mxu0 0
    %2217 = vmatpush1.bf16.xpose.msra.mxu0 0
    %2218 = vmatprep.subr.bf16.mxu0 0
    %2219 = vmatpush1.bf16.xpose.msra.mxu0 0
    %2220 = vmatprep.subr.bf16.mxu0 0
    %2221 = vmatpush1.bf16.xpose.msra.mxu0 0
    %2222 = vmatprep.subr.bf16.mxu0 0
    %2223 = vmatpush1.bf16.xpose.msra.mxu0 0
    %2224 = vmatprep.subr.bf16.mxu0 0
    %2225 = vmatpush1.bf16.xpose.msra.mxu0 0
    %2226 = vmatprep.subr.bf16.mxu0 0
    %2227 = vmatpush1.bf16.xpose.msra.mxu0 0
    %2228 = vmatprep.subr.bf16.mxu0 0
    %2229 = vmatpush1.bf16.xpose.msra.mxu0 0
    %2230 = vmatprep.mubr.bf16.mxu0 0
    %2231 = vmatmul.mubr.bf16.gmra.mrb[0].mxu0 %v2193
    %v2232 = vpop.f32.mrb[0].mxu0
    %v2233 = vadd.f32 0.0, %v2232
    %v2234 = vpop.f32.mrb[0].mxu0
    %v2235 = vpop.f32.mrb[0].mxu0
    %v2236 = vpop.f32.mrb[0].mxu0
    %2237 = vdwg.mxu0
    %2239 = vrot.lane.b32.xlu0 %v2182, 112
    %v2240 = vpop.permute.xlu0 %2239
    %v2242 = vsel %vm332, %v2182, 0
    %v2245 = vsel %vm332, %v2240, 0
    %2247 = vmatprep.subr.bf16.mxu0 0
    %2248 = vmatpush1.bf16.xpose.msra.mxu0 %v2245
    %2249 = vmatprep.subr.bf16.mxu0 0
    %2250 = vmatpush1.bf16.xpose.msra.mxu0 0
    %2251 = vmatprep.subr.bf16.mxu0 0
    %2252 = vmatpush1.bf16.xpose.msra.mxu0 0
    %2253 = vmatprep.subr.bf16.mxu0 0
    %2254 = vmatpush1.bf16.xpose.msra.mxu0 0
    %2255 = vmatprep.subr.bf16.mxu0 0
    %2256 = vmatpush1.bf16.xpose.msra.mxu0 0
    %2257 = vmatprep.subr.bf16.mxu0 0
    %2258 = vmatpush1.bf16.xpose.msra.mxu0 0
    %2259 = vmatprep.subr.bf16.mxu0 0
    %2260 = vmatpush1.bf16.xpose.msra.mxu0 0
    %2261 = vmatprep.subr.bf16.mxu0 0
    %2262 = vmatpush1.bf16.xpose.msra.mxu0 0
    %2263 = vmatprep.subr.bf16.mxu0 0
    %2264 = vmatpush1.bf16.xpose.msra.mxu0 0
    %2265 = vmatprep.subr.bf16.mxu0 0
    %2266 = vmatpush1.bf16.xpose.msra.mxu0 0
    %2267 = vmatprep.subr.bf16.mxu0 0
    %2268 = vmatpush1.bf16.xpose.msra.mxu0 0
    %2269 = vmatprep.subr.bf16.mxu0 0
    %2270 = vmatpush1.bf16.xpose.msra.mxu0 0
    %2271 = vmatprep.subr.bf16.mxu0 0
    %2272 = vmatpush1.bf16.xpose.msra.mxu0 0
    %2273 = vmatprep.subr.bf16.mxu0 0
    %2274 = vmatpush1.bf16.xpose.msra.mxu0 0
    %2275 = vmatprep.subr.bf16.mxu0 0
    %2276 = vmatpush1.bf16.xpose.msra.mxu0 0
    %2277 = vmatprep.subr.bf16.mxu0 0
    %2278 = vmatpush1.bf16.xpose.msra.mxu0 0
    %2279 = vmatprep.mubr.bf16.mxu0 0
    %2280 = vmatmul.mubr.bf16.gmra.mrb[0].mxu0 %v2242
    %v2281 = vpop.f32.mrb[0].mxu0
    %v2282 = vadd.f32 0.0, %v2281
    %v2283 = vpop.f32.mrb[0].mxu0
    %v2284 = vpop.f32.mrb[0].mxu0
    %v2285 = vpop.f32.mrb[0].mxu0
    %2286 = vdwg.mxu0
    %2288 = vrot.lane.b32.xlu0 %v2183, 112
    %v2289 = vpop.permute.xlu0 %2288
    %v2291 = vsel %vm332, %v2183, 0
    %v2294 = vsel %vm332, %v2289, 0
    %2296 = vmatprep.subr.bf16.mxu0 0
    %2297 = vmatpush1.bf16.xpose.msra.mxu0 %v2294
    %2298 = vmatprep.subr.bf16.mxu0 0
    %2299 = vmatpush1.bf16.xpose.msra.mxu0 0
    %2300 = vmatprep.subr.bf16.mxu0 0
    %2301 = vmatpush1.bf16.xpose.msra.mxu0 0
    %2302 = vmatprep.subr.bf16.mxu0 0
    %2303 = vmatpush1.bf16.xpose.msra.mxu0 0
    %2304 = vmatprep.subr.bf16.mxu0 0
    %2305 = vmatpush1.bf16.xpose.msra.mxu0 0
    %2306 = vmatprep.subr.bf16.mxu0 0
    %2307 = vmatpush1.bf16.xpose.msra.mxu0 0
    %2308 = vmatprep.subr.bf16.mxu0 0
    %2309 = vmatpush1.bf16.xpose.msra.mxu0 0
    %2310 = vmatprep.subr.bf16.mxu0 0
    %2311 = vmatpush1.bf16.xpose.msra.mxu0 0
    %2312 = vmatprep.subr.bf16.mxu0 0
    %2313 = vmatpush1.bf16.xpose.msra.mxu0 0
    %2314 = vmatprep.subr.bf16.mxu0 0
    %2315 = vmatpush1.bf16.xpose.msra.mxu0 0
    %2316 = vmatprep.subr.bf16.mxu0 0
    %2317 = vmatpush1.bf16.xpose.msra.mxu0 0
    %2318 = vmatprep.subr.bf16.mxu0 0
    %2319 = vmatpush1.bf16.xpose.msra.mxu0 0
    %2320 = vmatprep.subr.bf16.mxu0 0
    %2321 = vmatpush1.bf16.xpose.msra.mxu0 0
    %2322 = vmatprep.subr.bf16.mxu0 0
    %2323 = vmatpush1.bf16.xpose.msra.mxu0 0
    %2324 = vmatprep.subr.bf16.mxu0 0
    %2325 = vmatpush1.bf16.xpose.msra.mxu0 0
    %2326 = vmatprep.subr.bf16.mxu0 0
    %2327 = vmatpush1.bf16.xpose.msra.mxu0 0
    %2328 = vmatprep.mubr.bf16.mxu0 0
    %2329 = vmatmul.mubr.bf16.gmra.mrb[0].mxu0 %v2291
    %v2330 = vpop.f32.mrb[0].mxu0
    %v2331 = vadd.f32 0.0, %v2330
    %v2332 = vpop.f32.mrb[0].mxu0
    %v2333 = vpop.f32.mrb[0].mxu0
    %v2334 = vpop.f32.mrb[0].mxu0
    %2335 = vdwg.mxu0
    %2337 = vrot.lane.b32.xlu0 %v2184, 112
    %v2338 = vpop.permute.xlu0 %2337
    %v2340 = vsel %vm332, %v2184, 0
    %v2343 = vsel %vm332, %v2338, 0
    %2345 = vmatprep.subr.bf16.mxu0 0
    %2346 = vmatpush1.bf16.xpose.msra.mxu0 %v2343
    %2347 = vmatprep.subr.bf16.mxu0 0
    %2348 = vmatpush1.bf16.xpose.msra.mxu0 0
    %2349 = vmatprep.subr.bf16.mxu0 0
    %2350 = vmatpush1.bf16.xpose.msra.mxu0 0
    %2351 = vmatprep.subr.bf16.mxu0 0
    %2352 = vmatpush1.bf16.xpose.msra.mxu0 0
    %2353 = vmatprep.subr.bf16.mxu0 0
    %2354 = vmatpush1.bf16.xpose.msra.mxu0 0
    %2355 = vmatprep.subr.bf16.mxu0 0
    %2356 = vmatpush1.bf16.xpose.msra.mxu0 0
    %2357 = vmatprep.subr.bf16.mxu0 0
    %2358 = vmatpush1.bf16.xpose.msra.mxu0 0
    %2359 = vmatprep.subr.bf16.mxu0 0
    %2360 = vmatpush1.bf16.xpose.msra.mxu0 0
    %2361 = vmatprep.subr.bf16.mxu0 0
    %2362 = vmatpush1.bf16.xpose.msra.mxu0 0
    %2363 = vmatprep.subr.bf16.mxu0 0
    %2364 = vmatpush1.bf16.xpose.msra.mxu0 0
    %2365 = vmatprep.subr.bf16.mxu0 0
    %2366 = vmatpush1.bf16.xpose.msra.mxu0 0
    %2367 = vmatprep.subr.bf16.mxu0 0
    %2368 = vmatpush1.bf16.xpose.msra.mxu0 0
    %2369 = vmatprep.subr.bf16.mxu0 0
    %2370 = vmatpush1.bf16.xpose.msra.mxu0 0
    %2371 = vmatprep.subr.bf16.mxu0 0
    %2372 = vmatpush1.bf16.xpose.msra.mxu0 0
    %2373 = vmatprep.subr.bf16.mxu0 0
    %2374 = vmatpush1.bf16.xpose.msra.mxu0 0
    %2375 = vmatprep.subr.bf16.mxu0 0
    %2376 = vmatpush1.bf16.xpose.msra.mxu0 0
    %2377 = vmatprep.mubr.bf16.mxu0 0
    %2378 = vmatmul.mubr.bf16.gmra.mrb[0].mxu0 %v2340
    %v2379 = vpop.f32.mrb[0].mxu0
    %v2380 = vadd.f32 0.0, %v2379
    %v2381 = vpop.f32.mrb[0].mxu0
    %v2382 = vpop.f32.mrb[0].mxu0
    %v2383 = vpop.f32.mrb[0].mxu0
    %2384 = vdwg.mxu0
    %2386 = vrot.lane.b32.xlu0 %v2185, 112
    %v2387 = vpop.permute.xlu0 %2386
    %v2389 = vsel %vm332, %v2185, 0
    %v2392 = vsel %vm332, %v2387, 0
    %2394 = vmatprep.subr.bf16.mxu0 0
    %2395 = vmatpush1.bf16.xpose.msra.mxu0 %v2392
    %2396 = vmatprep.subr.bf16.mxu0 0
    %2397 = vmatpush1.bf16.xpose.msra.mxu0 0
    %2398 = vmatprep.subr.bf16.mxu0 0
    %2399 = vmatpush1.bf16.xpose.msra.mxu0 0
    %2400 = vmatprep.subr.bf16.mxu0 0
    %2401 = vmatpush1.bf16.xpose.msra.mxu0 0
    %2402 = vmatprep.subr.bf16.mxu0 0
    %2403 = vmatpush1.bf16.xpose.msra.mxu0 0
    %2404 = vmatprep.subr.bf16.mxu0 0
    %2405 = vmatpush1.bf16.xpose.msra.mxu0 0
    %2406 = vmatprep.subr.bf16.mxu0 0
    %2407 = vmatpush1.bf16.xpose.msra.mxu0 0
    %2408 = vmatprep.subr.bf16.mxu0 0
    %2409 = vmatpush1.bf16.xpose.msra.mxu0 0
    %2410 = vmatprep.subr.bf16.mxu0 0
    %2411 = vmatpush1.bf16.xpose.msra.mxu0 0
    %2412 = vmatprep.subr.bf16.mxu0 0
    %2413 = vmatpush1.bf16.xpose.msra.mxu0 0
    %2414 = vmatprep.subr.bf16.mxu0 0
    %2415 = vmatpush1.bf16.xpose.msra.mxu0 0
    %2416 = vmatprep.subr.bf16.mxu0 0
    %2417 = vmatpush1.bf16.xpose.msra.mxu0 0
    %2418 = vmatprep.subr.bf16.mxu0 0
    %2419 = vmatpush1.bf16.xpose.msra.mxu0 0
    %2420 = vmatprep.subr.bf16.mxu0 0
    %2421 = vmatpush1.bf16.xpose.msra.mxu0 0
    %2422 = vmatprep.subr.bf16.mxu0 0
    %2423 = vmatpush1.bf16.xpose.msra.mxu0 0
    %2424 = vmatprep.subr.bf16.mxu0 0
    %2425 = vmatpush1.bf16.xpose.msra.mxu0 0
    %2426 = vmatprep.mubr.bf16.mxu0 0
    %2427 = vmatmul.mubr.bf16.gmra.mrb[0].mxu0 %v2389
    %v2428 = vpop.f32.mrb[0].mxu0
    %v2429 = vadd.f32 0.0, %v2428
    %v2430 = vpop.f32.mrb[0].mxu0
    %v2431 = vpop.f32.mrb[0].mxu0
    %v2432 = vpop.f32.mrb[0].mxu0
    %2433 = vdwg.mxu0
    %2435 = vrot.lane.b32.xlu0 %v2186, 112
    %v2436 = vpop.permute.xlu0 %2435
    %v2438 = vsel %vm332, %v2186, 0
    %v2441 = vsel %vm332, %v2436, 0
    %2443 = vmatprep.subr.bf16.mxu0 0
    %2444 = vmatpush1.bf16.xpose.msra.mxu0 %v2441
    %2445 = vmatprep.subr.bf16.mxu0 0
    %2446 = vmatpush1.bf16.xpose.msra.mxu0 0
    %2447 = vmatprep.subr.bf16.mxu0 0
    %2448 = vmatpush1.bf16.xpose.msra.mxu0 0
    %2449 = vmatprep.subr.bf16.mxu0 0
    %2450 = vmatpush1.bf16.xpose.msra.mxu0 0
    %2451 = vmatprep.subr.bf16.mxu0 0
    %2452 = vmatpush1.bf16.xpose.msra.mxu0 0
    %2453 = vmatprep.subr.bf16.mxu0 0
    %2454 = vmatpush1.bf16.xpose.msra.mxu0 0
    %2455 = vmatprep.subr.bf16.mxu0 0
    %2456 = vmatpush1.bf16.xpose.msra.mxu0 0
    %2457 = vmatprep.subr.bf16.mxu0 0
    %2458 = vmatpush1.bf16.xpose.msra.mxu0 0
    %2459 = vmatprep.subr.bf16.mxu0 0
    %2460 = vmatpush1.bf16.xpose.msra.mxu0 0
    %2461 = vmatprep.subr.bf16.mxu0 0
    %2462 = vmatpush1.bf16.xpose.msra.mxu0 0
    %2463 = vmatprep.subr.bf16.mxu0 0
    %2464 = vmatpush1.bf16.xpose.msra.mxu0 0
    %2465 = vmatprep.subr.bf16.mxu0 0
    %2466 = vmatpush1.bf16.xpose.msra.mxu0 0
    %2467 = vmatprep.subr.bf16.mxu0 0
    %2468 = vmatpush1.bf16.xpose.msra.mxu0 0
    %2469 = vmatprep.subr.bf16.mxu0 0
    %2470 = vmatpush1.bf16.xpose.msra.mxu0 0
    %2471 = vmatprep.subr.bf16.mxu0 0
    %2472 = vmatpush1.bf16.xpose.msra.mxu0 0
    %2473 = vmatprep.subr.bf16.mxu0 0
    %2474 = vmatpush1.bf16.xpose.msra.mxu0 0
    %2475 = vmatprep.mubr.bf16.mxu0 0
    %2476 = vmatmul.mubr.bf16.gmra.mrb[0].mxu0 %v2438
    %v2477 = vpop.f32.mrb[0].mxu0
    %v2478 = vadd.f32 0.0, %v2477
    %v2479 = vpop.f32.mrb[0].mxu0
    %v2480 = vpop.f32.mrb[0].mxu0
    %v2481 = vpop.f32.mrb[0].mxu0
    %2482 = vdwg.mxu0
    %2484 = vrot.lane.b32.xlu0 %v2187, 112
    %v2485 = vpop.permute.xlu0 %2484
    %v2487 = vsel %vm332, %v2187, 0
    %v2490 = vsel %vm332, %v2485, 0
    %2492 = vmatprep.subr.bf16.mxu0 0
    %2493 = vmatpush1.bf16.xpose.msra.mxu0 %v2490
    %2494 = vmatprep.subr.bf16.mxu0 0
    %2495 = vmatpush1.bf16.xpose.msra.mxu0 0
    %2496 = vmatprep.subr.bf16.mxu0 0
    %2497 = vmatpush1.bf16.xpose.msra.mxu0 0
    %2498 = vmatprep.subr.bf16.mxu0 0
    %2499 = vmatpush1.bf16.xpose.msra.mxu0 0
    %2500 = vmatprep.subr.bf16.mxu0 0
    %2501 = vmatpush1.bf16.xpose.msra.mxu0 0
    %2502 = vmatprep.subr.bf16.mxu0 0
    %2503 = vmatpush1.bf16.xpose.msra.mxu0 0
    %2504 = vmatprep.subr.bf16.mxu0 0
    %2505 = vmatpush1.bf16.xpose.msra.mxu0 0
    %2506 = vmatprep.subr.bf16.mxu0 0
    %2507 = vmatpush1.bf16.xpose.msra.mxu0 0
    %2508 = vmatprep.subr.bf16.mxu0 0
    %2509 = vmatpush1.bf16.xpose.msra.mxu0 0
    %2510 = vmatprep.subr.bf16.mxu0 0
    %2511 = vmatpush1.bf16.xpose.msra.mxu0 0
    %2512 = vmatprep.subr.bf16.mxu0 0
    %2513 = vmatpush1.bf16.xpose.msra.mxu0 0
    %2514 = vmatprep.subr.bf16.mxu0 0
    %2515 = vmatpush1.bf16.xpose.msra.mxu0 0
    %2516 = vmatprep.subr.bf16.mxu0 0
    %2517 = vmatpush1.bf16.xpose.msra.mxu0 0
    %2518 = vmatprep.subr.bf16.mxu0 0
    %2519 = vmatpush1.bf16.xpose.msra.mxu0 0
    %2520 = vmatprep.subr.bf16.mxu0 0
    %2521 = vmatpush1.bf16.xpose.msra.mxu0 0
    %2522 = vmatprep.subr.bf16.mxu0 0
    %2523 = vmatpush1.bf16.xpose.msra.mxu0 0
    %2524 = vmatprep.mubr.bf16.mxu0 0
    %2525 = vmatmul.mubr.bf16.gmra.mrb[0].mxu0 %v2487
    %v2526 = vpop.f32.mrb[0].mxu0
    %v2527 = vadd.f32 0.0, %v2526
    %v2528 = vpop.f32.mrb[0].mxu0
    %v2529 = vpop.f32.mrb[0].mxu0
    %v2530 = vpop.f32.mrb[0].mxu0
    %2531 = vdwg.mxu0
    %2533 = vrot.lane.b32.xlu0 %v2188, 112
    %v2534 = vpop.permute.xlu0 %2533
    %v2536 = vsel %vm332, %v2188, 0
    %v2539 = vsel %vm332, %v2534, 0
    %2541 = vmatprep.subr.bf16.mxu0 0
    %2542 = vmatpush1.bf16.xpose.msra.mxu0 %v2539
    %2543 = vmatprep.subr.bf16.mxu0 0
    %2544 = vmatpush1.bf16.xpose.msra.mxu0 0
    %2545 = vmatprep.subr.bf16.mxu0 0
    %2546 = vmatpush1.bf16.xpose.msra.mxu0 0
    %2547 = vmatprep.subr.bf16.mxu0 0
    %2548 = vmatpush1.bf16.xpose.msra.mxu0 0
    %2549 = vmatprep.subr.bf16.mxu0 0
    %2550 = vmatpush1.bf16.xpose.msra.mxu0 0
    %2551 = vmatprep.subr.bf16.mxu0 0
    %2552 = vmatpush1.bf16.xpose.msra.mxu0 0
    %2553 = vmatprep.subr.bf16.mxu0 0
    %2554 = vmatpush1.bf16.xpose.msra.mxu0 0
    %2555 = vmatprep.subr.bf16.mxu0 0
    %2556 = vmatpush1.bf16.xpose.msra.mxu0 0
    %2557 = vmatprep.subr.bf16.mxu0 0
    %2558 = vmatpush1.bf16.xpose.msra.mxu0 0
    %2559 = vmatprep.subr.bf16.mxu0 0
    %2560 = vmatpush1.bf16.xpose.msra.mxu0 0
    %2561 = vmatprep.subr.bf16.mxu0 0
    %2562 = vmatpush1.bf16.xpose.msra.mxu0 0
    %2563 = vmatprep.subr.bf16.mxu0 0
    %2564 = vmatpush1.bf16.xpose.msra.mxu0 0
    %2565 = vmatprep.subr.bf16.mxu0 0
    %2566 = vmatpush1.bf16.xpose.msra.mxu0 0
    %2567 = vmatprep.subr.bf16.mxu0 0
    %2568 = vmatpush1.bf16.xpose.msra.mxu0 0
    %2569 = vmatprep.subr.bf16.mxu0 0
    %2570 = vmatpush1.bf16.xpose.msra.mxu0 0
    %2571 = vmatprep.subr.bf16.mxu0 0
    %2572 = vmatpush1.bf16.xpose.msra.mxu0 0
    %2573 = vmatprep.mubr.bf16.mxu0 0
    %2574 = vmatmul.mubr.bf16.gmra.mrb[0].mxu0 %v2536
    %v2575 = vpop.f32.mrb[0].mxu0
    %v2576 = vadd.f32 0.0, %v2575
    %v2577 = vpop.f32.mrb[0].mxu0
    %v2578 = vpop.f32.mrb[0].mxu0
    %v2579 = vpop.f32.mrb[0].mxu0
    %2580 = vdwg.mxu0
    %v2581 = vtanh.pop %v2233
    %v2582 = vtanh.pop %v2282
    %v2583 = vtanh.pop %v2331
    %v2584 = vtanh.pop %v2380
    %v2585 = vtanh.pop %v2429
    %v2586 = vtanh.pop %v2478
    %v2587 = vtanh.pop %v2527
    %v2588 = vtanh.pop %v2576
    %v2589 = vmul.f32 %v2581, 0.17677669
    %v2590 = vmul.f32 %v2582, 0.17677669
    %v2591 = vmul.f32 %v2583, 0.17677669
    %v2592 = vmul.f32 %v2584, 0.17677669
    %v2593 = vmul.f32 %v2585, 0.17677669
    %v2594 = vmul.f32 %v2586, 0.17677669
    %v2595 = vmul.f32 %v2587, 0.17677669
    %v2596 = vmul.f32 %v2588, 0.17677669
    %v2597 = vsel %vm738, %v2589, -inf
    %2598 = vmax.xlane.f32.xlu0 %v2597
    %v2599 = vpop.xlane.xlu0 %2598
    %v2600 = vsel %vm738, %v2590, -inf
    %2601 = vmax.xlane.f32.xlu0 %v2600
    %v2602 = vpop.xlane.xlu0 %2601
    %v2603 = vsel %vm738, %v2591, -inf
    %2604 = vmax.xlane.f32.xlu0 %v2603
    %v2605 = vpop.xlane.xlu0 %2604
    %v2606 = vsel %vm738, %v2592, -inf
    %2607 = vmax.xlane.f32.xlu0 %v2606
    %v2608 = vpop.xlane.xlu0 %2607
    %v2609 = vsel %vm738, %v2593, -inf
    %2610 = vmax.xlane.f32.xlu0 %v2609
    %v2611 = vpop.xlane.xlu0 %2610
    %v2612 = vsel %vm738, %v2594, -inf
    %2613 = vmax.xlane.f32.xlu0 %v2612
    %v2614 = vpop.xlane.xlu0 %2613
    %v2615 = vsel %vm738, %v2595, -inf
    %2616 = vmax.xlane.f32.xlu0 %v2615
    %v2617 = vpop.xlane.xlu0 %2616
    %v2618 = vsel %vm738, %v2596, -inf
    %2619 = vmax.xlane.f32.xlu0 %v2618
    %v2620 = vpop.xlane.xlu0 %2619
    %v2621 = vsub.f32 %v2589, %v2599
    %v2622 = vsub.f32 %v2590, %v2602
    %v2623 = vsub.f32 %v2591, %v2605
    %v2624 = vsub.f32 %v2592, %v2608
    %v2625 = vsub.f32 %v2593, %v2611
    %v2626 = vsub.f32 %v2594, %v2614
    %v2627 = vsub.f32 %v2595, %v2617
    %v2628 = vsub.f32 %v2596, %v2620
    %v2629 = vmul.f32 %v2621, 1.442695
    %v2630 = vpow.pop %v2629
    %v2631 = vmul.f32 %v2622, 1.442695
    %v2632 = vpow.pop %v2631
    %v2633 = vmul.f32 %v2623, 1.442695
    %v2634 = vpow.pop %v2633
    %v2635 = vmul.f32 %v2624, 1.442695
    %v2636 = vpow.pop %v2635
    %v2637 = vmul.f32 %v2625, 1.442695
    %v2638 = vpow.pop %v2637
    %v2639 = vmul.f32 %v2626, 1.442695
    %v2640 = vpow.pop %v2639
    %v2641 = vmul.f32 %v2627, 1.442695
    %v2642 = vpow.pop %v2641
    %v2643 = vmul.f32 %v2628, 1.442695
    %v2644 = vpow.pop %v2643
    %v2645 = vsel %vm738, %v2630, 0.0
    %2646 = vadd.xlane.f32.xlu0 %v2645
    %v2647 = vpop.xlane.xlu0 %2646
    %v2648 = vsel %vm738, %v2632, 0.0
    %2649 = vadd.xlane.f32.xlu0 %v2648
    %v2650 = vpop.xlane.xlu0 %2649
    %v2651 = vsel %vm738, %v2634, 0.0
    %2652 = vadd.xlane.f32.xlu0 %v2651
    %v2653 = vpop.xlane.xlu0 %2652
    %v2654 = vsel %vm738, %v2636, 0.0
    %2655 = vadd.xlane.f32.xlu0 %v2654
    %v2656 = vpop.xlane.xlu0 %2655
    %v2657 = vsel %vm738, %v2638, 0.0
    %2658 = vadd.xlane.f32.xlu0 %v2657
    %v2659 = vpop.xlane.xlu0 %2658
    %v2660 = vsel %vm738, %v2640, 0.0
    %2661 = vadd.xlane.f32.xlu0 %v2660
    %v2662 = vpop.xlane.xlu0 %2661
    %v2663 = vsel %vm738, %v2642, 0.0
    %2664 = vadd.xlane.f32.xlu0 %v2663
    %v2665 = vpop.xlane.xlu0 %2664
    %v2666 = vsel %vm738, %v2644, 0.0
    %2667 = vadd.xlane.f32.xlu0 %v2666
    %v2668 = vpop.xlane.xlu0 %2667
    %v2669 = vrcp.pop %v2647
    %v2670 = vrcp.pop %v2650
    %v2671 = vrcp.pop %v2653
    %v2672 = vrcp.pop %v2656
    %v2673 = vrcp.pop %v2659
    %v2674 = vrcp.pop %v2662
    %v2675 = vrcp.pop %v2665
    %v2676 = vrcp.pop %v2668
    %v2677 = vmul.f32 %v2630, %v2669
    %v2678 = vmul.f32 %v2632, %v2670
    %v2679 = vmul.f32 %v2634, %v2671
    %v2680 = vmul.f32 %v2636, %v2672
    %v2681 = vmul.f32 %v2638, %v2673
    %v2682 = vmul.f32 %v2640, %v2674
    %v2683 = vmul.f32 %v2642, %v2675
    %v2684 = vmul.f32 %v2644, %v2676
    %v2685 = vsel %vm738, %v2677, -inf
    %2686 = vmax.xlane.f32.xlu0 %v2685
    %v2687 = vpop.xlane.xlu0 %2686
    %v2688 = vsel %vm738, %v2678, -inf
    %2689 = vmax.xlane.f32.xlu0 %v2688
    %v2690 = vpop.xlane.xlu0 %2689
    %v2691 = vsel %vm738, %v2679, -inf
    %2692 = vmax.xlane.f32.xlu0 %v2691
    %v2693 = vpop.xlane.xlu0 %2692
    %v2694 = vsel %vm738, %v2680, -inf
    %2695 = vmax.xlane.f32.xlu0 %v2694
    %v2696 = vpop.xlane.xlu0 %2695
    %v2697 = vsel %vm738, %v2681, -inf
    %2698 = vmax.xlane.f32.xlu0 %v2697
    %v2699 = vpop.xlane.xlu0 %2698
    %v2700 = vsel %vm738, %v2682, -inf
    %2701 = vmax.xlane.f32.xlu0 %v2700
    %v2702 = vpop.xlane.xlu0 %2701
    %v2703 = vsel %vm738, %v2683, -inf
    %2704 = vmax.xlane.f32.xlu0 %v2703
    %v2705 = vpop.xlane.xlu0 %2704
    %v2706 = vsel %vm738, %v2684, -inf
    %2707 = vmax.xlane.f32.xlu0 %v2706
    %v2708 = vpop.xlane.xlu0 %2707
    %vm2709 = vcmp.eq.f32.partialorder %v2677, %v2687
    %vm2710 = vcmp.eq.f32.partialorder %v2678, %v2690
    %vm2711 = vcmp.eq.f32.partialorder %v2679, %v2693
    %vm2712 = vcmp.eq.f32.partialorder %v2680, %v2696
    %vm2713 = vcmp.eq.f32.partialorder %v2681, %v2699
    %vm2714 = vcmp.eq.f32.partialorder %v2682, %v2702
    %vm2715 = vcmp.eq.f32.partialorder %v2683, %v2705
    %vm2716 = vcmp.eq.f32.partialorder %v2684, %v2708
    %v2717 = vsel %vm2709, %v205, 8
    %v2718 = vsel %vm2710, %v205, 8
    %v2719 = vsel %vm2711, %v205, 8
    %v2720 = vsel %vm2712, %v205, 8
    %v2721 = vsel %vm2713, %v205, 8
    %v2722 = vsel %vm2714, %v205, 8
    %v2723 = vsel %vm2715, %v205, 8
    %v2724 = vsel %vm2716, %v205, 8
    %v2725 = vsel %vm738, %v2717, 2147483647
    %v2726 = vand.u32 %v2725, 65535
    %v2727 = vshra.s32 %v2725, 16
    %v2728 = vcvt.s32.f32 %v2726
    %v2729 = vcvt.s32.f32 %v2727
    %2730 = vmin.xlane.f32.xlu0 %v2729
    %v2731 = vpop.xlane.xlu0 %2730
    %vm2732 = vcmp.eq.f32.partialorder %v2729, %v2731
    %v2733 = vsel %vm2732, %v2728, inf
    %2734 = vmin.xlane.f32.xlu0 %v2733
    %v2735 = vpop.xlane.xlu0 %2734
    %v2736 = vcvt.f32.s32 %v2735
    %v2737 = vcvt.f32.s32 %v2731
    %v2738 = vshll.u32 %v2737, 16
    %v2739 = vadd.s32 %v2738, %v2736
    %v2740 = vsel %vm738, %v2718, 2147483647
    %v2741 = vand.u32 %v2740, 65535
    %v2742 = vshra.s32 %v2740, 16
    %v2743 = vcvt.s32.f32 %v2741
    %v2744 = vcvt.s32.f32 %v2742
    %2745 = vmin.xlane.f32.xlu0 %v2744
    %v2746 = vpop.xlane.xlu0 %2745
    %vm2747 = vcmp.eq.f32.partialorder %v2744, %v2746
    %v2748 = vsel %vm2747, %v2743, inf
    %2749 = vmin.xlane.f32.xlu0 %v2748
    %v2750 = vpop.xlane.xlu0 %2749
    %v2751 = vcvt.f32.s32 %v2750
    %v2752 = vcvt.f32.s32 %v2746
    %v2753 = vshll.u32 %v2752, 16
    %v2754 = vadd.s32 %v2753, %v2751
    %v2755 = vsel %vm738, %v2719, 2147483647
    %v2756 = vand.u32 %v2755, 65535
    %v2757 = vshra.s32 %v2755, 16
    %v2758 = vcvt.s32.f32 %v2756
    %v2759 = vcvt.s32.f32 %v2757
    %2760 = vmin.xlane.f32.xlu0 %v2759
    %v2761 = vpop.xlane.xlu0 %2760
    %vm2762 = vcmp.eq.f32.partialorder %v2759, %v2761
    %v2763 = vsel %vm2762, %v2758, inf
    %2764 = vmin.xlane.f32.xlu0 %v2763
    %v2765 = vpop.xlane.xlu0 %2764
    %v2766 = vcvt.f32.s32 %v2765
    %v2767 = vcvt.f32.s32 %v2761
    %v2768 = vshll.u32 %v2767, 16
    %v2769 = vadd.s32 %v2768, %v2766
    %v2770 = vsel %vm738, %v2720, 2147483647
    %v2771 = vand.u32 %v2770, 65535
    %v2772 = vshra.s32 %v2770, 16
    %v2773 = vcvt.s32.f32 %v2771
    %v2774 = vcvt.s32.f32 %v2772
    %2775 = vmin.xlane.f32.xlu0 %v2774
    %v2776 = vpop.xlane.xlu0 %2775
    %vm2777 = vcmp.eq.f32.partialorder %v2774, %v2776
    %v2778 = vsel %vm2777, %v2773, inf
    %2779 = vmin.xlane.f32.xlu0 %v2778
    %v2780 = vpop.xlane.xlu0 %2779
    %v2781 = vcvt.f32.s32 %v2780
    %v2782 = vcvt.f32.s32 %v2776
    %v2783 = vshll.u32 %v2782, 16
    %v2784 = vadd.s32 %v2783, %v2781
    %v2785 = vsel %vm738, %v2721, 2147483647
    %v2786 = vand.u32 %v2785, 65535
    %v2787 = vshra.s32 %v2785, 16
    %v2788 = vcvt.s32.f32 %v2786
    %v2789 = vcvt.s32.f32 %v2787
    %2790 = vmin.xlane.f32.xlu0 %v2789
    %v2791 = vpop.xlane.xlu0 %2790
    %vm2792 = vcmp.eq.f32.partialorder %v2789, %v2791
    %v2793 = vsel %vm2792, %v2788, inf
    %2794 = vmin.xlane.f32.xlu0 %v2793
    %v2795 = vpop.xlane.xlu0 %2794
    %v2796 = vcvt.f32.s32 %v2795
    %v2797 = vcvt.f32.s32 %v2791
    %v2798 = vshll.u32 %v2797, 16
    %v2799 = vadd.s32 %v2798, %v2796
    %v2800 = vsel %vm738, %v2722, 2147483647
    %v2801 = vand.u32 %v2800, 65535
    %v2802 = vshra.s32 %v2800, 16
    %v2803 = vcvt.s32.f32 %v2801
    %v2804 = vcvt.s32.f32 %v2802
    %2805 = vmin.xlane.f32.xlu0 %v2804
    %v2806 = vpop.xlane.xlu0 %2805
    %vm2807 = vcmp.eq.f32.partialorder %v2804, %v2806
    %v2808 = vsel %vm2807, %v2803, inf
    %2809 = vmin.xlane.f32.xlu0 %v2808
    %v2810 = vpop.xlane.xlu0 %2809
    %v2811 = vcvt.f32.s32 %v2810
    %v2812 = vcvt.f32.s32 %v2806
    %v2813 = vshll.u32 %v2812, 16
    %v2814 = vadd.s32 %v2813, %v2811
    %v2815 = vsel %vm738, %v2723, 2147483647
    %v2816 = vand.u32 %v2815, 65535
    %v2817 = vshra.s32 %v2815, 16
    %v2818 = vcvt.s32.f32 %v2816
    %v2819 = vcvt.s32.f32 %v2817
    %2820 = vmin.xlane.f32.xlu0 %v2819
    %v2821 = vpop.xlane.xlu0 %2820
    %vm2822 = vcmp.eq.f32.partialorder %v2819, %v2821
    %v2823 = vsel %vm2822, %v2818, inf
    %2824 = vmin.xlane.f32.xlu0 %v2823
    %v2825 = vpop.xlane.xlu0 %2824
    %v2826 = vcvt.f32.s32 %v2825
    %v2827 = vcvt.f32.s32 %v2821
    %v2828 = vshll.u32 %v2827, 16
    %v2829 = vadd.s32 %v2828, %v2826
    %v2830 = vsel %vm738, %v2724, 2147483647
    %v2831 = vand.u32 %v2830, 65535
    %v2832 = vshra.s32 %v2830, 16
    %v2833 = vcvt.s32.f32 %v2831
    %v2834 = vcvt.s32.f32 %v2832
    %2835 = vmin.xlane.f32.xlu0 %v2834
    %v2836 = vpop.xlane.xlu0 %2835
    %vm2837 = vcmp.eq.f32.partialorder %v2834, %v2836
    %v2838 = vsel %vm2837, %v2833, inf
    %2839 = vmin.xlane.f32.xlu0 %v2838
    %v2840 = vpop.xlane.xlu0 %2839
    %v2841 = vcvt.f32.s32 %v2840
    %v2842 = vcvt.f32.s32 %v2836
    %v2843 = vshll.u32 %v2842, 16
    %v2844 = vadd.s32 %v2843, %v2841
    %vm2845 = vcmp.eq.s32.totalorder %v205, %v2739
    %vm2846 = vcmp.eq.s32.totalorder %v205, %v2754
    %vm2847 = vcmp.eq.s32.totalorder %v205, %v2769
    %vm2848 = vcmp.eq.s32.totalorder %v205, %v2784
    %vm2849 = vcmp.eq.s32.totalorder %v205, %v2799
    %vm2850 = vcmp.eq.s32.totalorder %v205, %v2814
    %vm2851 = vcmp.eq.s32.totalorder %v205, %v2829
    %vm2852 = vcmp.eq.s32.totalorder %v205, %v2844
    %v2853 = vsel %vm2845, 1, 0
    %v2854 = vsel %vm2846, 1, 0
    %v2855 = vsel %vm2847, 1, 0
    %v2856 = vsel %vm2848, 1, 0
    %v2857 = vsel %vm2849, 1, 0
    %v2858 = vsel %vm2850, 1, 0
    %v2859 = vsel %vm2851, 1, 0
    %v2860 = vsel %vm2852, 1, 0
    %v2861 = vcvt.s32.f32 %v2853
    %v2862 = vcvt.s32.f32 %v2854
    %v2863 = vcvt.s32.f32 %v2855
    %v2864 = vcvt.s32.f32 %v2856
    %v2865 = vcvt.s32.f32 %v2857
    %v2866 = vcvt.s32.f32 %v2858
    %v2867 = vcvt.s32.f32 %v2859
    %v2868 = vcvt.s32.f32 %v2860
    %v2869 = vmul.f32 %v2677, %v2861
    %v2870 = vmul.f32 %v2678, %v2862
    %v2871 = vmul.f32 %v2679, %v2863
    %v2872 = vmul.f32 %v2680, %v2864
    %v2873 = vmul.f32 %v2681, %v2865
    %v2874 = vmul.f32 %v2682, %v2866
    %v2875 = vmul.f32 %v2683, %v2867
    %v2876 = vmul.f32 %v2684, %v2868
    %v2877 = vadd.f32 %v2869, 0.0
    %v2878 = vadd.f32 %v2870, 0.0
    %v2879 = vadd.f32 %v2871, 0.0
    %v2880 = vadd.f32 %v2872, 0.0
    %v2881 = vadd.f32 %v2873, 0.0
    %v2882 = vadd.f32 %v2874, 0.0
    %v2883 = vadd.f32 %v2875, 0.0
    %v2884 = vadd.f32 %v2876, 0.0
    %v2885 = vsub.f32 %v2677, %v2869
    %v2886 = vsub.f32 %v2678, %v2870
    %v2887 = vsub.f32 %v2679, %v2871
    %v2888 = vsub.f32 %v2680, %v2872
    %v2889 = vsub.f32 %v2681, %v2873
    %v2890 = vsub.f32 %v2682, %v2874
    %v2891 = vsub.f32 %v2683, %v2875
    %v2892 = vsub.f32 %v2684, %v2876
    %v2893 = vsel %vm738, %v2885, -inf
    %2894 = vmax.xlane.f32.xlu0 %v2893
    %v2895 = vpop.xlane.xlu0 %2894
    %v2896 = vsel %vm738, %v2886, -inf
    %2897 = vmax.xlane.f32.xlu0 %v2896
    %v2898 = vpop.xlane.xlu0 %2897
    %v2899 = vsel %vm738, %v2887, -inf
    %2900 = vmax.xlane.f32.xlu0 %v2899
    %v2901 = vpop.xlane.xlu0 %2900
    %v2902 = vsel %vm738, %v2888, -inf
    %2903 = vmax.xlane.f32.xlu0 %v2902
    %v2904 = vpop.xlane.xlu0 %2903
    %v2905 = vsel %vm738, %v2889, -inf
    %2906 = vmax.xlane.f32.xlu0 %v2905
    %v2907 = vpop.xlane.xlu0 %2906
    %v2908 = vsel %vm738, %v2890, -inf
    %2909 = vmax.xlane.f32.xlu0 %v2908
    %v2910 = vpop.xlane.xlu0 %2909
    %v2911 = vsel %vm738, %v2891, -inf
    %2912 = vmax.xlane.f32.xlu0 %v2911
    %v2913 = vpop.xlane.xlu0 %2912
    %v2914 = vsel %vm738, %v2892, -inf
    %2915 = vmax.xlane.f32.xlu0 %v2914
    %v2916 = vpop.xlane.xlu0 %2915
    %vm2917 = vcmp.eq.f32.partialorder %v2885, %v2895
    %vm2918 = vcmp.eq.f32.partialorder %v2886, %v2898
    %vm2919 = vcmp.eq.f32.partialorder %v2887, %v2901
    %vm2920 = vcmp.eq.f32.partialorder %v2888, %v2904
    %vm2921 = vcmp.eq.f32.partialorder %v2889, %v2907
    %vm2922 = vcmp.eq.f32.partialorder %v2890, %v2910
    %vm2923 = vcmp.eq.f32.partialorder %v2891, %v2913
    %vm2924 = vcmp.eq.f32.partialorder %v2892, %v2916
    %v2925 = vsel %vm2917, %v205, 8
    %v2926 = vsel %vm2918, %v205, 8
    %v2927 = vsel %vm2919, %v205, 8
    %v2928 = vsel %vm2920, %v205, 8
    %v2929 = vsel %vm2921, %v205, 8
    %v2930 = vsel %vm2922, %v205, 8
    %v2931 = vsel %vm2923, %v205, 8
    %v2932 = vsel %vm2924, %v205, 8
    %v2933 = vsel %vm738, %v2925, 2147483647
    %v2934 = vand.u32 %v2933, 65535
    %v2935 = vshra.s32 %v2933, 16
    %v2936 = vcvt.s32.f32 %v2934
    %v2937 = vcvt.s32.f32 %v2935
    %2938 = vmin.xlane.f32.xlu0 %v2937
    %v2939 = vpop.xlane.xlu0 %2938
    %vm2940 = vcmp.eq.f32.partialorder %v2937, %v2939
    %v2941 = vsel %vm2940, %v2936, inf
    %2942 = vmin.xlane.f32.xlu0 %v2941
    %v2943 = vpop.xlane.xlu0 %2942
    %v2944 = vcvt.f32.s32 %v2943
    %v2945 = vcvt.f32.s32 %v2939
    %v2946 = vshll.u32 %v2945, 16
    %v2947 = vadd.s32 %v2946, %v2944
    %v2948 = vsel %vm738, %v2926, 2147483647
    %v2949 = vand.u32 %v2948, 65535
    %v2950 = vshra.s32 %v2948, 16
    %v2951 = vcvt.s32.f32 %v2949
    %v2952 = vcvt.s32.f32 %v2950
    %2953 = vmin.xlane.f32.xlu0 %v2952
    %v2954 = vpop.xlane.xlu0 %2953
    %vm2955 = vcmp.eq.f32.partialorder %v2952, %v2954
    %v2956 = vsel %vm2955, %v2951, inf
    %2957 = vmin.xlane.f32.xlu0 %v2956
    %v2958 = vpop.xlane.xlu0 %2957
    %v2959 = vcvt.f32.s32 %v2958
    %v2960 = vcvt.f32.s32 %v2954
    %v2961 = vshll.u32 %v2960, 16
    %v2962 = vadd.s32 %v2961, %v2959
    %v2963 = vsel %vm738, %v2927, 2147483647
    %v2964 = vand.u32 %v2963, 65535
    %v2965 = vshra.s32 %v2963, 16
    %v2966 = vcvt.s32.f32 %v2964
    %v2967 = vcvt.s32.f32 %v2965
    %2968 = vmin.xlane.f32.xlu0 %v2967
    %v2969 = vpop.xlane.xlu0 %2968
    %vm2970 = vcmp.eq.f32.partialorder %v2967, %v2969
    %v2971 = vsel %vm2970, %v2966, inf
    %2972 = vmin.xlane.f32.xlu0 %v2971
    %v2973 = vpop.xlane.xlu0 %2972
    %v2974 = vcvt.f32.s32 %v2973
    %v2975 = vcvt.f32.s32 %v2969
    %v2976 = vshll.u32 %v2975, 16
    %v2977 = vadd.s32 %v2976, %v2974
    %v2978 = vsel %vm738, %v2928, 2147483647
    %v2979 = vand.u32 %v2978, 65535
    %v2980 = vshra.s32 %v2978, 16
    %v2981 = vcvt.s32.f32 %v2979
    %v2982 = vcvt.s32.f32 %v2980
    %2983 = vmin.xlane.f32.xlu0 %v2982
    %v2984 = vpop.xlane.xlu0 %2983
    %vm2985 = vcmp.eq.f32.partialorder %v2982, %v2984
    %v2986 = vsel %vm2985, %v2981, inf
    %2987 = vmin.xlane.f32.xlu0 %v2986
    %v2988 = vpop.xlane.xlu0 %2987
    %v2989 = vcvt.f32.s32 %v2988
    %v2990 = vcvt.f32.s32 %v2984
    %v2991 = vshll.u32 %v2990, 16
    %v2992 = vadd.s32 %v2991, %v2989
    %v2993 = vsel %vm738, %v2929, 2147483647
    %v2994 = vand.u32 %v2993, 65535
    %v2995 = vshra.s32 %v2993, 16
    %v2996 = vcvt.s32.f32 %v2994
    %v2997 = vcvt.s32.f32 %v2995
    %2998 = vmin.xlane.f32.xlu0 %v2997
    %v2999 = vpop.xlane.xlu0 %2998
    %vm3000 = vcmp.eq.f32.partialorder %v2997, %v2999
    %v3001 = vsel %vm3000, %v2996, inf
    %3002 = vmin.xlane.f32.xlu0 %v3001
    %v3003 = vpop.xlane.xlu0 %3002
    %v3004 = vcvt.f32.s32 %v3003
    %v3005 = vcvt.f32.s32 %v2999
    %v3006 = vshll.u32 %v3005, 16
    %v3007 = vadd.s32 %v3006, %v3004
    %v3008 = vsel %vm738, %v2930, 2147483647
    %v3009 = vand.u32 %v3008, 65535
    %v3010 = vshra.s32 %v3008, 16
    %v3011 = vcvt.s32.f32 %v3009
    %v3012 = vcvt.s32.f32 %v3010
    %3013 = vmin.xlane.f32.xlu0 %v3012
    %v3014 = vpop.xlane.xlu0 %3013
    %vm3015 = vcmp.eq.f32.partialorder %v3012, %v3014
    %v3016 = vsel %vm3015, %v3011, inf
    %3017 = vmin.xlane.f32.xlu0 %v3016
    %v3018 = vpop.xlane.xlu0 %3017
    %v3019 = vcvt.f32.s32 %v3018
    %v3020 = vcvt.f32.s32 %v3014
    %v3021 = vshll.u32 %v3020, 16
    %v3022 = vadd.s32 %v3021, %v3019
    %v3023 = vsel %vm738, %v2931, 2147483647
    %v3024 = vand.u32 %v3023, 65535
    %v3025 = vshra.s32 %v3023, 16
    %v3026 = vcvt.s32.f32 %v3024
    %v3027 = vcvt.s32.f32 %v3025
    %3028 = vmin.xlane.f32.xlu0 %v3027
    %v3029 = vpop.xlane.xlu0 %3028
    %vm3030 = vcmp.eq.f32.partialorder %v3027, %v3029
    %v3031 = vsel %vm3030, %v3026, inf
    %3032 = vmin.xlane.f32.xlu0 %v3031
    %v3033 = vpop.xlane.xlu0 %3032
    %v3034 = vcvt.f32.s32 %v3033
    %v3035 = vcvt.f32.s32 %v3029
    %v3036 = vshll.u32 %v3035, 16
    %v3037 = vadd.s32 %v3036, %v3034
    %v3038 = vsel %vm738, %v2932, 2147483647
    %v3039 = vand.u32 %v3038, 65535
    %v3040 = vshra.s32 %v3038, 16
    %v3041 = vcvt.s32.f32 %v3039
    %v3042 = vcvt.s32.f32 %v3040
    %3043 = vmin.xlane.f32.xlu0 %v3042
    %v3044 = vpop.xlane.xlu0 %3043
    %vm3045 = vcmp.eq.f32.partialorder %v3042, %v3044
    %v3046 = vsel %vm3045, %v3041, inf
    %3047 = vmin.xlane.f32.xlu0 %v3046
    %v3048 = vpop.xlane.xlu0 %3047
    %v3049 = vcvt.f32.s32 %v3048
    %v3050 = vcvt.f32.s32 %v3044
    %v3051 = vshll.u32 %v3050, 16
    %v3052 = vadd.s32 %v3051, %v3049
    %vm3053 = vcmp.eq.s32.totalorder %v205, %v2947
    %vm3054 = vcmp.eq.s32.totalorder %v205, %v2962
    %vm3055 = vcmp.eq.s32.totalorder %v205, %v2977
    %vm3056 = vcmp.eq.s32.totalorder %v205, %v2992
    %vm3057 = vcmp.eq.s32.totalorder %v205, %v3007
    %vm3058 = vcmp.eq.s32.totalorder %v205, %v3022
    %vm3059 = vcmp.eq.s32.totalorder %v205, %v3037
    %vm3060 = vcmp.eq.s32.totalorder %v205, %v3052
    %v3061 = vsel %vm3053, 1, 0
    %v3062 = vsel %vm3054, 1, 0
    %v3063 = vsel %vm3055, 1, 0
    %v3064 = vsel %vm3056, 1, 0
    %v3065 = vsel %vm3057, 1, 0
    %v3066 = vsel %vm3058, 1, 0
    %v3067 = vsel %vm3059, 1, 0
    %v3068 = vsel %vm3060, 1, 0
    %v3069 = vcvt.s32.f32 %v3061
    %v3070 = vcvt.s32.f32 %v3062
    %v3071 = vcvt.s32.f32 %v3063
    %v3072 = vcvt.s32.f32 %v3064
    %v3073 = vcvt.s32.f32 %v3065
    %v3074 = vcvt.s32.f32 %v3066
    %v3075 = vcvt.s32.f32 %v3067
    %v3076 = vcvt.s32.f32 %v3068
    %v3077 = vmul.f32 %v2677, %v3069
    %v3078 = vmul.f32 %v2678, %v3070
    %v3079 = vmul.f32 %v2679, %v3071
    %v3080 = vmul.f32 %v2680, %v3072
    %v3081 = vmul.f32 %v2681, %v3073
    %v3082 = vmul.f32 %v2682, %v3074
    %v3083 = vmul.f32 %v2683, %v3075
    %v3084 = vmul.f32 %v2684, %v3076
    %v3085 = vadd.f32 %v2877, %v3077
    %v3086 = vadd.f32 %v2878, %v3078
    %v3087 = vadd.f32 %v2879, %v3079
    %v3088 = vadd.f32 %v2880, %v3080
    %v3089 = vadd.f32 %v2881, %v3081
    %v3090 = vadd.f32 %v2882, %v3082
    %v3091 = vadd.f32 %v2883, %v3083
    %v3092 = vadd.f32 %v2884, %v3084
    %v3093 = vsel %vm738, %v2677, inf
    %3094 = vmin.xlane.f32.xlu0 %v3093
    %v3095 = vpop.xlane.xlu0 %3094
    %v3096 = vsel %vm738, %v2678, inf
    %3097 = vmin.xlane.f32.xlu0 %v3096
    %v3098 = vpop.xlane.xlu0 %3097
    %v3099 = vsel %vm738, %v2679, inf
    %3100 = vmin.xlane.f32.xlu0 %v3099
    %v3101 = vpop.xlane.xlu0 %3100
    %v3102 = vsel %vm738, %v2680, inf
    %3103 = vmin.xlane.f32.xlu0 %v3102
    %v3104 = vpop.xlane.xlu0 %3103
    %v3105 = vsel %vm738, %v2681, inf
    %3106 = vmin.xlane.f32.xlu0 %v3105
    %v3107 = vpop.xlane.xlu0 %3106
    %v3108 = vsel %vm738, %v2682, inf
    %3109 = vmin.xlane.f32.xlu0 %v3108
    %v3110 = vpop.xlane.xlu0 %3109
    %v3111 = vsel %vm738, %v2683, inf
    %3112 = vmin.xlane.f32.xlu0 %v3111
    %v3113 = vpop.xlane.xlu0 %3112
    %v3114 = vsel %vm738, %v2684, inf
    %3115 = vmin.xlane.f32.xlu0 %v3114
    %v3116 = vpop.xlane.xlu0 %3115
    %vm3117 = vcmp.eq.f32.partialorder %v2677, %v3095
    %vm3118 = vcmp.eq.f32.partialorder %v2678, %v3098
    %vm3119 = vcmp.eq.f32.partialorder %v2679, %v3101
    %vm3120 = vcmp.eq.f32.partialorder %v2680, %v3104
    %vm3121 = vcmp.eq.f32.partialorder %v2681, %v3107
    %vm3122 = vcmp.eq.f32.partialorder %v2682, %v3110
    %vm3123 = vcmp.eq.f32.partialorder %v2683, %v3113
    %vm3124 = vcmp.eq.f32.partialorder %v2684, %v3116
    %v3125 = vsel %vm3117, %v205, 8
    %v3126 = vsel %vm3118, %v205, 8
    %v3127 = vsel %vm3119, %v205, 8
    %v3128 = vsel %vm3120, %v205, 8
    %v3129 = vsel %vm3121, %v205, 8
    %v3130 = vsel %vm3122, %v205, 8
    %v3131 = vsel %vm3123, %v205, 8
    %v3132 = vsel %vm3124, %v205, 8
    %v3133 = vsel %vm738, %v3125, 2147483647
    %v3134 = vand.u32 %v3133, 65535
    %v3135 = vshra.s32 %v3133, 16
    %v3136 = vcvt.s32.f32 %v3134
    %v3137 = vcvt.s32.f32 %v3135
    %3138 = vmin.xlane.f32.xlu0 %v3137
    %v3139 = vpop.xlane.xlu0 %3138
    %vm3140 = vcmp.eq.f32.partialorder %v3137, %v3139
    %v3141 = vsel %vm3140, %v3136, inf
    %3142 = vmin.xlane.f32.xlu0 %v3141
    %v3143 = vpop.xlane.xlu0 %3142
    %v3144 = vcvt.f32.s32 %v3143
    %v3145 = vcvt.f32.s32 %v3139
    %v3146 = vshll.u32 %v3145, 16
    %v3147 = vadd.s32 %v3146, %v3144
    %v3148 = vsel %vm738, %v3126, 2147483647
    %v3149 = vand.u32 %v3148, 65535
    %v3150 = vshra.s32 %v3148, 16
    %v3151 = vcvt.s32.f32 %v3149
    %v3152 = vcvt.s32.f32 %v3150
    %3153 = vmin.xlane.f32.xlu0 %v3152
    %v3154 = vpop.xlane.xlu0 %3153
    %vm3155 = vcmp.eq.f32.partialorder %v3152, %v3154
    %v3156 = vsel %vm3155, %v3151, inf
    %3157 = vmin.xlane.f32.xlu0 %v3156
    %v3158 = vpop.xlane.xlu0 %3157
    %v3159 = vcvt.f32.s32 %v3158
    %v3160 = vcvt.f32.s32 %v3154
    %v3161 = vshll.u32 %v3160, 16
    %v3162 = vadd.s32 %v3161, %v3159
    %v3163 = vsel %vm738, %v3127, 2147483647
    %v3164 = vand.u32 %v3163, 65535
    %v3165 = vshra.s32 %v3163, 16
    %v3166 = vcvt.s32.f32 %v3164
    %v3167 = vcvt.s32.f32 %v3165
    %3168 = vmin.xlane.f32.xlu0 %v3167
    %v3169 = vpop.xlane.xlu0 %3168
    %vm3170 = vcmp.eq.f32.partialorder %v3167, %v3169
    %v3171 = vsel %vm3170, %v3166, inf
    %3172 = vmin.xlane.f32.xlu0 %v3171
    %v3173 = vpop.xlane.xlu0 %3172
    %v3174 = vcvt.f32.s32 %v3173
    %v3175 = vcvt.f32.s32 %v3169
    %v3176 = vshll.u32 %v3175, 16
    %v3177 = vadd.s32 %v3176, %v3174
    %v3178 = vsel %vm738, %v3128, 2147483647
    %v3179 = vand.u32 %v3178, 65535
    %v3180 = vshra.s32 %v3178, 16
    %v3181 = vcvt.s32.f32 %v3179
    %v3182 = vcvt.s32.f32 %v3180
    %3183 = vmin.xlane.f32.xlu0 %v3182
    %v3184 = vpop.xlane.xlu0 %3183
    %vm3185 = vcmp.eq.f32.partialorder %v3182, %v3184
    %v3186 = vsel %vm3185, %v3181, inf
    %3187 = vmin.xlane.f32.xlu0 %v3186
    %v3188 = vpop.xlane.xlu0 %3187
    %v3189 = vcvt.f32.s32 %v3188
    %v3190 = vcvt.f32.s32 %v3184
    %v3191 = vshll.u32 %v3190, 16
    %v3192 = vadd.s32 %v3191, %v3189
    %v3193 = vsel %vm738, %v3129, 2147483647
    %v3194 = vand.u32 %v3193, 65535
    %v3195 = vshra.s32 %v3193, 16
    %v3196 = vcvt.s32.f32 %v3194
    %v3197 = vcvt.s32.f32 %v3195
    %3198 = vmin.xlane.f32.xlu0 %v3197
    %v3199 = vpop.xlane.xlu0 %3198
    %vm3200 = vcmp.eq.f32.partialorder %v3197, %v3199
    %v3201 = vsel %vm3200, %v3196, inf
    %3202 = vmin.xlane.f32.xlu0 %v3201
    %v3203 = vpop.xlane.xlu0 %3202
    %v3204 = vcvt.f32.s32 %v3203
    %v3205 = vcvt.f32.s32 %v3199
    %v3206 = vshll.u32 %v3205, 16
    %v3207 = vadd.s32 %v3206, %v3204
    %v3208 = vsel %vm738, %v3130, 2147483647
    %v3209 = vand.u32 %v3208, 65535
    %v3210 = vshra.s32 %v3208, 16
    %v3211 = vcvt.s32.f32 %v3209
    %v3212 = vcvt.s32.f32 %v3210
    %3213 = vmin.xlane.f32.xlu0 %v3212
    %v3214 = vpop.xlane.xlu0 %3213
    %vm3215 = vcmp.eq.f32.partialorder %v3212, %v3214
    %v3216 = vsel %vm3215, %v3211, inf
    %3217 = vmin.xlane.f32.xlu0 %v3216
    %v3218 = vpop.xlane.xlu0 %3217
    %v3219 = vcvt.f32.s32 %v3218
    %v3220 = vcvt.f32.s32 %v3214
    %v3221 = vshll.u32 %v3220, 16
    %v3222 = vadd.s32 %v3221, %v3219
    %v3223 = vsel %vm738, %v3131, 2147483647
    %v3224 = vand.u32 %v3223, 65535
    %v3225 = vshra.s32 %v3223, 16
    %v3226 = vcvt.s32.f32 %v3224
    %v3227 = vcvt.s32.f32 %v3225
    %3228 = vmin.xlane.f32.xlu0 %v3227
    %v3229 = vpop.xlane.xlu0 %3228
    %vm3230 = vcmp.eq.f32.partialorder %v3227, %v3229
    %v3231 = vsel %vm3230, %v3226, inf
    %3232 = vmin.xlane.f32.xlu0 %v3231
    %v3233 = vpop.xlane.xlu0 %3232
    %v3234 = vcvt.f32.s32 %v3233
    %v3235 = vcvt.f32.s32 %v3229
    %v3236 = vshll.u32 %v3235, 16
    %v3237 = vadd.s32 %v3236, %v3234
    %v3238 = vsel %vm738, %v3132, 2147483647
    %v3239 = vand.u32 %v3238, 65535
    %v3240 = vshra.s32 %v3238, 16
    %v3241 = vcvt.s32.f32 %v3239
    %v3242 = vcvt.s32.f32 %v3240
    %3243 = vmin.xlane.f32.xlu0 %v3242
    %v3244 = vpop.xlane.xlu0 %3243
    %vm3245 = vcmp.eq.f32.partialorder %v3242, %v3244
    %v3246 = vsel %vm3245, %v3241, inf
    %3247 = vmin.xlane.f32.xlu0 %v3246
    %v3248 = vpop.xlane.xlu0 %3247
    %v3249 = vcvt.f32.s32 %v3248
    %v3250 = vcvt.f32.s32 %v3244
    %v3251 = vshll.u32 %v3250, 16
    %v3252 = vadd.s32 %v3251, %v3249
    %vm3253 = vcmp.eq.s32.totalorder %v205, %v3147
    %vm3254 = vcmp.eq.s32.totalorder %v205, %v3162
    %vm3255 = vcmp.eq.s32.totalorder %v205, %v3177
    %vm3256 = vcmp.eq.s32.totalorder %v205, %v3192
    %vm3257 = vcmp.eq.s32.totalorder %v205, %v3207
    %vm3258 = vcmp.eq.s32.totalorder %v205, %v3222
    %vm3259 = vcmp.eq.s32.totalorder %v205, %v3237
    %vm3260 = vcmp.eq.s32.totalorder %v205, %v3252
    %v3261 = vsel %vm3253, 1, 0
    %v3262 = vsel %vm3254, 1, 0
    %v3263 = vsel %vm3255, 1, 0
    %v3264 = vsel %vm3256, 1, 0
    %v3265 = vsel %vm3257, 1, 0
    %v3266 = vsel %vm3258, 1, 0
    %v3267 = vsel %vm3259, 1, 0
    %v3268 = vsel %vm3260, 1, 0
    %v3269 = vcvt.s32.f32 %v3261
    %v3270 = vcvt.s32.f32 %v3262
    %v3271 = vcvt.s32.f32 %v3263
    %v3272 = vcvt.s32.f32 %v3264
    %v3273 = vcvt.s32.f32 %v3265
    %v3274 = vcvt.s32.f32 %v3266
    %v3275 = vcvt.s32.f32 %v3267
    %v3276 = vcvt.s32.f32 %v3268
    %v3277 = vmul.f32 %v3269, 2.0
    %v3278 = vmul.f32 %v3270, 2.0
    %v3279 = vmul.f32 %v3271, 2.0
    %v3280 = vmul.f32 %v3272, 2.0
    %v3281 = vmul.f32 %v3273, 2.0
    %v3282 = vmul.f32 %v3274, 2.0
    %v3283 = vmul.f32 %v3275, 2.0
    %v3284 = vmul.f32 %v3276, 2.0
    %v3285 = vmul.f32 %v154, %v3277
    %v3286 = vmul.f32 %v161, %v3278
    %v3287 = vmul.f32 %v168, %v3279
    %v3288 = vmul.f32 %v175, %v3280
    %v3289 = vmul.f32 %v182, %v3281
    %v3290 = vmul.f32 %v189, %v3282
    %v3291 = vmul.f32 %v196, %v3283
    %v3292 = vmul.f32 %v203, %v3284
    %v3293 = vmul.f32 %v2677, %v3285
    %v3294 = vmul.f32 %v2678, %v3286
    %v3295 = vmul.f32 %v2679, %v3287
    %v3296 = vmul.f32 %v2680, %v3288
    %v3297 = vmul.f32 %v2681, %v3289
    %v3298 = vmul.f32 %v2682, %v3290
    %v3299 = vmul.f32 %v2683, %v3291
    %v3300 = vmul.f32 %v2684, %v3292
    %v3301 = vsel %vm738, %v3293, 0.0
    %v3302 = vsel %vm738, %v3294, 0.0
    %v3303 = vadd.f32 %v3301, %v3302
    %v3304 = vsel %vm738, %v3295, 0.0
    %v3305 = vadd.f32 %v3303, %v3304
    %v3306 = vsel %vm738, %v3296, 0.0
    %v3307 = vadd.f32 %v3305, %v3306
    %3308 = vadd.xlane.f32.xlu0 %v3307
    %v3309 = vpop.xlane.xlu0 %3308
    %v3310 = vrot.slane %v3309, 4
    %v3311 = vadd.f32 %v3309, %v3310
    %v3312 = vrot.slane %v3311, 2
    %v3313 = vadd.f32 %v3311, %v3312
    %v3314 = vrot.slane %v3313, 1
    %v3315 = vadd.f32 %v3313, %v3314
    %s3316 = vtos %v3315
    %v3317 = vsel %vm738, %v3285, 0.0
    %v3318 = vsel %vm738, %v3286, 0.0
    %v3319 = vadd.f32 %v3317, %v3318
    %v3320 = vsel %vm738, %v3287, 0.0
    %v3321 = vadd.f32 %v3319, %v3320
    %v3322 = vsel %vm738, %v3288, 0.0
    %v3323 = vadd.f32 %v3321, %v3322
    %3324 = vadd.xlane.f32.xlu0 %v3323
    %v3325 = vpop.xlane.xlu0 %3324
    %v3326 = vrot.slane %v3325, 4
    %v3327 = vadd.f32 %v3325, %v3326
    %v3328 = vrot.slane %v3327, 2
    %v3329 = vadd.f32 %v3327, %v3328
    %v3330 = vrot.slane %v3329, 1
    %v3331 = vadd.f32 %v3329, %v3330
    %s3332 = vtos %v3331
    %v3333 = vstv %s3332
    %v3334 = vrcp.pop %v3333
    %s3335 = vtos %v3334
    %s3336 = smul.f32 %s3316, %s3335
    %s3337 = sadd.f32 %s1479, %s3336
    %v3338 = vsel %vm738, %v3297, 0.0
    %v3339 = vsel %vm738, %v3298, 0.0
    %v3340 = vadd.f32 %v3338, %v3339
    %v3341 = vsel %vm738, %v3299, 0.0
    %v3342 = vadd.f32 %v3340, %v3341
    %v3343 = vsel %vm738, %v3300, 0.0
    %v3344 = vadd.f32 %v3342, %v3343
    %3345 = vadd.xlane.f32.xlu0 %v3344
    %v3346 = vpop.xlane.xlu0 %3345
    %v3347 = vrot.slane %v3346, 4
    %v3348 = vadd.f32 %v3346, %v3347
    %v3349 = vrot.slane %v3348, 2
    %v3350 = vadd.f32 %v3348, %v3349
    %v3351 = vrot.slane %v3350, 1
    %v3352 = vadd.f32 %v3350, %v3351
    %s3353 = vtos %v3352
    %v3354 = vsel %vm738, %v3289, 0.0
    %v3355 = vsel %vm738, %v3290, 0.0
    %v3356 = vadd.f32 %v3354, %v3355
    %v3357 = vsel %vm738, %v3291, 0.0
    %v3358 = vadd.f32 %v3356, %v3357
    %v3359 = vsel %vm738, %v3292, 0.0
    %v3360 = vadd.f32 %v3358, %v3359
    %3361 = vadd.xlane.f32.xlu0 %v3360
    %v3362 = vpop.xlane.xlu0 %3361
    %v3363 = vrot.slane %v3362, 4
    %v3364 = vadd.f32 %v3362, %v3363
    %v3365 = vrot.slane %v3364, 2
    %v3366 = vadd.f32 %v3364, %v3365
    %v3367 = vrot.slane %v3366, 1
    %v3368 = vadd.f32 %v3366, %v3367
    %s3369 = vtos %v3368
    %v3370 = vstv %s3369
    %v3371 = vrcp.pop %v3370
    %s3372 = vtos %v3371
    %s3373 = smul.f32 %s3353, %s3372
    %s3374 = sadd.f32 %s1516, %s3373
    %v3375 = vsel %vm738, %v3085, -inf
    %3376 = vmax.xlane.f32.xlu0 %v3375
    %v3377 = vpop.xlane.xlu0 %3376
    %v3378 = vsel %vm738, %v3086, -inf
    %3379 = vmax.xlane.f32.xlu0 %v3378
    %v3380 = vpop.xlane.xlu0 %3379
    %v3381 = vsel %vm738, %v3087, -inf
    %3382 = vmax.xlane.f32.xlu0 %v3381
    %v3383 = vpop.xlane.xlu0 %3382
    %v3384 = vsel %vm738, %v3088, -inf
    %3385 = vmax.xlane.f32.xlu0 %v3384
    %v3386 = vpop.xlane.xlu0 %3385
    %v3387 = vsel %vm738, %v3089, -inf
    %3388 = vmax.xlane.f32.xlu0 %v3387
    %v3389 = vpop.xlane.xlu0 %3388
    %v3390 = vsel %vm738, %v3090, -inf
    %3391 = vmax.xlane.f32.xlu0 %v3390
    %v3392 = vpop.xlane.xlu0 %3391
    %v3393 = vsel %vm738, %v3091, -inf
    %3394 = vmax.xlane.f32.xlu0 %v3393
    %v3395 = vpop.xlane.xlu0 %3394
    %v3396 = vsel %vm738, %v3092, -inf
    %3397 = vmax.xlane.f32.xlu0 %v3396
    %v3398 = vpop.xlane.xlu0 %3397
    %v3399 = vsub.f32 %v3085, %v3377
    %v3400 = vsub.f32 %v3086, %v3380
    %v3401 = vsub.f32 %v3087, %v3383
    %v3402 = vsub.f32 %v3088, %v3386
    %v3403 = vsub.f32 %v3089, %v3389
    %v3404 = vsub.f32 %v3090, %v3392
    %v3405 = vsub.f32 %v3091, %v3395
    %v3406 = vsub.f32 %v3092, %v3398
    %v3407 = vmul.f32 %v3399, 1.442695
    %v3408 = vpow.pop %v3407
    %v3409 = vmul.f32 %v3400, 1.442695
    %v3410 = vpow.pop %v3409
    %v3411 = vmul.f32 %v3401, 1.442695
    %v3412 = vpow.pop %v3411
    %v3413 = vmul.f32 %v3402, 1.442695
    %v3414 = vpow.pop %v3413
    %v3415 = vmul.f32 %v3403, 1.442695
    %v3416 = vpow.pop %v3415
    %v3417 = vmul.f32 %v3404, 1.442695
    %v3418 = vpow.pop %v3417
    %v3419 = vmul.f32 %v3405, 1.442695
    %v3420 = vpow.pop %v3419
    %v3421 = vmul.f32 %v3406, 1.442695
    %v3422 = vpow.pop %v3421
    %v3423 = vsel %vm738, %v3408, 0.0
    %3424 = vadd.xlane.f32.xlu0 %v3423
    %v3425 = vpop.xlane.xlu0 %3424
    %v3426 = vsel %vm738, %v3410, 0.0
    %3427 = vadd.xlane.f32.xlu0 %v3426
    %v3428 = vpop.xlane.xlu0 %3427
    %v3429 = vsel %vm738, %v3412, 0.0
    %3430 = vadd.xlane.f32.xlu0 %v3429
    %v3431 = vpop.xlane.xlu0 %3430
    %v3432 = vsel %vm738, %v3414, 0.0
    %3433 = vadd.xlane.f32.xlu0 %v3432
    %v3434 = vpop.xlane.xlu0 %3433
    %v3435 = vsel %vm738, %v3416, 0.0
    %3436 = vadd.xlane.f32.xlu0 %v3435
    %v3437 = vpop.xlane.xlu0 %3436
    %v3438 = vsel %vm738, %v3418, 0.0
    %3439 = vadd.xlane.f32.xlu0 %v3438
    %v3440 = vpop.xlane.xlu0 %3439
    %v3441 = vsel %vm738, %v3420, 0.0
    %3442 = vadd.xlane.f32.xlu0 %v3441
    %v3443 = vpop.xlane.xlu0 %3442
    %v3444 = vsel %vm738, %v3422, 0.0
    %3445 = vadd.xlane.f32.xlu0 %v3444
    %v3446 = vpop.xlane.xlu0 %3445
    %v3447 = vrcp.pop %v3425
    %v3448 = vrcp.pop %v3428
    %v3449 = vrcp.pop %v3431
    %v3450 = vrcp.pop %v3434
    %v3451 = vrcp.pop %v3437
    %v3452 = vrcp.pop %v3440
    %v3453 = vrcp.pop %v3443
    %v3454 = vrcp.pop %v3446
    %v3455 = vmul.f32 %v3408, %v3447
    %v3456 = vmul.f32 %v3410, %v3448
    %v3457 = vmul.f32 %v3412, %v3449
    %v3458 = vmul.f32 %v3414, %v3450
    %v3459 = vmul.f32 %v3416, %v3451
    %v3460 = vmul.f32 %v3418, %v3452
    %v3461 = vmul.f32 %v3420, %v3453
    %v3462 = vmul.f32 %v3422, %v3454
    %v3463 = vsel 0, %v3285, 1.0
    %v3464 = vsel 0, %v3286, 1.0
    %v3465 = vsel 0, %v3287, 1.0
    %v3466 = vsel 0, %v3288, 1.0
    %v3467 = vsel 1, %v3289, 1.0
    %v3468 = vsel 1, %v3290, 1.0
    %v3469 = vsel 1, %v3291, 1.0
    %v3470 = vsel 1, %v3292, 1.0
    %v3471 = vmul.f32 %v3455, %v3463
    %v3472 = vmul.f32 %v3456, %v3464
    %v3473 = vmul.f32 %v3457, %v3465
    %v3474 = vmul.f32 %v3458, %v3466
    %v3475 = vmul.f32 %v3459, %v3467
    %v3476 = vmul.f32 %v3460, %v3468
    %v3477 = vmul.f32 %v3461, %v3469
    %v3478 = vmul.f32 %v3462, %v3470
    %v3479 = vpack.c.bf16 %v3471, %v3471
    %v3480 = vpack.c.bf16 %v3472, %v3472
    %v3481 = vpack.c.bf16 %v3473, %v3473
    %v3482 = vpack.c.bf16 %v3474, %v3474
    %v3483 = vpack.c.bf16 %v3475, %v3475
    %v3484 = vpack.c.bf16 %v3476, %v3476
    %v3485 = vpack.c.bf16 %v3477, %v3477
    %v3486 = vpack.c.bf16 %v3478, %v3478
    %3487 = vrot.lane.b32.xlu0 %v2181, 96
    %v3488 = vpop.permute.xlu0 %3487
    %v3490 = vsel %vm738, %v3479, 0
    %v3493 = vsel %vm1634, %v3488, 0
    %3495 = vmatprep.subr.bf16.mxu0 0
    %3496 = vmatpush1.bf16.msra.mxu0 %v3493
    %3497 = vmatprep.subr.bf16.mxu0 0
    %3498 = vmatpush1.bf16.msra.mxu0 0
    %3499 = vmatprep.subr.bf16.mxu0 0
    %3500 = vmatpush1.bf16.msra.mxu0 0
    %3501 = vmatprep.subr.bf16.mxu0 0
    %3502 = vmatpush1.bf16.msra.mxu0 0
    %3503 = vmatprep.subr.bf16.mxu0 0
    %3504 = vmatpush1.bf16.msra.mxu0 0
    %3505 = vmatprep.subr.bf16.mxu0 0
    %3506 = vmatpush1.bf16.msra.mxu0 0
    %3507 = vmatprep.subr.bf16.mxu0 0
    %3508 = vmatpush1.bf16.msra.mxu0 0
    %3509 = vmatprep.subr.bf16.mxu0 0
    %3510 = vmatpush1.bf16.msra.mxu0 0
    %3511 = vmatprep.subr.bf16.mxu0 0
    %3512 = vmatpush1.bf16.msra.mxu0 0
    %3513 = vmatprep.subr.bf16.mxu0 0
    %3514 = vmatpush1.bf16.msra.mxu0 0
    %3515 = vmatprep.subr.bf16.mxu0 0
    %3516 = vmatpush1.bf16.msra.mxu0 0
    %3517 = vmatprep.subr.bf16.mxu0 0
    %3518 = vmatpush1.bf16.msra.mxu0 0
    %3519 = vmatprep.subr.bf16.mxu0 0
    %3520 = vmatpush1.bf16.msra.mxu0 0
    %3521 = vmatprep.subr.bf16.mxu0 0
    %3522 = vmatpush1.bf16.msra.mxu0 0
    %3523 = vmatprep.subr.bf16.mxu0 0
    %3524 = vmatpush1.bf16.msra.mxu0 0
    %3525 = vmatprep.subr.bf16.mxu0 0
    %3526 = vmatpush1.bf16.msra.mxu0 0
    %3527 = vmatprep.mubr.bf16.mxu0 0
    %3528 = vmatmul.mubr.bf16.gmra.mrb[0].mxu0 %v3490
    %v3529 = vpop.f32.mrb[0].mxu0
    %v3530 = vadd.f32 0.0, %v3529
    %v3531 = vpop.f32.mrb[0].mxu0
    %v3532 = vpop.f32.mrb[0].mxu0
    %v3533 = vpop.f32.mrb[0].mxu0
    %3534 = vdwg.mxu0
    %3535 = vrot.lane.b32.xlu0 %v2182, 96
    %v3536 = vpop.permute.xlu0 %3535
    %v3538 = vsel %vm738, %v3480, 0
    %v3541 = vsel %vm1634, %v3536, 0
    %3543 = vmatprep.subr.bf16.mxu0 0
    %3544 = vmatpush1.bf16.msra.mxu0 %v3541
    %3545 = vmatprep.subr.bf16.mxu0 0
    %3546 = vmatpush1.bf16.msra.mxu0 0
    %3547 = vmatprep.subr.bf16.mxu0 0
    %3548 = vmatpush1.bf16.msra.mxu0 0
    %3549 = vmatprep.subr.bf16.mxu0 0
    %3550 = vmatpush1.bf16.msra.mxu0 0
    %3551 = vmatprep.subr.bf16.mxu0 0
    %3552 = vmatpush1.bf16.msra.mxu0 0
    %3553 = vmatprep.subr.bf16.mxu0 0
    %3554 = vmatpush1.bf16.msra.mxu0 0
    %3555 = vmatprep.subr.bf16.mxu0 0
    %3556 = vmatpush1.bf16.msra.mxu0 0
    %3557 = vmatprep.subr.bf16.mxu0 0
    %3558 = vmatpush1.bf16.msra.mxu0 0
    %3559 = vmatprep.subr.bf16.mxu0 0
    %3560 = vmatpush1.bf16.msra.mxu0 0
    %3561 = vmatprep.subr.bf16.mxu0 0
    %3562 = vmatpush1.bf16.msra.mxu0 0
    %3563 = vmatprep.subr.bf16.mxu0 0
    %3564 = vmatpush1.bf16.msra.mxu0 0
    %3565 = vmatprep.subr.bf16.mxu0 0
    %3566 = vmatpush1.bf16.msra.mxu0 0
    %3567 = vmatprep.subr.bf16.mxu0 0
    %3568 = vmatpush1.bf16.msra.mxu0 0
    %3569 = vmatprep.subr.bf16.mxu0 0
    %3570 = vmatpush1.bf16.msra.mxu0 0
    %3571 = vmatprep.subr.bf16.mxu0 0
    %3572 = vmatpush1.bf16.msra.mxu0 0
    %3573 = vmatprep.subr.bf16.mxu0 0
    %3574 = vmatpush1.bf16.msra.mxu0 0
    %3575 = vmatprep.mubr.bf16.mxu0 0
    %3576 = vmatmul.mubr.bf16.gmra.mrb[0].mxu0 %v3538
    %v3577 = vpop.f32.mrb[0].mxu0
    %v3578 = vadd.f32 0.0, %v3577
    %v3579 = vpop.f32.mrb[0].mxu0
    %v3580 = vpop.f32.mrb[0].mxu0
    %v3581 = vpop.f32.mrb[0].mxu0
    %3582 = vdwg.mxu0
    %3583 = vrot.lane.b32.xlu0 %v2183, 96
    %v3584 = vpop.permute.xlu0 %3583
    %v3586 = vsel %vm738, %v3481, 0
    %v3589 = vsel %vm1634, %v3584, 0
    %3591 = vmatprep.subr.bf16.mxu0 0
    %3592 = vmatpush1.bf16.msra.mxu0 %v3589
    %3593 = vmatprep.subr.bf16.mxu0 0
    %3594 = vmatpush1.bf16.msra.mxu0 0
    %3595 = vmatprep.subr.bf16.mxu0 0
    %3596 = vmatpush1.bf16.msra.mxu0 0
    %3597 = vmatprep.subr.bf16.mxu0 0
    %3598 = vmatpush1.bf16.msra.mxu0 0
    %3599 = vmatprep.subr.bf16.mxu0 0
    %3600 = vmatpush1.bf16.msra.mxu0 0
    %3601 = vmatprep.subr.bf16.mxu0 0
    %3602 = vmatpush1.bf16.msra.mxu0 0
    %3603 = vmatprep.subr.bf16.mxu0 0
    %3604 = vmatpush1.bf16.msra.mxu0 0
    %3605 = vmatprep.subr.bf16.mxu0 0
    %3606 = vmatpush1.bf16.msra.mxu0 0
    %3607 = vmatprep.subr.bf16.mxu0 0
    %3608 = vmatpush1.bf16.msra.mxu0 0
    %3609 = vmatprep.subr.bf16.mxu0 0
    %3610 = vmatpush1.bf16.msra.mxu0 0
    %3611 = vmatprep.subr.bf16.mxu0 0
    %3612 = vmatpush1.bf16.msra.mxu0 0
    %3613 = vmatprep.subr.bf16.mxu0 0
    %3614 = vmatpush1.bf16.msra.mxu0 0
    %3615 = vmatprep.subr.bf16.mxu0 0
    %3616 = vmatpush1.bf16.msra.mxu0 0
    %3617 = vmatprep.subr.bf16.mxu0 0
    %3618 = vmatpush1.bf16.msra.mxu0 0
    %3619 = vmatprep.subr.bf16.mxu0 0
    %3620 = vmatpush1.bf16.msra.mxu0 0
    %3621 = vmatprep.subr.bf16.mxu0 0
    %3622 = vmatpush1.bf16.msra.mxu0 0
    %3623 = vmatprep.mubr.bf16.mxu0 0
    %3624 = vmatmul.mubr.bf16.gmra.mrb[0].mxu0 %v3586
    %v3625 = vpop.f32.mrb[0].mxu0
    %v3626 = vadd.f32 0.0, %v3625
    %v3627 = vpop.f32.mrb[0].mxu0
    %v3628 = vpop.f32.mrb[0].mxu0
    %v3629 = vpop.f32.mrb[0].mxu0
    %3630 = vdwg.mxu0
    %3631 = vrot.lane.b32.xlu0 %v2184, 96
    %v3632 = vpop.permute.xlu0 %3631
    %v3634 = vsel %vm738, %v3482, 0
    %v3637 = vsel %vm1634, %v3632, 0
    %3639 = vmatprep.subr.bf16.mxu0 0
    %3640 = vmatpush1.bf16.msra.mxu0 %v3637
    %3641 = vmatprep.subr.bf16.mxu0 0
    %3642 = vmatpush1.bf16.msra.mxu0 0
    %3643 = vmatprep.subr.bf16.mxu0 0
    %3644 = vmatpush1.bf16.msra.mxu0 0
    %3645 = vmatprep.subr.bf16.mxu0 0
    %3646 = vmatpush1.bf16.msra.mxu0 0
    %3647 = vmatprep.subr.bf16.mxu0 0
    %3648 = vmatpush1.bf16.msra.mxu0 0
    %3649 = vmatprep.subr.bf16.mxu0 0
    %3650 = vmatpush1.bf16.msra.mxu0 0
    %3651 = vmatprep.subr.bf16.mxu0 0
    %3652 = vmatpush1.bf16.msra.mxu0 0
    %3653 = vmatprep.subr.bf16.mxu0 0
    %3654 = vmatpush1.bf16.msra.mxu0 0
    %3655 = vmatprep.subr.bf16.mxu0 0
    %3656 = vmatpush1.bf16.msra.mxu0 0
    %3657 = vmatprep.subr.bf16.mxu0 0
    %3658 = vmatpush1.bf16.msra.mxu0 0
    %3659 = vmatprep.subr.bf16.mxu0 0
    %3660 = vmatpush1.bf16.msra.mxu0 0
    %3661 = vmatprep.subr.bf16.mxu0 0
    %3662 = vmatpush1.bf16.msra.mxu0 0
    %3663 = vmatprep.subr.bf16.mxu0 0
    %3664 = vmatpush1.bf16.msra.mxu0 0
    %3665 = vmatprep.subr.bf16.mxu0 0
    %3666 = vmatpush1.bf16.msra.mxu0 0
    %3667 = vmatprep.subr.bf16.mxu0 0
    %3668 = vmatpush1.bf16.msra.mxu0 0
    %3669 = vmatprep.subr.bf16.mxu0 0
    %3670 = vmatpush1.bf16.msra.mxu0 0
    %3671 = vmatprep.mubr.bf16.mxu0 0
    %3672 = vmatmul.mubr.bf16.gmra.mrb[0].mxu0 %v3634
    %v3673 = vpop.f32.mrb[0].mxu0
    %v3674 = vadd.f32 0.0, %v3673
    %v3675 = vpop.f32.mrb[0].mxu0
    %v3676 = vpop.f32.mrb[0].mxu0
    %v3677 = vpop.f32.mrb[0].mxu0
    %3678 = vdwg.mxu0
    %3679 = vrot.lane.b32.xlu0 %v2185, 96
    %v3680 = vpop.permute.xlu0 %3679
    %v3682 = vsel %vm738, %v3483, 0
    %v3685 = vsel %vm1634, %v3680, 0
    %3687 = vmatprep.subr.bf16.mxu0 0
    %3688 = vmatpush1.bf16.msra.mxu0 %v3685
    %3689 = vmatprep.subr.bf16.mxu0 0
    %3690 = vmatpush1.bf16.msra.mxu0 0
    %3691 = vmatprep.subr.bf16.mxu0 0
    %3692 = vmatpush1.bf16.msra.mxu0 0
    %3693 = vmatprep.subr.bf16.mxu0 0
    %3694 = vmatpush1.bf16.msra.mxu0 0
    %3695 = vmatprep.subr.bf16.mxu0 0
    %3696 = vmatpush1.bf16.msra.mxu0 0
    %3697 = vmatprep.subr.bf16.mxu0 0
    %3698 = vmatpush1.bf16.msra.mxu0 0
    %3699 = vmatprep.subr.bf16.mxu0 0
    %3700 = vmatpush1.bf16.msra.mxu0 0
    %3701 = vmatprep.subr.bf16.mxu0 0
    %3702 = vmatpush1.bf16.msra.mxu0 0
    %3703 = vmatprep.subr.bf16.mxu0 0
    %3704 = vmatpush1.bf16.msra.mxu0 0
    %3705 = vmatprep.subr.bf16.mxu0 0
    %3706 = vmatpush1.bf16.msra.mxu0 0
    %3707 = vmatprep.subr.bf16.mxu0 0
    %3708 = vmatpush1.bf16.msra.mxu0 0
    %3709 = vmatprep.subr.bf16.mxu0 0
    %3710 = vmatpush1.bf16.msra.mxu0 0
    %3711 = vmatprep.subr.bf16.mxu0 0
    %3712 = vmatpush1.bf16.msra.mxu0 0
    %3713 = vmatprep.subr.bf16.mxu0 0
    %3714 = vmatpush1.bf16.msra.mxu0 0
    %3715 = vmatprep.subr.bf16.mxu0 0
    %3716 = vmatpush1.bf16.msra.mxu0 0
    %3717 = vmatprep.subr.bf16.mxu0 0
    %3718 = vmatpush1.bf16.msra.mxu0 0
    %3719 = vmatprep.mubr.bf16.mxu0 0
    %3720 = vmatmul.mubr.bf16.gmra.mrb[0].mxu0 %v3682
    %v3721 = vpop.f32.mrb[0].mxu0
    %v3722 = vadd.f32 0.0, %v3721
    %v3723 = vpop.f32.mrb[0].mxu0
    %v3724 = vpop.f32.mrb[0].mxu0
    %v3725 = vpop.f32.mrb[0].mxu0
    %3726 = vdwg.mxu0
    %3727 = vrot.lane.b32.xlu0 %v2186, 96
    %v3728 = vpop.permute.xlu0 %3727
    %v3730 = vsel %vm738, %v3484, 0
    %v3733 = vsel %vm1634, %v3728, 0
    %3735 = vmatprep.subr.bf16.mxu0 0
    %3736 = vmatpush1.bf16.msra.mxu0 %v3733
    %3737 = vmatprep.subr.bf16.mxu0 0
    %3738 = vmatpush1.bf16.msra.mxu0 0
    %3739 = vmatprep.subr.bf16.mxu0 0
    %3740 = vmatpush1.bf16.msra.mxu0 0
    %3741 = vmatprep.subr.bf16.mxu0 0
    %3742 = vmatpush1.bf16.msra.mxu0 0
    %3743 = vmatprep.subr.bf16.mxu0 0
    %3744 = vmatpush1.bf16.msra.mxu0 0
    %3745 = vmatprep.subr.bf16.mxu0 0
    %3746 = vmatpush1.bf16.msra.mxu0 0
    %3747 = vmatprep.subr.bf16.mxu0 0
    %3748 = vmatpush1.bf16.msra.mxu0 0
    %3749 = vmatprep.subr.bf16.mxu0 0
    %3750 = vmatpush1.bf16.msra.mxu0 0
    %3751 = vmatprep.subr.bf16.mxu0 0
    %3752 = vmatpush1.bf16.msra.mxu0 0
    %3753 = vmatprep.subr.bf16.mxu0 0
    %3754 = vmatpush1.bf16.msra.mxu0 0
    %3755 = vmatprep.subr.bf16.mxu0 0
    %3756 = vmatpush1.bf16.msra.mxu0 0
    %3757 = vmatprep.subr.bf16.mxu0 0
    %3758 = vmatpush1.bf16.msra.mxu0 0
    %3759 = vmatprep.subr.bf16.mxu0 0
    %3760 = vmatpush1.bf16.msra.mxu0 0
    %3761 = vmatprep.subr.bf16.mxu0 0
    %3762 = vmatpush1.bf16.msra.mxu0 0
    %3763 = vmatprep.subr.bf16.mxu0 0
    %3764 = vmatpush1.bf16.msra.mxu0 0
    %3765 = vmatprep.subr.bf16.mxu0 0
    %3766 = vmatpush1.bf16.msra.mxu0 0
    %3767 = vmatprep.mubr.bf16.mxu0 0
    %3768 = vmatmul.mubr.bf16.gmra.mrb[0].mxu0 %v3730
    %v3769 = vpop.f32.mrb[0].mxu0
    %v3770 = vadd.f32 0.0, %v3769
    %v3771 = vpop.f32.mrb[0].mxu0
    %v3772 = vpop.f32.mrb[0].mxu0
    %v3773 = vpop.f32.mrb[0].mxu0
    %3774 = vdwg.mxu0
    %3775 = vrot.lane.b32.xlu0 %v2187, 96
    %v3776 = vpop.permute.xlu0 %3775
    %v3778 = vsel %vm738, %v3485, 0
    %v3781 = vsel %vm1634, %v3776, 0
    %3783 = vmatprep.subr.bf16.mxu0 0
    %3784 = vmatpush1.bf16.msra.mxu0 %v3781
    %3785 = vmatprep.subr.bf16.mxu0 0
    %3786 = vmatpush1.bf16.msra.mxu0 0
    %3787 = vmatprep.subr.bf16.mxu0 0
    %3788 = vmatpush1.bf16.msra.mxu0 0
    %3789 = vmatprep.subr.bf16.mxu0 0
    %3790 = vmatpush1.bf16.msra.mxu0 0
    %3791 = vmatprep.subr.bf16.mxu0 0
    %3792 = vmatpush1.bf16.msra.mxu0 0
    %3793 = vmatprep.subr.bf16.mxu0 0
    %3794 = vmatpush1.bf16.msra.mxu0 0
    %3795 = vmatprep.subr.bf16.mxu0 0
    %3796 = vmatpush1.bf16.msra.mxu0 0
    %3797 = vmatprep.subr.bf16.mxu0 0
    %3798 = vmatpush1.bf16.msra.mxu0 0
    %3799 = vmatprep.subr.bf16.mxu0 0
    %3800 = vmatpush1.bf16.msra.mxu0 0
    %3801 = vmatprep.subr.bf16.mxu0 0
    %3802 = vmatpush1.bf16.msra.mxu0 0
    %3803 = vmatprep.subr.bf16.mxu0 0
    %3804 = vmatpush1.bf16.msra.mxu0 0
    %3805 = vmatprep.subr.bf16.mxu0 0
    %3806 = vmatpush1.bf16.msra.mxu0 0
    %3807 = vmatprep.subr.bf16.mxu0 0
    %3808 = vmatpush1.bf16.msra.mxu0 0
    %3809 = vmatprep.subr.bf16.mxu0 0
    %3810 = vmatpush1.bf16.msra.mxu0 0
    %3811 = vmatprep.subr.bf16.mxu0 0
    %3812 = vmatpush1.bf16.msra.mxu0 0
    %3813 = vmatprep.subr.bf16.mxu0 0
    %3814 = vmatpush1.bf16.msra.mxu0 0
    %3815 = vmatprep.mubr.bf16.mxu0 0
    %3816 = vmatmul.mubr.bf16.gmra.mrb[0].mxu0 %v3778
    %v3817 = vpop.f32.mrb[0].mxu0
    %v3818 = vadd.f32 0.0, %v3817
    %v3819 = vpop.f32.mrb[0].mxu0
    %v3820 = vpop.f32.mrb[0].mxu0
    %v3821 = vpop.f32.mrb[0].mxu0
    %3822 = vdwg.mxu0
    %3823 = vrot.lane.b32.xlu0 %v2188, 96
    %v3824 = vpop.permute.xlu0 %3823
    %v3826 = vsel %vm738, %v3486, 0
    %v3829 = vsel %vm1634, %v3824, 0
    %3831 = vmatprep.subr.bf16.mxu0 0
    %3832 = vmatpush1.bf16.msra.mxu0 %v3829
    %3833 = vmatprep.subr.bf16.mxu0 0
    %3834 = vmatpush1.bf16.msra.mxu0 0
    %3835 = vmatprep.subr.bf16.mxu0 0
    %3836 = vmatpush1.bf16.msra.mxu0 0
    %3837 = vmatprep.subr.bf16.mxu0 0
    %3838 = vmatpush1.bf16.msra.mxu0 0
    %3839 = vmatprep.subr.bf16.mxu0 0
    %3840 = vmatpush1.bf16.msra.mxu0 0
    %3841 = vmatprep.subr.bf16.mxu0 0
    %3842 = vmatpush1.bf16.msra.mxu0 0
    %3843 = vmatprep.subr.bf16.mxu0 0
    %3844 = vmatpush1.bf16.msra.mxu0 0
    %3845 = vmatprep.subr.bf16.mxu0 0
    %3846 = vmatpush1.bf16.msra.mxu0 0
    %3847 = vmatprep.subr.bf16.mxu0 0
    %3848 = vmatpush1.bf16.msra.mxu0 0
    %3849 = vmatprep.subr.bf16.mxu0 0
    %3850 = vmatpush1.bf16.msra.mxu0 0
    %3851 = vmatprep.subr.bf16.mxu0 0
    %3852 = vmatpush1.bf16.msra.mxu0 0
    %3853 = vmatprep.subr.bf16.mxu0 0
    %3854 = vmatpush1.bf16.msra.mxu0 0
    %3855 = vmatprep.subr.bf16.mxu0 0
    %3856 = vmatpush1.bf16.msra.mxu0 0
    %3857 = vmatprep.subr.bf16.mxu0 0
    %3858 = vmatpush1.bf16.msra.mxu0 0
    %3859 = vmatprep.subr.bf16.mxu0 0
    %3860 = vmatpush1.bf16.msra.mxu0 0
    %3861 = vmatprep.subr.bf16.mxu0 0
    %3862 = vmatpush1.bf16.msra.mxu0 0
    %3863 = vmatprep.mubr.bf16.mxu0 0
    %3864 = vmatmul.mubr.bf16.gmra.mrb[0].mxu0 %v3826
    %v3865 = vpop.f32.mrb[0].mxu0
    %v3866 = vadd.f32 0.0, %v3865
    %v3867 = vpop.f32.mrb[0].mxu0
    %v3868 = vpop.f32.mrb[0].mxu0
    %v3869 = vpop.f32.mrb[0].mxu0
    %3870 = vdwg.mxu0
    %3873 = vrot.lane.b32.xlu0 %v3626, 16
    %v3874 = vpop.permute.xlu0 %3873
    %3875 = vrot.lane.b32.xlu0 %v3674, 16
    %v3876 = vpop.permute.xlu0 %3875
    %3881 = vrot.lane.b32.xlu0 %v3722, 32
    %v3882 = vpop.permute.xlu0 %3881
    %3883 = vrot.lane.b32.xlu0 %v3770, 32
    %v3884 = vpop.permute.xlu0 %3883
    %3889 = vrot.lane.b32.xlu0 %v3818, 48
    %v3890 = vpop.permute.xlu0 %3889
    %3891 = vrot.lane.b32.xlu0 %v3866, 48
    %v3892 = vpop.permute.xlu0 %3891
    %v3895 = vsel %vm332, %v3530, %v3874
    %v3896 = vsel %vm332, %v3578, %v3876
    %v3897 = vsel %vm86, %v3895, %v3882
    %v3898 = vsel %vm86, %v3896, %v3884
    %v3899 = vsel %vm2042, %v3897, %v3890
    %v3900 = vsel %vm2042, %v3898, %v3892
    %v3901 = vsel %vm2106, %v3899, 0.0
    %v3902 = vsel %vm2106, %v3900, 0.0
    %3903 = vst [vmem:[#allocation11] sm:$0xff] %v3901
    %3904 = vst [vmem:[#allocation11 + $0x8] sm:$0xff] %v3902
    %v3905 = vrcp.pop 2.0
    %s3906 = vtos %v3905
    %s3907 = smul.f32 %s3337, %s3906
    %s3908 = scalar_lea.smem [#allocation12], 0
    %3909 = sst [smem:[%s3908]] %s3907
    %v3910 = vrcp.pop 2.0
    %s3911 = vtos %v3910
    %s3912 = smul.f32 %s3374, %s3911
    %s3913 = scalar_lea.smem [#allocation12], 1
    %3914 = sst [smem:[%s3913]] %s3912
    // Predicated region
    $region46: #{tpu_custom_call.1} parent=1 // pred_check
      _
    $region47: #{tpu_custom_call.1} parent=1 // pred_check_branch
      %3916 = sbr.rel (0) target = $region49
    $region48: #{tpu_custom_call.1} parent=1 // pred_region
      %s3918 = ssub.s32 256, 256
      %3919 = vsyncadd [#allocation4], %s3918
      %s3920 = sshll.u32 [#allocation11], 4
      %s3921 = int_to_ptr.vmem [resolvable:$true] %s3920
      %3926 = dma.vmem_to_hbm [thread:$0]  %s3921, 256, %s7, [#allocation4], 128, 128, 8
    $region49: #{tpu_custom_call.1} parent=1 // pred_fallthru
      _
    // Predicated region
    $region50: #{tpu_custom_call.1} parent=1 // pred_check
      _
    $region51: #{tpu_custom_call.1} parent=1 // pred_check_branch
      %3928 = sbr.rel (0) target = $region53
    $region52: #{tpu_custom_call.1} parent=1 // pred_region
      %s3930 = ssub.s32 16, 16
      %3931 = vsyncadd [#allocation5], %s3930
      %3934 = dma.smem_to_hbm [#allocation12], 16, %s8, [#allocation5]
    $region53: #{tpu_custom_call.1} parent=1 // pred_fallthru
      _
    // Predicated region
    $region54: #{tpu_custom_call.1} parent=1 // pred_check
      _
    $region55: #{tpu_custom_call.1} parent=1 // pred_check_branch
      %3936 = sbr.rel (0) target = $region57
    $region56: #{tpu_custom_call.1} parent=1 // pred_region
      %3937 = dma.done [#allocation4], 256
    $region57: #{tpu_custom_call.1} parent=1 // pred_fallthru
      _
    // Predicated region
    $region58: #{tpu_custom_call.1} parent=1 // pred_check
      _
    $region59: #{tpu_custom_call.1} parent=1 // pred_check_branch
      %3939 = sbr.rel (0) target = $region61
    $region60: #{tpu_custom_call.1} parent=1 // pred_region
      %3940 = dma.done [#allocation5], 16
    $region61: #{tpu_custom_call.1} parent=1 // pred_fallthru
      _
    %3941 = sfence
    %3942 = vsyncpa [#allocation3], 1
    %3943 = vsyncpa [#allocation7], 1
    %3944 = vsyncpa [#allocation10], 1
    %3945 = vsyncpa [#allocation4], 1
    %3946 = vsyncpa [#allocation5], 1

</llo_original>
